<compile_context>
chip_gen: v5e
topology: v5e:2x2
jax: 0.10.0
libtpu: 0.0.40
codegen_flags: <defaults>
</compile_context>

<pallas_src>
from functools import partial

import jax
import jax.numpy as jnp
from jax.experimental import pallas as pl
from jax.experimental.pallas import tpu as pltpu

LEAKY_SLOPE = 0.01                 # nn.LeakyReLU() default negative_slope
BN_EPS = 1e-5                      # nn.BatchNorm2d default eps
LANE = 128
MATMUL_DTYPE = jnp.bfloat16        # MXU operands; accumulation stays f32


def _round_up(x, m):
    return (x + m - 1) // m * m


def _tpu_vmem_bytes():
    try:
        info = pltpu.get_tpu_info()
        v = int(getattr(info, "vmem_capacity_bytes", 0))
        return v if v > 0 else 64 * 1024 * 1024
    except Exception:
        return 64 * 1024 * 1024     # v7x-safe fallback


def _largest_divisor(n, fits):
    best = 1
    for d in range(1, n + 1):
        if n % d == 0 and fits(d):
            best = d
    return best


def _plan_conv_tile(OH, OW, OWp1, C4, COUT_P, vmem_bytes):
    """Largest row-band (divisor of OH) that keeps the conv pass inside VMEM."""
    m_cap = 512 if vmem_bytes <= 64 * 2**20 else 1024
    budget = int(vmem_bytes * 0.4)
    w_bytes = 4 * C4 * COUT_P * 2                       # bf16 weights

    def fits(t):
        band = t * OWp1 * C4 * 2
        out = t * OW * COUT_P * 4
        stitch = (t + 1) * OWp1 * C4 * 2
        taps = t * OW * C4 * 2
        acc = t * OW * COUT_P * 4
        est = 2 * (band + out) + 2 * w_bytes + stitch + 2 * taps + acc
        return (t * OW <= m_cap) and (est <= budget)

    # TODO(synk): for very deep layers (Cin*Cout huge) add a K/N grid axis on
    # v7x instead of holding the whole (4, 4*Cin, Cout) weight in VMEM.
    return _largest_divisor(OH, fits)


def _plan_affine_tile(OH, OW, COUT_P, vmem_bytes):
    """Row-band for the (memory-bound) BN affine + LeakyReLU pass."""
    budget = int(vmem_bytes * 0.4)

    def fits(t):
        return t * OW * COUT_P * (2 + 4) * 2 <= budget  # bf16 in + f32 out, 2x buf

    return _largest_divisor(OH, fits)


# ---------------------------- Pallas kernels ----------------------------

def _conv_taps(stitch_ref, w_ref, tile_oh, ow, c4):
    """Accumulate the 4 space-to-depth taps on the MXU; f32 (tile_oh*ow, cout_p)."""
    acc = None
    for t in range(4):
        tr, tc = divmod(t, 2)
        tap = stitch_ref[tr:tr + tile_oh, tc:tc + ow, :]          # bf16 slice
        tap2 = tap.reshape(tile_oh * ow, c4)
        part = jnp.dot(tap2, w_ref[t], preferred_element_type=jnp.float32)
        acc = part if acc is None else acc + part
    return acc


def _make_conv_act_kernel(tile_oh, ow, c4, cout_p):
    """Fused conv (4 in-kernel taps) + LeakyReLU, no BatchNorm."""
    def kernel(band_ref, tail_ref, w_ref, o_ref, stitch_ref):
        stitch_ref[0:tile_oh] = band_ref[0]
        stitch_ref[tile_oh:tile_oh + 1] = tail_ref[0]
        acc = _conv_taps(stitch_ref, w_ref, tile_oh, ow, c4)
        y = jnp.where(acc >= 0.0, acc, LEAKY_SLOPE * acc)
        o_ref[0] = y.reshape(tile_oh, ow, cout_p).astype(o_ref.dtype)
    return kernel


def _make_conv_stats_kernel(tile_oh, ow, c4, cout_p):
    """Conv + per-tile partial sum / sum-of-squares (fully parallel grid)."""
    def kernel(band_ref, tail_ref, w_ref, y_ref, psum_ref, pssq_ref, stitch_ref):
        stitch_ref[0:tile_oh] = band_ref[0]
        stitch_ref[tile_oh:tile_oh + 1] = tail_ref[0]
        acc = _conv_taps(stitch_ref, w_ref, tile_oh, ow, c4)      # f32
        y_ref[0] = acc.reshape(tile_oh, ow, cout_p).astype(y_ref.dtype)
        s = jnp.sum(acc, axis=0, keepdims=True)                   # (1, cout_p)
        ss = jnp.sum(acc * acc, axis=0, keepdims=True)
        # store in an (8, cout_p) tile (full last-two dims); glue reads row 0
        psum_ref[0, 0] = jnp.broadcast_to(s, (8, cout_p))
        pssq_ref[0, 0] = jnp.broadcast_to(ss, (8, cout_p))
    return kernel


def _bn_act_kernel(y_ref, scale_ref, shift_ref, o_ref):
    """Folded batch-norm affine (per-channel) + LeakyReLU."""
    y = y_ref[0].astype(jnp.float32)                              # (t, OW, C)
    z = y * scale_ref[0] + shift_ref[0]                           # (1, C) bcast
    o_ref[0] = jnp.where(z >= 0.0, z, LEAKY_SLOPE * z)


# ------------------------------- wrappers -------------------------------

def downsample_block(x_nhwc, w, gamma, beta, use_bn):
    """One DownSampleBlock on a channels-last activation.

    x_nhwc: (N, H, W, Cin) f32
    w:      (Cout, Cin, 4, 4)  (PyTorch layout)
    gamma/beta: (Cout,)
    returns (N, OH, OW, Cout) f32, channels-last.
    """
    N, H, W_, Cin = x_nhwc.shape
    Cout = w.shape[0]
    assert H % 2 == 0 and W_ % 2 == 0, "kernel assumes even spatial dims"
    OH, OW = H // 2, W_ // 2
    OWp1 = OW + 1
    C4 = 4 * Cin
    # lane padding only when Cout >= 128 (tiny-Cout layers keep true width)
    COUT_P = Cout if Cout < LANE else _round_up(Cout, LANE)

    vmem = _tpu_vmem_bytes()
    vmem_limit = max(32 * 2**20, min(int(vmem * 0.7), 100 * 2**20))

    # stride-2 space-to-depth of the padded input (one cheap XLA relayout,
    # produced directly in bf16).  4x4/s2 conv -> 2x2/s1 conv over 4*Cin chans.
    xp = jnp.pad(x_nhwc, ((0, 0), (1, 1), (1, 1), (0, 0)))
    xs = xp.reshape(N, OH + 1, 2, OWp1, 2, Cin)
    xs = xs.transpose(0, 1, 3, 2, 4, 5).reshape(N, OH + 1, OWp1, C4)
    xs = xs.astype(MATMUL_DTYPE)

    # weights -> (tap=(tr,tc), K=(di,dj,ci), Cout), matching the s2d channel order
    w4 = w.reshape(Cout, Cin, 2, 2, 2, 2).transpose(2, 4, 3, 5, 1, 0)
    w4 = w4.reshape(4, C4, Cout)
    if COUT_P != Cout:
        w4 = jnp.pad(w4, ((0, 0), (0, 0), (0, COUT_P - Cout)))
    w4 = w4.astype(MATMUL_DTYPE)

    tile_oh = _plan_conv_tile(OH, OW, OWp1, C4, COUT_P, vmem)
    R = OH // tile_oh
    grid = (N, R)

    band_spec = pl.BlockSpec((1, tile_oh, OWp1, C4), lambda n, r: (n, r, 0, 0))
    tail_spec = pl.BlockSpec((1, 1, OWp1, C4),
                             lambda n, r: (n, (r + 1) * tile_oh, 0, 0))
    w_spec = pl.BlockSpec((4, C4, COUT_P), lambda n, r: (0, 0, 0))
    y_spec = pl.BlockSpec((1, tile_oh, OW, COUT_P), lambda n, r: (n, r, 0, 0))
    stitch = pltpu.VMEM((tile_oh + 1, OWp1, C4), MATMUL_DTYPE)

    flops = int(2 * N * OH * OW * (16 * Cin) * COUT_P)
    cparams = pltpu.CompilerParams(
        dimension_semantics=("parallel", "parallel"),
        vmem_limit_bytes=vmem_limit)

    if not use_bn:
        out = pl.pallas_call(
            _make_conv_act_kernel(tile_oh, OW, C4, COUT_P),
            grid=grid,
            in_specs=[band_spec, tail_spec, w_spec],
            out_specs=y_spec,
            out_shape=jax.ShapeDtypeStruct((N, OH, OW, COUT_P), jnp.float32),
            scratch_shapes=[stitch],
            compiler_params=cparams,
            cost_estimate=pl.CostEstimate(
                flops=flops, transcendentals=0,
                bytes_accessed=int(xs.size * 2 + w4.size * 2
                                   + N * OH * OW * COUT_P * 4)),
        )(xs, xs, w4)
    else:
        # ---- pass 1: conv + per-tile partial stats (parallel over N and rows) ----
        y, psum, pssq = pl.pallas_call(
            _make_conv_stats_kernel(tile_oh, OW, C4, COUT_P),
            grid=grid,
            in_specs=[band_spec, tail_spec, w_spec],
            out_specs=(
                y_spec,
                pl.BlockSpec((1, 1, 8, COUT_P), lambda n, r: (n, r, 0, 0)),
                pl.BlockSpec((1, 1, 8, COUT_P), lambda n, r: (n, r, 0, 0)),
            ),
            out_shape=(
                jax.ShapeDtypeStruct((N, OH, OW, COUT_P), jnp.bfloat16),
                jax.ShapeDtypeStruct((N, R, 8, COUT_P), jnp.float32),
                jax.ShapeDtypeStruct((N, R, 8, COUT_P), jnp.float32),
            ),
            scratch_shapes=[stitch],
            compiler_params=cparams,
            cost_estimate=pl.CostEstimate(
                flops=flops + int(3 * N * OH * OW * COUT_P), transcendentals=0,
                bytes_accessed=int(xs.size * 2 + w4.size * 2
                                   + N * OH * OW * COUT_P * 2)),
        )(xs, xs, w4)

        # tiny per-channel fold in f32 (training-mode batch statistics)
        m = float(N * OH * OW)
        csum = jnp.sum(psum[:, :, 0, :], axis=(0, 1))
        cssq = jnp.sum(pssq[:, :, 0, :], axis=(0, 1))
        mean = csum / m
        # TODO(synk): E[y^2]-E[y]^2 is cancellation-prone when |mean| >> std.
        var = jnp.maximum(cssq / m - mean * mean, 0.0)            # biased (PyTorch)
        gamma_p = jnp.pad(gamma, (0, COUT_P - Cout)) if COUT_P != Cout else gamma
        beta_p = jnp.pad(beta, (0, COUT_P - Cout)) if COUT_P != Cout else beta
        inv = gamma_p * jax.lax.rsqrt(var + BN_EPS)
        scale = inv.reshape(1, 1, COUT_P)
        shift = (beta_p - mean * inv).reshape(1, 1, COUT_P)
        # TODO(synk): BatchNorm2d running_mean/running_var are not tracked
        # (forward output in training mode is unaffected).

        # ---- pass 2: fused affine + LeakyReLU, bf16 y in, larger row tile ----
        tile_oh2 = _plan_affine_tile(OH, OW, COUT_P, vmem)
        out = pl.pallas_call(
            _bn_act_kernel,
            grid=(N, OH // tile_oh2),
            in_specs=[
                pl.BlockSpec((1, tile_oh2, OW, COUT_P), lambda n, r: (n, r, 0, 0)),
                pl.BlockSpec((1, 1, COUT_P), lambda n, r: (0, 0, 0)),
                pl.BlockSpec((1, 1, COUT_P), lambda n, r: (0, 0, 0)),
            ],
            out_specs=pl.BlockSpec((1, tile_oh2, OW, COUT_P),
                                   lambda n, r: (n, r, 0, 0)),
            out_shape=jax.ShapeDtypeStruct((N, OH, OW, COUT_P), jnp.float32),
            compiler_params=cparams,
            cost_estimate=pl.CostEstimate(
                flops=int(3 * N * OH * OW * COUT_P), transcendentals=0,
                bytes_accessed=int(N * OH * OW * COUT_P * 6)),
        )(y, scale, shift)

    if COUT_P != Cout:
        out = out[..., :Cout]
    return out


def init_encoder_params(key, chs):
    """Deterministic params: conv weights ~ N(0, 0.02), BN gamma=1, beta=0."""
    params = []
    for i in range(len(chs) - 1):
        key, sub = jax.random.split(key)
        w = 0.02 * jax.random.normal(sub, (chs[i + 1], chs[i], 4, 4), jnp.float32)
        gamma = jnp.ones((chs[i + 1],), jnp.float32)
        beta = jnp.zeros((chs[i + 1],), jnp.float32)
        params.append((w, gamma, beta))
    return params


def encoder_forward(x_nchw, params, batch_norm, features_nchw=True):
    """Encoder.forward: returns (last_feature, [all_features]) in NCHW."""
    x = jnp.transpose(x_nchw, (0, 2, 3, 1))              # NCHW -> NHWC once
    ftrs = []
    for (w, gamma, beta), use_bn in zip(params, batch_norm):
        x = downsample_block(x, w, gamma, beta, use_bn)
        # activations stay NHWC internally; transpose only because the PyTorch
        # module returns NCHW features (pass features_nchw=False to skip).
        ftrs.append(jnp.transpose(x, (0, 3, 1, 2)) if features_nchw else x)
    return ftrs[-1], ftrs


def _reference_forward(x_nchw, params, batch_norm):
    """Pure-JAX f32 reference of the PyTorch module (for a loose sanity check)."""
    x = x_nchw
    ftrs = []
    for (w, gamma, beta), use_bn in zip(params, batch_norm):
        y = jax.lax.conv_general_dilated(
            x, w, window_strides=(2, 2), padding=((1, 1), (1, 1)),
            dimension_numbers=("NCHW", "OIHW", "NCHW"))
        if use_bn:
            mean = jnp.mean(y, axis=(0, 2, 3), keepdims=True)
            var = jnp.mean((y - mean) ** 2, axis=(0, 2, 3), keepdims=True)
            y = (y - mean) * jax.lax.rsqrt(var + BN_EPS)
            y = y * gamma.reshape(1, -1, 1, 1) + beta.reshape(1, -1, 1, 1)
        x = jnp.where(y >= 0.0, y, LEAKY_SLOPE * y)
        ftrs.append(x)
    return ftrs[-1], ftrs


if __name__ == "__main__":
    # Small config: chs = [4, 8, 16, 32], first block without BN (pix2pix style).
    chs = [4, 8, 16, 32]
    batch_norm = [False, True, True]

    key = jax.random.PRNGKey(0)
    key, xkey = jax.random.split(key)
    x = jax.random.normal(xkey, (2, 4, 16, 16), jnp.float32)   # NCHW

    params = init_encoder_params(key, chs)

    fwd = jax.jit(lambda xx, pp: encoder_forward(xx, pp, batch_norm))
    last, ftrs = fwd(x, params)
    last = jax.block_until_ready(last)
    for f in ftrs:
        jax.block_until_ready(f)

    # sanity: expected shapes (2,8,8,8), (2,16,4,4), (2,32,2,2)
    assert last.shape == (2, 32, 2, 2)
    assert [f.shape for f in ftrs] == [(2, 8, 8, 8), (2, 16, 4, 4), (2, 32, 2, 2)]
    assert bool(jnp.all(jnp.isfinite(last)))

    # loose numerical check vs f32 reference (bf16 MXU operands -> small drift)
    ref_last, _ = _reference_forward(x, params, batch_norm)
    assert bool(jnp.allclose(last, ref_last, rtol=2e-1, atol=2e-1))

    print("KERNEL_OK")
</pallas_src>

<mosaic_0001>
module attributes {stable_mosaic.version = 11 : i64} {
  func.func @kernel(%arg0: i32, %arg1: i32, %arg2: memref<1x8x9x16xbf16, #tpu.memory_space<vmem>>, %arg3: memref<1x1x9x16xbf16, #tpu.memory_space<vmem>>, %arg4: memref<4x16x8xbf16, #tpu.memory_space<vmem>>, %arg5: memref<1x8x8x8xf32, #tpu.memory_space<vmem>>, %arg6: memref<9x9x16xbf16, #tpu.memory_space<vmem>>) attributes {dimension_semantics = [#tpu.dimension_semantics<parallel>, #tpu.dimension_semantics<parallel>], iteration_bounds = array<i64: 2, 1>, scalar_prefetch = 0 : i64, scratch_operands = 1 : i64, tpu.core_type = #tpu.core_type<tc>, window_params = [{transform_indices = @transform_0, window_bounds = array<i64: 1, 8, 9, 16>}, {transform_indices = @transform_1, window_bounds = array<i64: 1, 1, 9, 16>}, {pipeline_mode = #tpu.pipeline_mode<synchronous>, transform_indices = @transform_2, window_bounds = array<i64: 4, 16, 8>}, {transform_indices = @transform_3, window_bounds = array<i64: 1, 8, 8, 8>}]} {
    %c0 = arith.constant 0 : index
    %c0_0 = arith.constant 0 : index
    %c0_1 = arith.constant 0 : index
    %c0_2 = arith.constant 0 : index
    %0 = vector.load %arg2[%c0, %c0_0, %c0_1, %c0_2] : memref<1x8x9x16xbf16, #tpu.memory_space<vmem>>, vector<1x8x9x16xbf16>
    %1 = vector.shape_cast %0 : vector<1x8x9x16xbf16> to vector<8x9x16xbf16>
    %c0_3 = arith.constant 0 : index
    %c0_4 = arith.constant 0 : index
    %c0_5 = arith.constant 0 : index
    %2 = vector.load %arg6[%c0_3, %c0_4, %c0_5] : memref<9x9x16xbf16, #tpu.memory_space<vmem>>, vector<8x9x16xbf16>
    tpu.vector_store %arg6[%c0_3, %c0_4, %c0_5], %1 {strides = array<i32>} : memref<9x9x16xbf16, #tpu.memory_space<vmem>>, vector<8x9x16xbf16>,
    %c0_6 = arith.constant 0 : index
    %c0_7 = arith.constant 0 : index
    %c0_8 = arith.constant 0 : index
    %c0_9 = arith.constant 0 : index
    %3 = vector.load %arg3[%c0_6, %c0_7, %c0_8, %c0_9] : memref<1x1x9x16xbf16, #tpu.memory_space<vmem>>, vector<1x1x9x16xbf16>
    %4 = vector.shape_cast %3 : vector<1x1x9x16xbf16> to vector<1x9x16xbf16>
    %c8 = arith.constant 8 : index
    %c0_10 = arith.constant 0 : index
    %c0_11 = arith.constant 0 : index
    %5 = vector.load %arg6[%c8, %c0_10, %c0_11] : memref<9x9x16xbf16, #tpu.memory_space<vmem>>, vector<1x9x16xbf16>
    tpu.vector_store %arg6[%c8, %c0_10, %c0_11], %4 {strides = array<i32>} : memref<9x9x16xbf16, #tpu.memory_space<vmem>>, vector<1x9x16xbf16>,
    %c0_12 = arith.constant 0 : index
    %c0_13 = arith.constant 0 : index
    %c0_14 = arith.constant 0 : index
    %6 = vector.load %arg6[%c0_12, %c0_13, %c0_14] : memref<9x9x16xbf16, #tpu.memory_space<vmem>>, vector<8x8x16xbf16>
    %7 = vector.shape_cast %6 : vector<8x8x16xbf16> to vector<64x16xbf16>
    %c0_15 = arith.constant 0 : index
    %c0_16 = arith.constant 0 : index
    %c0_17 = arith.constant 0 : index
    %8 = vector.load %arg4[%c0_15, %c0_16, %c0_17] : memref<4x16x8xbf16, #tpu.memory_space<vmem>>, vector<1x16x8xbf16>
    %9 = vector.shape_cast %8 : vector<1x16x8xbf16> to vector<16x8xbf16>
    %cst = arith.constant dense<0.000000e+00> : vector<64x8xf32>
    %10 = tpu.matmul %7, %9, %cst {dimension_numbers = #tpu.dot_dimension_numbers<[1], [0], [0], [1], [0, 0, 1, 1], [], []>} : vector<64x16xbf16>, vector<16x8xbf16>, vector<64x8xf32> -> vector<64x8xf32>
    %c0_18 = arith.constant 0 : index
    %c1 = arith.constant 1 : index
    %c0_19 = arith.constant 0 : index
    %11 = vector.load %arg6[%c0_18, %c1, %c0_19] : memref<9x9x16xbf16, #tpu.memory_space<vmem>>, vector<8x8x16xbf16>
    %12 = vector.shape_cast %11 : vector<8x8x16xbf16> to vector<64x16xbf16>
    %c1_20 = arith.constant 1 : index
    %c0_21 = arith.constant 0 : index
    %c0_22 = arith.constant 0 : index
    %13 = vector.load %arg4[%c1_20, %c0_21, %c0_22] : memref<4x16x8xbf16, #tpu.memory_space<vmem>>, vector<1x16x8xbf16>
    %14 = vector.shape_cast %13 : vector<1x16x8xbf16> to vector<16x8xbf16>
    %cst_23 = arith.constant dense<0.000000e+00> : vector<64x8xf32>
    %15 = tpu.matmul %12, %14, %cst_23 {dimension_numbers = #tpu.dot_dimension_numbers<[1], [0], [0], [1], [0, 0, 1, 1], [], []>} : vector<64x16xbf16>, vector<16x8xbf16>, vector<64x8xf32> -> vector<64x8xf32>
    %16 = arith.addf %10, %15 : vector<64x8xf32>
    %c1_24 = arith.constant 1 : index
    %c0_25 = arith.constant 0 : index
    %c0_26 = arith.constant 0 : index
    %17 = vector.load %arg6[%c1_24, %c0_25, %c0_26] : memref<9x9x16xbf16, #tpu.memory_space<vmem>>, vector<8x8x16xbf16>
    %18 = vector.shape_cast %17 : vector<8x8x16xbf16> to vector<64x16xbf16>
    %c2 = arith.constant 2 : index
    %c0_27 = arith.constant 0 : index
    %c0_28 = arith.constant 0 : index
    %19 = vector.load %arg4[%c2, %c0_27, %c0_28] : memref<4x16x8xbf16, #tpu.memory_space<vmem>>, vector<1x16x8xbf16>
    %20 = vector.shape_cast %19 : vector<1x16x8xbf16> to vector<16x8xbf16>
    %cst_29 = arith.constant dense<0.000000e+00> : vector<64x8xf32>
    %21 = tpu.matmul %18, %20, %cst_29 {dimension_numbers = #tpu.dot_dimension_numbers<[1], [0], [0], [1], [0, 0, 1, 1], [], []>} : vector<64x16xbf16>, vector<16x8xbf16>, vector<64x8xf32> -> vector<64x8xf32>
    %22 = arith.addf %16, %21 : vector<64x8xf32>
    %c1_30 = arith.constant 1 : index
    %c1_31 = arith.constant 1 : index
    %c0_32 = arith.constant 0 : index
    %23 = vector.load %arg6[%c1_30, %c1_31, %c0_32] : memref<9x9x16xbf16, #tpu.memory_space<vmem>>, vector<8x8x16xbf16>
    %24 = vector.shape_cast %23 : vector<8x8x16xbf16> to vector<64x16xbf16>
    %c3 = arith.constant 3 : index
    %c0_33 = arith.constant 0 : index
    %c0_34 = arith.constant 0 : index
    %25 = vector.load %arg4[%c3, %c0_33, %c0_34] : memref<4x16x8xbf16, #tpu.memory_space<vmem>>, vector<1x16x8xbf16>
    %26 = vector.shape_cast %25 : vector<1x16x8xbf16> to vector<16x8xbf16>
    %cst_35 = arith.constant dense<0.000000e+00> : vector<64x8xf32>
    %27 = tpu.matmul %24, %26, %cst_35 {dimension_numbers = #tpu.dot_dimension_numbers<[1], [0], [0], [1], [0, 0, 1, 1], [], []>} : vector<64x16xbf16>, vector<16x8xbf16>, vector<64x8xf32> -> vector<64x8xf32>
    %28 = arith.addf %22, %27 : vector<64x8xf32>
    %cst_36 = arith.constant 0.000000e+00 : f32
    %29 = vector.broadcast %cst_36 : f32 to vector<64x8xf32>
    %30 = arith.cmpf oge, %28, %29 : vector<64x8xf32>
    %cst_37 = arith.constant 0.00999999977 : f32
    %31 = vector.broadcast %cst_37 : f32 to vector<64x8xf32>
    %32 = arith.mulf %31, %28 : vector<64x8xf32>
    %33 = arith.select %30, %28, %32 : vector<64x8xi1>, vector<64x8xf32>
    %34 = vector.shape_cast %33 : vector<64x8xf32> to vector<8x8x8xf32>
    %c0_38 = arith.constant 0 : index
    %c0_39 = arith.constant 0 : index
    %c0_40 = arith.constant 0 : index
    %c0_41 = arith.constant 0 : index
    %35 = vector.load %arg5[%c0_38, %c0_39, %c0_40, %c0_41] : memref<1x8x8x8xf32, #tpu.memory_space<vmem>>, vector<1x8x8x8xf32>
    %36 = vector.shape_cast %35 : vector<1x8x8x8xf32> to vector<8x8x8xf32>
    %37 = vector.shape_cast %34 : vector<8x8x8xf32> to vector<1x8x8x8xf32>
    tpu.vector_store %arg5[%c0_38, %c0_39, %c0_40, %c0_41], %37 {strides = array<i32>} : memref<1x8x8x8xf32, #tpu.memory_space<vmem>>, vector<1x8x8x8xf32>,
    return
  }
  func.func @transform_0(%arg0: i32, %arg1: i32) -> (i32, i32, i32, i32) {
    %c0_i32 = arith.constant 0 : i32
    %c0_i32_0 = arith.constant 0 : i32
    %c0_i32_1 = arith.constant 0 : i32
    return %arg0, %arg1, %c0_i32, %c0_i32_0 : i32, i32, i32, i32
  }
  func.func @transform_1(%arg0: i32, %arg1: i32) -> (i32, i32, i32, i32) {
    %c1_i32 = arith.constant 1 : i32
    %0 = arith.addi %arg1, %c1_i32 : i32
    %c8_i32 = arith.constant 8 : i32
    %1 = arith.muli %0, %c8_i32 : i32
    %c0_i32 = arith.constant 0 : i32
    %c0_i32_0 = arith.constant 0 : i32
    %c0_i32_1 = arith.constant 0 : i32
    return %arg0, %1, %c0_i32, %c0_i32_0 : i32, i32, i32, i32
  }
  func.func @transform_2(%arg0: i32, %arg1: i32) -> (i32, i32, i32) {
    %c0_i32 = arith.constant 0 : i32
    %c0_i32_0 = arith.constant 0 : i32
    %c0_i32_1 = arith.constant 0 : i32
    %c0_i32_2 = arith.constant 0 : i32
    return %c0_i32, %c0_i32_0, %c0_i32_1 : i32, i32, i32
  }
  func.func @transform_3(%arg0: i32, %arg1: i32) -> (i32, i32, i32, i32) {
    %c0_i32 = arith.constant 0 : i32
    %c0_i32_0 = arith.constant 0 : i32
    %c0_i32_1 = arith.constant 0 : i32
    return %arg0, %arg1, %c0_i32, %c0_i32_0 : i32, i32, i32, i32
  }
}

module attributes {stable_mosaic.version = 11 : i64} {
  func.func @_bn_act_kernel(%arg0: i32, %arg1: i32, %arg2: memref<1x4x4x16xbf16, #tpu.memory_space<vmem>>, %arg3: memref<1x1x16xf32, #tpu.memory_space<vmem>>, %arg4: memref<1x1x16xf32, #tpu.memory_space<vmem>>, %arg5: memref<1x4x4x16xf32, #tpu.memory_space<vmem>>) attributes {dimension_semantics = [#tpu.dimension_semantics<parallel>, #tpu.dimension_semantics<parallel>], iteration_bounds = array<i64: 2, 1>, scalar_prefetch = 0 : i64, scratch_operands = 0 : i64, tpu.core_type = #tpu.core_type<tc>, window_params = [{transform_indices = @transform_0, window_bounds = array<i64: 1, 4, 4, 16>}, {pipeline_mode = #tpu.pipeline_mode<synchronous>, transform_indices = @transform_1, window_bounds = array<i64: 1, 1, 16>}, {pipeline_mode = #tpu.pipeline_mode<synchronous>, transform_indices = @transform_2, window_bounds = array<i64: 1, 1, 16>}, {transform_indices = @transform_3, window_bounds = array<i64: 1, 4, 4, 16>}]} {
    %c0 = arith.constant 0 : index
    %c0_0 = arith.constant 0 : index
    %c0_1 = arith.constant 0 : index
    %c0_2 = arith.constant 0 : index
    %0 = vector.load %arg2[%c0, %c0_0, %c0_1, %c0_2] : memref<1x4x4x16xbf16, #tpu.memory_space<vmem>>, vector<1x4x4x16xbf16>
    %1 = vector.shape_cast %0 : vector<1x4x4x16xbf16> to vector<4x4x16xbf16>
    %2 = arith.extf %1 : vector<4x4x16xbf16> to vector<4x4x16xf32>
    %c0_3 = arith.constant 0 : index
    %c0_4 = arith.constant 0 : index
    %c0_5 = arith.constant 0 : index
    %3 = vector.load %arg3[%c0_3, %c0_4, %c0_5] : memref<1x1x16xf32, #tpu.memory_space<vmem>>, vector<1x1x16xf32>
    %4 = vector.shape_cast %3 : vector<1x1x16xf32> to vector<1x16xf32>
    %5 = vector.shape_cast %4 : vector<1x16xf32> to vector<1x1x16xf32>
    %6 = vector.broadcast %5 : vector<1x1x16xf32> to vector<4x4x16xf32>
    %7 = arith.mulf %2, %6 : vector<4x4x16xf32>
    %c0_6 = arith.constant 0 : index
    %c0_7 = arith.constant 0 : index
    %c0_8 = arith.constant 0 : index
    %8 = vector.load %arg4[%c0_6, %c0_7, %c0_8] : memref<1x1x16xf32, #tpu.memory_space<vmem>>, vector<1x1x16xf32>
    %9 = vector.shape_cast %8 : vector<1x1x16xf32> to vector<1x16xf32>
    %10 = vector.shape_cast %9 : vector<1x16xf32> to vector<1x1x16xf32>
    %11 = vector.broadcast %10 : vector<1x1x16xf32> to vector<4x4x16xf32>
    %12 = arith.addf %7, %11 : vector<4x4x16xf32>
    %cst = arith.constant 0.000000e+00 : f32
    %13 = vector.broadcast %cst : f32 to vector<4x4x16xf32>
    %14 = arith.cmpf oge, %12, %13 : vector<4x4x16xf32>
    %cst_9 = arith.constant 0.00999999977 : f32
    %15 = vector.broadcast %cst_9 : f32 to vector<4x4x16xf32>
    %16 = arith.mulf %15, %12 : vector<4x4x16xf32>
    %17 = arith.select %14, %12, %16 : vector<4x4x16xi1>, vector<4x4x16xf32>
    %c0_10 = arith.constant 0 : index
    %c0_11 = arith.constant 0 : index
    %c0_12 = arith.constant 0 : index
    %c0_13 = arith.constant 0 : index
    %18 = vector.load %arg5[%c0_10, %c0_11, %c0_12, %c0_13] : memref<1x4x4x16xf32, #tpu.memory_space<vmem>>, vector<1x4x4x16xf32>
    %19 = vector.shape_cast %18 : vector<1x4x4x16xf32> to vector<4x4x16xf32>
    %20 = vector.shape_cast %17 : vector<4x4x16xf32> to vector<1x4x4x16xf32>
    tpu.vector_store %arg5[%c0_10, %c0_11, %c0_12, %c0_13], %20 {strides = array<i32>} : memref<1x4x4x16xf32, #tpu.memory_space<vmem>>, vector<1x4x4x16xf32>,
    return
  }
  func.func @transform_0(%arg0: i32, %arg1: i32) -> (i32, i32, i32, i32) {
    %c0_i32 = arith.constant 0 : i32
    %c0_i32_0 = arith.constant 0 : i32
    %c0_i32_1 = arith.constant 0 : i32
    return %arg0, %arg1, %c0_i32, %c0_i32_0 : i32, i32, i32, i32
  }
  func.func @transform_1(%arg0: i32, %arg1: i32) -> (i32, i32, i32) {
    %c0_i32 = arith.constant 0 : i32
    %c0_i32_0 = arith.constant 0 : i32
    %c0_i32_1 = arith.constant 0 : i32
    %c0_i32_2 = arith.constant 0 : i32
    return %c0_i32, %c0_i32_0, %c0_i32_1 : i32, i32, i32
  }
  func.func @transform_2(%arg0: i32, %arg1: i32) -> (i32, i32, i32) {
    %c0_i32 = arith.constant 0 : i32
    %c0_i32_0 = arith.constant 0 : i32
    %c0_i32_1 = arith.constant 0 : i32
    %c0_i32_2 = arith.constant 0 : i32
    return %c0_i32, %c0_i32_0, %c0_i32_1 : i32, i32, i32
  }
  func.func @transform_3(%arg0: i32, %arg1: i32) -> (i32, i32, i32, i32) {
    %c0_i32 = arith.constant 0 : i32
    %c0_i32_0 = arith.constant 0 : i32
    %c0_i32_1 = arith.constant 0 : i32
    return %arg0, %arg1, %c0_i32, %c0_i32_0 : i32, i32, i32, i32
  }
}

module attributes {stable_mosaic.version = 11 : i64} {
  func.func @kernel(%arg0: i32, %arg1: i32, %arg2: memref<1x4x5x32xbf16, #tpu.memory_space<vmem>>, %arg3: memref<1x1x5x32xbf16, #tpu.memory_space<vmem>>, %arg4: memref<4x32x16xbf16, #tpu.memory_space<vmem>>, %arg5: memref<1x4x4x16xbf16, #tpu.memory_space<vmem>>, %arg6: memref<1x1x8x16xf32, #tpu.memory_space<vmem>>, %arg7: memref<1x1x8x16xf32, #tpu.memory_space<vmem>>, %arg8: memref<5x5x32xbf16, #tpu.memory_space<vmem>>) attributes {dimension_semantics = [#tpu.dimension_semantics<parallel>, #tpu.dimension_semantics<parallel>], iteration_bounds = array<i64: 2, 1>, scalar_prefetch = 0 : i64, scratch_operands = 1 : i64, tpu.core_type = #tpu.core_type<tc>, window_params = [{transform_indices = @transform_0, window_bounds = array<i64: 1, 4, 5, 32>}, {transform_indices = @transform_1, window_bounds = array<i64: 1, 1, 5, 32>}, {pipeline_mode = #tpu.pipeline_mode<synchronous>, transform_indices = @transform_2, window_bounds = array<i64: 4, 32, 16>}, {transform_indices = @transform_3, window_bounds = array<i64: 1, 4, 4, 16>}, {transform_indices = @transform_4, window_bounds = array<i64: 1, 1, 8, 16>}, {transform_indices = @transform_5, window_bounds = array<i64: 1, 1, 8, 16>}]} {
    %c0 = arith.constant 0 : index
    %c0_0 = arith.constant 0 : index
    %c0_1 = arith.constant 0 : index
    %c0_2 = arith.constant 0 : index
    %0 = vector.load %arg2[%c0, %c0_0, %c0_1, %c0_2] : memref<1x4x5x32xbf16, #tpu.memory_space<vmem>>, vector<1x4x5x32xbf16>
    %1 = vector.shape_cast %0 : vector<1x4x5x32xbf16> to vector<4x5x32xbf16>
    %c0_3 = arith.constant 0 : index
    %c0_4 = arith.constant 0 : index
    %c0_5 = arith.constant 0 : index
    %2 = vector.load %arg8[%c0_3, %c0_4, %c0_5] : memref<5x5x32xbf16, #tpu.memory_space<vmem>>, vector<4x5x32xbf16>
    tpu.vector_store %arg8[%c0_3, %c0_4, %c0_5], %1 {strides = array<i32>} : memref<5x5x32xbf16, #tpu.memory_space<vmem>>, vector<4x5x32xbf16>,
    %c0_6 = arith.constant 0 : index
    %c0_7 = arith.constant 0 : index
    %c0_8 = arith.constant 0 : index
    %c0_9 = arith.constant 0 : index
    %3 = vector.load %arg3[%c0_6, %c0_7, %c0_8, %c0_9] : memref<1x1x5x32xbf16, #tpu.memory_space<vmem>>, vector<1x1x5x32xbf16>
    %4 = vector.shape_cast %3 : vector<1x1x5x32xbf16> to vector<1x5x32xbf16>
    %c4 = arith.constant 4 : index
    %c0_10 = arith.constant 0 : index
    %c0_11 = arith.constant 0 : index
    %5 = vector.load %arg8[%c4, %c0_10, %c0_11] : memref<5x5x32xbf16, #tpu.memory_space<vmem>>, vector<1x5x32xbf16>
    tpu.vector_store %arg8[%c4, %c0_10, %c0_11], %4 {strides = array<i32>} : memref<5x5x32xbf16, #tpu.memory_space<vmem>>, vector<1x5x32xbf16>,
    %c0_12 = arith.constant 0 : index
    %c0_13 = arith.constant 0 : index
    %c0_14 = arith.constant 0 : index
    %6 = vector.load %arg8[%c0_12, %c0_13, %c0_14] : memref<5x5x32xbf16, #tpu.memory_space<vmem>>, vector<4x4x32xbf16>
    %7 = vector.shape_cast %6 : vector<4x4x32xbf16> to vector<16x32xbf16>
    %c0_15 = arith.constant 0 : index
    %c0_16 = arith.constant 0 : index
    %c0_17 = arith.constant 0 : index
    %8 = vector.load %arg4[%c0_15, %c0_16, %c0_17] : memref<4x32x16xbf16, #tpu.memory_space<vmem>>, vector<1x32x16xbf16>
    %9 = vector.shape_cast %8 : vector<1x32x16xbf16> to vector<32x16xbf16>
    %cst = arith.constant dense<0.000000e+00> : vector<16x16xf32>
    %10 = tpu.matmul %7, %9, %cst {dimension_numbers = #tpu.dot_dimension_numbers<[1], [0], [0], [1], [0, 0, 1, 1], [], []>} : vector<16x32xbf16>, vector<32x16xbf16>, vector<16x16xf32> -> vector<16x16xf32>
    %c0_18 = arith.constant 0 : index
    %c1 = arith.constant 1 : index
    %c0_19 = arith.constant 0 : index
    %11 = vector.load %arg8[%c0_18, %c1, %c0_19] : memref<5x5x32xbf16, #tpu.memory_space<vmem>>, vector<4x4x32xbf16>
    %12 = vector.shape_cast %11 : vector<4x4x32xbf16> to vector<16x32xbf16>
    %c1_20 = arith.constant 1 : index
    %c0_21 = arith.constant 0 : index
    %c0_22 = arith.constant 0 : index
    %13 = vector.load %arg4[%c1_20, %c0_21, %c0_22] : memref<4x32x16xbf16, #tpu.memory_space<vmem>>, vector<1x32x16xbf16>
    %14 = vector.shape_cast %13 : vector<1x32x16xbf16> to vector<32x16xbf16>
    %cst_23 = arith.constant dense<0.000000e+00> : vector<16x16xf32>
    %15 = tpu.matmul %12, %14, %cst_23 {dimension_numbers = #tpu.dot_dimension_numbers<[1], [0], [0], [1], [0, 0, 1, 1], [], []>} : vector<16x32xbf16>, vector<32x16xbf16>, vector<16x16xf32> -> vector<16x16xf32>
    %16 = arith.addf %10, %15 : vector<16x16xf32>
    %c1_24 = arith.constant 1 : index
    %c0_25 = arith.constant 0 : index
    %c0_26 = arith.constant 0 : index
    %17 = vector.load %arg8[%c1_24, %c0_25, %c0_26] : memref<5x5x32xbf16, #tpu.memory_space<vmem>>, vector<4x4x32xbf16>
    %18 = vector.shape_cast %17 : vector<4x4x32xbf16> to vector<16x32xbf16>
    %c2 = arith.constant 2 : index
    %c0_27 = arith.constant 0 : index
    %c0_28 = arith.constant 0 : index
    %19 = vector.load %arg4[%c2, %c0_27, %c0_28] : memref<4x32x16xbf16, #tpu.memory_space<vmem>>, vector<1x32x16xbf16>
    %20 = vector.shape_cast %19 : vector<1x32x16xbf16> to vector<32x16xbf16>
    %cst_29 = arith.constant dense<0.000000e+00> : vector<16x16xf32>
    %21 = tpu.matmul %18, %20, %cst_29 {dimension_numbers = #tpu.dot_dimension_numbers<[1], [0], [0], [1], [0, 0, 1, 1], [], []>} : vector<16x32xbf16>, vector<32x16xbf16>, vector<16x16xf32> -> vector<16x16xf32>
    %22 = arith.addf %16, %21 : vector<16x16xf32>
    %c1_30 = arith.constant 1 : index
    %c1_31 = arith.constant 1 : index
    %c0_32 = arith.constant 0 : index
    %23 = vector.load %arg8[%c1_30, %c1_31, %c0_32] : memref<5x5x32xbf16, #tpu.memory_space<vmem>>, vector<4x4x32xbf16>
    %24 = vector.shape_cast %23 : vector<4x4x32xbf16> to vector<16x32xbf16>
    %c3 = arith.constant 3 : index
    %c0_33 = arith.constant 0 : index
    %c0_34 = arith.constant 0 : index
    %25 = vector.load %arg4[%c3, %c0_33, %c0_34] : memref<4x32x16xbf16, #tpu.memory_space<vmem>>, vector<1x32x16xbf16>
    %26 = vector.shape_cast %25 : vector<1x32x16xbf16> to vector<32x16xbf16>
    %cst_35 = arith.constant dense<0.000000e+00> : vector<16x16xf32>
    %27 = tpu.matmul %24, %26, %cst_35 {dimension_numbers = #tpu.dot_dimension_numbers<[1], [0], [0], [1], [0, 0, 1, 1], [], []>} : vector<16x32xbf16>, vector<32x16xbf16>, vector<16x16xf32> -> vector<16x16xf32>
    %28 = arith.addf %22, %27 : vector<16x16xf32>
    %29 = vector.shape_cast %28 : vector<16x16xf32> to vector<4x4x16xf32>
    %30 = arith.truncf %29 : vector<4x4x16xf32> to vector<4x4x16xbf16>
    %c0_36 = arith.constant 0 : index
    %c0_37 = arith.constant 0 : index
    %c0_38 = arith.constant 0 : index
    %c0_39 = arith.constant 0 : index
    %31 = vector.load %arg5[%c0_36, %c0_37, %c0_38, %c0_39] : memref<1x4x4x16xbf16, #tpu.memory_space<vmem>>, vector<1x4x4x16xbf16>
    %32 = vector.shape_cast %31 : vector<1x4x4x16xbf16> to vector<4x4x16xbf16>
    %33 = vector.shape_cast %30 : vector<4x4x16xbf16> to vector<1x4x4x16xbf16>
    tpu.vector_store %arg5[%c0_36, %c0_37, %c0_38, %c0_39], %33 {strides = array<i32>} : memref<1x4x4x16xbf16, #tpu.memory_space<vmem>>, vector<1x4x4x16xbf16>,
    %cst_40 = arith.constant dense<0.000000e+00> : vector<16xf32>
    %34 = vector.multi_reduction <add>, %28, %cst_40 [0] : vector<16x16xf32> to vector<16xf32>
    %35 = vector.shape_cast %34 : vector<16xf32> to vector<1x16xf32>
    %36 = arith.mulf %28, %28 : vector<16x16xf32>
    %cst_41 = arith.constant dense<0.000000e+00> : vector<16xf32>
    %37 = vector.multi_reduction <add>, %36, %cst_41 [0] : vector<16x16xf32> to vector<16xf32>
    %38 = vector.shape_cast %37 : vector<16xf32> to vector<1x16xf32>
    %39 = vector.shape_cast %35 : vector<1x16xf32> to vector<1x16xf32>
    %40 = vector.broadcast %39 : vector<1x16xf32> to vector<8x16xf32>
    %c0_42 = arith.constant 0 : index
    %c0_43 = arith.constant 0 : index
    %c0_44 = arith.constant 0 : index
    %c0_45 = arith.constant 0 : index
    %41 = vector.load %arg6[%c0_42, %c0_43, %c0_44, %c0_45] : memref<1x1x8x16xf32, #tpu.memory_space<vmem>>, vector<1x1x8x16xf32>
    %42 = vector.shape_cast %41 : vector<1x1x8x16xf32> to vector<8x16xf32>
    %43 = vector.shape_cast %40 : vector<8x16xf32> to vector<1x1x8x16xf32>
    tpu.vector_store %arg6[%c0_42, %c0_43, %c0_44, %c0_45], %43 {strides = array<i32>} : memref<1x1x8x16xf32, #tpu.memory_space<vmem>>, vector<1x1x8x16xf32>,
    %44 = vector.shape_cast %38 : vector<1x16xf32> to vector<1x16xf32>
    %45 = vector.broadcast %44 : vector<1x16xf32> to vector<8x16xf32>
    %c0_46 = arith.constant 0 : index
    %c0_47 = arith.constant 0 : index
    %c0_48 = arith.constant 0 : index
    %c0_49 = arith.constant 0 : index
    %46 = vector.load %arg7[%c0_46, %c0_47, %c0_48, %c0_49] : memref<1x1x8x16xf32, #tpu.memory_space<vmem>>, vector<1x1x8x16xf32>
    %47 = vector.shape_cast %46 : vector<1x1x8x16xf32> to vector<8x16xf32>
    %48 = vector.shape_cast %45 : vector<8x16xf32> to vector<1x1x8x16xf32>
    tpu.vector_store %arg7[%c0_46, %c0_47, %c0_48, %c0_49], %48 {strides = array<i32>} : memref<1x1x8x16xf32, #tpu.memory_space<vmem>>, vector<1x1x8x16xf32>,
    return
  }
  func.func @transform_0(%arg0: i32, %arg1: i32) -> (i32, i32, i32, i32) {
    %c0_i32 = arith.constant 0 : i32
    %c0_i32_0 = arith.constant 0 : i32
    %c0_i32_1 = arith.constant 0 : i32
    return %arg0, %arg1, %c0_i32, %c0_i32_0 : i32, i32, i32, i32
  }
  func.func @transform_1(%arg0: i32, %arg1: i32) -> (i32, i32, i32, i32) {
    %c1_i32 = arith.constant 1 : i32
    %0 = arith.addi %arg1, %c1_i32 : i32
    %c4_i32 = arith.constant 4 : i32
    %1 = arith.muli %0, %c4_i32 : i32
    %c0_i32 = arith.constant 0 : i32
    %c0_i32_0 = arith.constant 0 : i32
    %c0_i32_1 = arith.constant 0 : i32
    return %arg0, %1, %c0_i32, %c0_i32_0 : i32, i32, i32, i32
  }
  func.func @transform_2(%arg0: i32, %arg1: i32) -> (i32, i32, i32) {
    %c0_i32 = arith.constant 0 : i32
    %c0_i32_0 = arith.constant 0 : i32
    %c0_i32_1 = arith.constant 0 : i32
    %c0_i32_2 = arith.constant 0 : i32
    return %c0_i32, %c0_i32_0, %c0_i32_1 : i32, i32, i32
  }
  func.func @transform_3(%arg0: i32, %arg1: i32) -> (i32, i32, i32, i32) {
    %c0_i32 = arith.constant 0 : i32
    %c0_i32_0 = arith.constant 0 : i32
    %c0_i32_1 = arith.constant 0 : i32
    return %arg0, %arg1, %c0_i32, %c0_i32_0 : i32, i32, i32, i32
  }
  func.func @transform_4(%arg0: i32, %arg1: i32) -> (i32, i32, i32, i32) {
    %c0_i32 = arith.constant 0 : i32
    %c0_i32_0 = arith.constant 0 : i32
    %c0_i32_1 = arith.constant 0 : i32
    return %arg0, %arg1, %c0_i32, %c0_i32_0 : i32, i32, i32, i32
  }
  func.func @transform_5(%arg0: i32, %arg1: i32) -> (i32, i32, i32, i32) {
    %c0_i32 = arith.constant 0 : i32
    %c0_i32_0 = arith.constant 0 : i32
    %c0_i32_1 = arith.constant 0 : i32
    return %arg0, %arg1, %c0_i32, %c0_i32_0 : i32, i32, i32, i32
  }
}

module attributes {stable_mosaic.version = 11 : i64} {
  func.func @kernel(%arg0: i32, %arg1: i32, %arg2: memref<1x2x3x64xbf16, #tpu.memory_space<vmem>>, %arg3: memref<1x1x3x64xbf16, #tpu.memory_space<vmem>>, %arg4: memref<4x64x32xbf16, #tpu.memory_space<vmem>>, %arg5: memref<1x2x2x32xbf16, #tpu.memory_space<vmem>>, %arg6: memref<1x1x8x32xf32, #tpu.memory_space<vmem>>, %arg7: memref<1x1x8x32xf32, #tpu.memory_space<vmem>>, %arg8: memref<3x3x64xbf16, #tpu.memory_space<vmem>>) attributes {dimension_semantics = [#tpu.dimension_semantics<parallel>, #tpu.dimension_semantics<parallel>], iteration_bounds = array<i64: 2, 1>, scalar_prefetch = 0 : i64, scratch_operands = 1 : i64, tpu.core_type = #tpu.core_type<tc>, window_params = [{transform_indices = @transform_0, window_bounds = array<i64: 1, 2, 3, 64>}, {transform_indices = @transform_1, window_bounds = array<i64: 1, 1, 3, 64>}, {pipeline_mode = #tpu.pipeline_mode<synchronous>, transform_indices = @transform_2, window_bounds = array<i64: 4, 64, 32>}, {transform_indices = @transform_3, window_bounds = array<i64: 1, 2, 2, 32>}, {transform_indices = @transform_4, window_bounds = array<i64: 1, 1, 8, 32>}, {transform_indices = @transform_5, window_bounds = array<i64: 1, 1, 8, 32>}]} {
    %c0 = arith.constant 0 : index
    %c0_0 = arith.constant 0 : index
    %c0_1 = arith.constant 0 : index
    %c0_2 = arith.constant 0 : index
    %0 = vector.load %arg2[%c0, %c0_0, %c0_1, %c0_2] : memref<1x2x3x64xbf16, #tpu.memory_space<vmem>>, vector<1x2x3x64xbf16>
    %1 = vector.shape_cast %0 : vector<1x2x3x64xbf16> to vector<2x3x64xbf16>
    %c0_3 = arith.constant 0 : index
    %c0_4 = arith.constant 0 : index
    %c0_5 = arith.constant 0 : index
    %2 = vector.load %arg8[%c0_3, %c0_4, %c0_5] : memref<3x3x64xbf16, #tpu.memory_space<vmem>>, vector<2x3x64xbf16>
    tpu.vector_store %arg8[%c0_3, %c0_4, %c0_5], %1 {strides = array<i32>} : memref<3x3x64xbf16, #tpu.memory_space<vmem>>, vector<2x3x64xbf16>,
    %c0_6 = arith.constant 0 : index
    %c0_7 = arith.constant 0 : index
    %c0_8 = arith.constant 0 : index
    %c0_9 = arith.constant 0 : index
    %3 = vector.load %arg3[%c0_6, %c0_7, %c0_8, %c0_9] : memref<1x1x3x64xbf16, #tpu.memory_space<vmem>>, vector<1x1x3x64xbf16>
    %4 = vector.shape_cast %3 : vector<1x1x3x64xbf16> to vector<1x3x64xbf16>
    %c2 = arith.constant 2 : index
    %c0_10 = arith.constant 0 : index
    %c0_11 = arith.constant 0 : index
    %5 = vector.load %arg8[%c2, %c0_10, %c0_11] : memref<3x3x64xbf16, #tpu.memory_space<vmem>>, vector<1x3x64xbf16>
    tpu.vector_store %arg8[%c2, %c0_10, %c0_11], %4 {strides = array<i32>} : memref<3x3x64xbf16, #tpu.memory_space<vmem>>, vector<1x3x64xbf16>,
    %c0_12 = arith.constant 0 : index
    %c0_13 = arith.constant 0 : index
    %c0_14 = arith.constant 0 : index
    %6 = vector.load %arg8[%c0_12, %c0_13, %c0_14] : memref<3x3x64xbf16, #tpu.memory_space<vmem>>, vector<2x2x64xbf16>
    %7 = vector.shape_cast %6 : vector<2x2x64xbf16> to vector<4x64xbf16>
    %c0_15 = arith.constant 0 : index
    %c0_16 = arith.constant 0 : index
    %c0_17 = arith.constant 0 : index
    %8 = vector.load %arg4[%c0_15, %c0_16, %c0_17] : memref<4x64x32xbf16, #tpu.memory_space<vmem>>, vector<1x64x32xbf16>
    %9 = vector.shape_cast %8 : vector<1x64x32xbf16> to vector<64x32xbf16>
    %cst = arith.constant dense<0.000000e+00> : vector<4x32xf32>
    %10 = tpu.matmul %7, %9, %cst {dimension_numbers = #tpu.dot_dimension_numbers<[1], [0], [0], [1], [0, 0, 1, 1], [], []>} : vector<4x64xbf16>, vector<64x32xbf16>, vector<4x32xf32> -> vector<4x32xf32>
    %c0_18 = arith.constant 0 : index
    %c1 = arith.constant 1 : index
    %c0_19 = arith.constant 0 : index
    %11 = vector.load %arg8[%c0_18, %c1, %c0_19] : memref<3x3x64xbf16, #tpu.memory_space<vmem>>, vector<2x2x64xbf16>
    %12 = vector.shape_cast %11 : vector<2x2x64xbf16> to vector<4x64xbf16>
    %c1_20 = arith.constant 1 : index
    %c0_21 = arith.constant 0 : index
    %c0_22 = arith.constant 0 : index
    %13 = vector.load %arg4[%c1_20, %c0_21, %c0_22] : memref<4x64x32xbf16, #tpu.memory_space<vmem>>, vector<1x64x32xbf16>
    %14 = vector.shape_cast %13 : vector<1x64x32xbf16> to vector<64x32xbf16>
    %cst_23 = arith.constant dense<0.000000e+00> : vector<4x32xf32>
    %15 = tpu.matmul %12, %14, %cst_23 {dimension_numbers = #tpu.dot_dimension_numbers<[1], [0], [0], [1], [0, 0, 1, 1], [], []>} : vector<4x64xbf16>, vector<64x32xbf16>, vector<4x32xf32> -> vector<4x32xf32>
    %16 = arith.addf %10, %15 : vector<4x32xf32>
    %c1_24 = arith.constant 1 : index
    %c0_25 = arith.constant 0 : index
    %c0_26 = arith.constant 0 : index
    %17 = vector.load %arg8[%c1_24, %c0_25, %c0_26] : memref<3x3x64xbf16, #tpu.memory_space<vmem>>, vector<2x2x64xbf16>
    %18 = vector.shape_cast %17 : vector<2x2x64xbf16> to vector<4x64xbf16>
    %c2_27 = arith.constant 2 : index
    %c0_28 = arith.constant 0 : index
    %c0_29 = arith.constant 0 : index
    %19 = vector.load %arg4[%c2_27, %c0_28, %c0_29] : memref<4x64x32xbf16, #tpu.memory_space<vmem>>, vector<1x64x32xbf16>
    %20 = vector.shape_cast %19 : vector<1x64x32xbf16> to vector<64x32xbf16>
    %cst_30 = arith.constant dense<0.000000e+00> : vector<4x32xf32>
    %21 = tpu.matmul %18, %20, %cst_30 {dimension_numbers = #tpu.dot_dimension_numbers<[1], [0], [0], [1], [0, 0, 1, 1], [], []>} : vector<4x64xbf16>, vector<64x32xbf16>, vector<4x32xf32> -> vector<4x32xf32>
    %22 = arith.addf %16, %21 : vector<4x32xf32>
    %c1_31 = arith.constant 1 : index
    %c1_32 = arith.constant 1 : index
    %c0_33 = arith.constant 0 : index
    %23 = vector.load %arg8[%c1_31, %c1_32, %c0_33] : memref<3x3x64xbf16, #tpu.memory_space<vmem>>, vector<2x2x64xbf16>
    %24 = vector.shape_cast %23 : vector<2x2x64xbf16> to vector<4x64xbf16>
    %c3 = arith.constant 3 : index
    %c0_34 = arith.constant 0 : index
    %c0_35 = arith.constant 0 : index
    %25 = vector.load %arg4[%c3, %c0_34, %c0_35] : memref<4x64x32xbf16, #tpu.memory_space<vmem>>, vector<1x64x32xbf16>
    %26 = vector.shape_cast %25 : vector<1x64x32xbf16> to vector<64x32xbf16>
    %cst_36 = arith.constant dense<0.000000e+00> : vector<4x32xf32>
    %27 = tpu.matmul %24, %26, %cst_36 {dimension_numbers = #tpu.dot_dimension_numbers<[1], [0], [0], [1], [0, 0, 1, 1], [], []>} : vector<4x64xbf16>, vector<64x32xbf16>, vector<4x32xf32> -> vector<4x32xf32>
    %28 = arith.addf %22, %27 : vector<4x32xf32>
    %29 = vector.shape_cast %28 : vector<4x32xf32> to vector<2x2x32xf32>
    %30 = arith.truncf %29 : vector<2x2x32xf32> to vector<2x2x32xbf16>
    %c0_37 = arith.constant 0 : index
    %c0_38 = arith.constant 0 : index
    %c0_39 = arith.constant 0 : index
    %c0_40 = arith.constant 0 : index
    %31 = vector.load %arg5[%c0_37, %c0_38, %c0_39, %c0_40] : memref<1x2x2x32xbf16, #tpu.memory_space<vmem>>, vector<1x2x2x32xbf16>
    %32 = vector.shape_cast %31 : vector<1x2x2x32xbf16> to vector<2x2x32xbf16>
    %33 = vector.shape_cast %30 : vector<2x2x32xbf16> to vector<1x2x2x32xbf16>
    tpu.vector_store %arg5[%c0_37, %c0_38, %c0_39, %c0_40], %33 {strides = array<i32>} : memref<1x2x2x32xbf16, #tpu.memory_space<vmem>>, vector<1x2x2x32xbf16>,
    %cst_41 = arith.constant dense<0.000000e+00> : vector<32xf32>
    %34 = vector.multi_reduction <add>, %28, %cst_41 [0] : vector<4x32xf32> to vector<32xf32>
    %35 = vector.shape_cast %34 : vector<32xf32> to vector<1x32xf32>
    %36 = arith.mulf %28, %28 : vector<4x32xf32>
    %cst_42 = arith.constant dense<0.000000e+00> : vector<32xf32>
    %37 = vector.multi_reduction <add>, %36, %cst_42 [0] : vector<4x32xf32> to vector<32xf32>
    %38 = vector.shape_cast %37 : vector<32xf32> to vector<1x32xf32>
    %39 = vector.shape_cast %35 : vector<1x32xf32> to vector<1x32xf32>
    %40 = vector.broadcast %39 : vector<1x32xf32> to vector<8x32xf32>
    %c0_43 = arith.constant 0 : index
    %c0_44 = arith.constant 0 : index
    %c0_45 = arith.constant 0 : index
    %c0_46 = arith.constant 0 : index
    %41 = vector.load %arg6[%c0_43, %c0_44, %c0_45, %c0_46] : memref<1x1x8x32xf32, #tpu.memory_space<vmem>>, vector<1x1x8x32xf32>
    %42 = vector.shape_cast %41 : vector<1x1x8x32xf32> to vector<8x32xf32>
    %43 = vector.shape_cast %40 : vector<8x32xf32> to vector<1x1x8x32xf32>
    tpu.vector_store %arg6[%c0_43, %c0_44, %c0_45, %c0_46], %43 {strides = array<i32>} : memref<1x1x8x32xf32, #tpu.memory_space<vmem>>, vector<1x1x8x32xf32>,
    %44 = vector.shape_cast %38 : vector<1x32xf32> to vector<1x32xf32>
    %45 = vector.broadcast %44 : vector<1x32xf32> to vector<8x32xf32>
    %c0_47 = arith.constant 0 : index
    %c0_48 = arith.constant 0 : index
    %c0_49 = arith.constant 0 : index
    %c0_50 = arith.constant 0 : index
    %46 = vector.load %arg7[%c0_47, %c0_48, %c0_49, %c0_50] : memref<1x1x8x32xf32, #tpu.memory_space<vmem>>, vector<1x1x8x32xf32>
    %47 = vector.shape_cast %46 : vector<1x1x8x32xf32> to vector<8x32xf32>
    %48 = vector.shape_cast %45 : vector<8x32xf32> to vector<1x1x8x32xf32>
    tpu.vector_store %arg7[%c0_47, %c0_48, %c0_49, %c0_50], %48 {strides = array<i32>} : memref<1x1x8x32xf32, #tpu.memory_space<vmem>>, vector<1x1x8x32xf32>,
    return
  }
  func.func @transform_0(%arg0: i32, %arg1: i32) -> (i32, i32, i32, i32) {
    %c0_i32 = arith.constant 0 : i32
    %c0_i32_0 = arith.constant 0 : i32
    %c0_i32_1 = arith.constant 0 : i32
    return %arg0, %arg1, %c0_i32, %c0_i32_0 : i32, i32, i32, i32
  }
  func.func @transform_1(%arg0: i32, %arg1: i32) -> (i32, i32, i32, i32) {
    %c1_i32 = arith.constant 1 : i32
    %0 = arith.addi %arg1, %c1_i32 : i32
    %c2_i32 = arith.constant 2 : i32
    %1 = arith.muli %0, %c2_i32 : i32
    %c0_i32 = arith.constant 0 : i32
    %c0_i32_0 = arith.constant 0 : i32
    %c0_i32_1 = arith.constant 0 : i32
    return %arg0, %1, %c0_i32, %c0_i32_0 : i32, i32, i32, i32
  }
  func.func @transform_2(%arg0: i32, %arg1: i32) -> (i32, i32, i32) {
    %c0_i32 = arith.constant 0 : i32
    %c0_i32_0 = arith.constant 0 : i32
    %c0_i32_1 = arith.constant 0 : i32
    %c0_i32_2 = arith.constant 0 : i32
    return %c0_i32, %c0_i32_0, %c0_i32_1 : i32, i32, i32
  }
  func.func @transform_3(%arg0: i32, %arg1: i32) -> (i32, i32, i32, i32) {
    %c0_i32 = arith.constant 0 : i32
    %c0_i32_0 = arith.constant 0 : i32
    %c0_i32_1 = arith.constant 0 : i32
    return %arg0, %arg1, %c0_i32, %c0_i32_0 : i32, i32, i32, i32
  }
  func.func @transform_4(%arg0: i32, %arg1: i32) -> (i32, i32, i32, i32) {
    %c0_i32 = arith.constant 0 : i32
    %c0_i32_0 = arith.constant 0 : i32
    %c0_i32_1 = arith.constant 0 : i32
    return %arg0, %arg1, %c0_i32, %c0_i32_0 : i32, i32, i32, i32
  }
  func.func @transform_5(%arg0: i32, %arg1: i32) -> (i32, i32, i32, i32) {
    %c0_i32 = arith.constant 0 : i32
    %c0_i32_0 = arith.constant 0 : i32
    %c0_i32_1 = arith.constant 0 : i32
    return %arg0, %arg1, %c0_i32, %c0_i32_0 : i32, i32, i32, i32
  }
}

module attributes {stable_mosaic.version = 11 : i64} {
  func.func @_bn_act_kernel(%arg0: i32, %arg1: i32, %arg2: memref<1x2x2x32xbf16, #tpu.memory_space<vmem>>, %arg3: memref<1x1x32xf32, #tpu.memory_space<vmem>>, %arg4: memref<1x1x32xf32, #tpu.memory_space<vmem>>, %arg5: memref<1x2x2x32xf32, #tpu.memory_space<vmem>>) attributes {dimension_semantics = [#tpu.dimension_semantics<parallel>, #tpu.dimension_semantics<parallel>], iteration_bounds = array<i64: 2, 1>, scalar_prefetch = 0 : i64, scratch_operands = 0 : i64, tpu.core_type = #tpu.core_type<tc>, window_params = [{transform_indices = @transform_0, window_bounds = array<i64: 1, 2, 2, 32>}, {pipeline_mode = #tpu.pipeline_mode<synchronous>, transform_indices = @transform_1, window_bounds = array<i64: 1, 1, 32>}, {pipeline_mode = #tpu.pipeline_mode<synchronous>, transform_indices = @transform_2, window_bounds = array<i64: 1, 1, 32>}, {transform_indices = @transform_3, window_bounds = array<i64: 1, 2, 2, 32>}]} {
    %c0 = arith.constant 0 : index
    %c0_0 = arith.constant 0 : index
    %c0_1 = arith.constant 0 : index
    %c0_2 = arith.constant 0 : index
    %0 = vector.load %arg2[%c0, %c0_0, %c0_1, %c0_2] : memref<1x2x2x32xbf16, #tpu.memory_space<vmem>>, vector<1x2x2x32xbf16>
    %1 = vector.shape_cast %0 : vector<1x2x2x32xbf16> to vector<2x2x32xbf16>
    %2 = arith.extf %1 : vector<2x2x32xbf16> to vector<2x2x32xf32>
    %c0_3 = arith.constant 0 : index
    %c0_4 = arith.constant 0 : index
    %c0_5 = arith.constant 0 : index
    %3 = vector.load %arg3[%c0_3, %c0_4, %c0_5] : memref<1x1x32xf32, #tpu.memory_space<vmem>>, vector<1x1x32xf32>
    %4 = vector.shape_cast %3 : vector<1x1x32xf32> to vector<1x32xf32>
    %5 = vector.shape_cast %4 : vector<1x32xf32> to vector<1x1x32xf32>
    %6 = vector.broadcast %5 : vector<1x1x32xf32> to vector<2x2x32xf32>
    %7 = arith.mulf %2, %6 : vector<2x2x32xf32>
    %c0_6 = arith.constant 0 : index
    %c0_7 = arith.constant 0 : index
    %c0_8 = arith.constant 0 : index
    %8 = vector.load %arg4[%c0_6, %c0_7, %c0_8] : memref<1x1x32xf32, #tpu.memory_space<vmem>>, vector<1x1x32xf32>
    %9 = vector.shape_cast %8 : vector<1x1x32xf32> to vector<1x32xf32>
    %10 = vector.shape_cast %9 : vector<1x32xf32> to vector<1x1x32xf32>
    %11 = vector.broadcast %10 : vector<1x1x32xf32> to vector<2x2x32xf32>
    %12 = arith.addf %7, %11 : vector<2x2x32xf32>
    %cst = arith.constant 0.000000e+00 : f32
    %13 = vector.broadcast %cst : f32 to vector<2x2x32xf32>
    %14 = arith.cmpf oge, %12, %13 : vector<2x2x32xf32>
    %cst_9 = arith.constant 0.00999999977 : f32
    %15 = vector.broadcast %cst_9 : f32 to vector<2x2x32xf32>
    %16 = arith.mulf %15, %12 : vector<2x2x32xf32>
    %17 = arith.select %14, %12, %16 : vector<2x2x32xi1>, vector<2x2x32xf32>
    %c0_10 = arith.constant 0 : index
    %c0_11 = arith.constant 0 : index
    %c0_12 = arith.constant 0 : index
    %c0_13 = arith.constant 0 : index
    %18 = vector.load %arg5[%c0_10, %c0_11, %c0_12, %c0_13] : memref<1x2x2x32xf32, #tpu.memory_space<vmem>>, vector<1x2x2x32xf32>
    %19 = vector.shape_cast %18 : vector<1x2x2x32xf32> to vector<2x2x32xf32>
    %20 = vector.shape_cast %17 : vector<2x2x32xf32> to vector<1x2x2x32xf32>
    tpu.vector_store %arg5[%c0_10, %c0_11, %c0_12, %c0_13], %20 {strides = array<i32>} : memref<1x2x2x32xf32, #tpu.memory_space<vmem>>, vector<1x2x2x32xf32>,
    return
  }
  func.func @transform_0(%arg0: i32, %arg1: i32) -> (i32, i32, i32, i32) {
    %c0_i32 = arith.constant 0 : i32
    %c0_i32_0 = arith.constant 0 : i32
    %c0_i32_1 = arith.constant 0 : i32
    return %arg0, %arg1, %c0_i32, %c0_i32_0 : i32, i32, i32, i32
  }
  func.func @transform_1(%arg0: i32, %arg1: i32) -> (i32, i32, i32) {
    %c0_i32 = arith.constant 0 : i32
    %c0_i32_0 = arith.constant 0 : i32
    %c0_i32_1 = arith.constant 0 : i32
    %c0_i32_2 = arith.constant 0 : i32
    return %c0_i32, %c0_i32_0, %c0_i32_1 : i32, i32, i32
  }
  func.func @transform_2(%arg0: i32, %arg1: i32) -> (i32, i32, i32) {
    %c0_i32 = arith.constant 0 : i32
    %c0_i32_0 = arith.constant 0 : i32
    %c0_i32_1 = arith.constant 0 : i32
    %c0_i32_2 = arith.constant 0 : i32
    return %c0_i32, %c0_i32_0, %c0_i32_1 : i32, i32, i32
  }
  func.func @transform_3(%arg0: i32, %arg1: i32) -> (i32, i32, i32, i32) {
    %c0_i32 = arith.constant 0 : i32
    %c0_i32_0 = arith.constant 0 : i32
    %c0_i32_1 = arith.constant 0 : i32
    return %arg0, %arg1, %c0_i32, %c0_i32_0 : i32, i32, i32, i32
  }
}

</mosaic_0001>

<llo_original>
// kernel: _lambda_.7
$region0: #{_lambda_.7}
  #allocation0 [shape = 'u32[]', space=smem, size = 0x4, offset = 0x4, fixed_abs, tag = 'smem constant byte address 0x4 - core index']
  #allocation1 [shape = 'u32[72,128]{1,0:T(1,128)}', space=vmem, size = 0x9000, scoped, tag = 'internal scratch']
  %s0 = inlined_call_operand.vmem [shape: bf16[2,4,4,16], index: 0, kind: input, shape index: {}]
  %s1 = inlined_call_operand.vmem [shape: f32[1,1,16], index: 1, kind: input, shape index: {}]
  %s2 = inlined_call_operand.vmem [shape: f32[1,1,16], index: 2, kind: input, shape index: {}]
  %s3 = inlined_call_operand.vmem [shape: f32[2,4,4,16], index: 3, kind: output, shape index: {}]
  %s4 = sld [smem:[#allocation0]]
  $region45: #{_lambda_.7} parent=0
    _
  %s6 = ssub.s32 1, %s4
  %s7 = scalar_select 0, %s6, %s4
  loop: start=0, step=1, limit=4
  $region2: #{_lambda_.7} parent=0 // loop_pre_header
    _
  $region3: #{_lambda_.7} parent=0 // loop_header
    %s9 = sphi 0, %s13
    %p10 = scmp.ge.s32.totalorder %s9, 4
    %s16 = sphi 0, %s28
    %s17 = sphi 0, %s24
    %s18 = sphi 0, %s16
    %s19 = sphi 0, %s17
    %s20 = sphi 0, %s18
    %s21 = sphi 0, %s19
    %s33 = sphi 0, %s35
    %s36 = sphi 0, %s33
    %s37 = sphi 0, %s36
    %s53 = sphi 0, %s37
    %s57 = sphi 0, %s57
    %s59 = sphi 0, %s57
    %s60 = sphi 0, %s59
    %s74 = sphi 0, %s60
    %s78 = sphi 0, %s78
    %s80 = sphi 0, %s78
    %s81 = sphi 0, %s80
    %s95 = sphi 0, %s81
    %s103 = sphi 0, %s105
    %s106 = sphi 0, %s103
    %s107 = sphi 0, %s106
    %s123 = sphi 0, %s107
  $region4: #{_lambda_.7} parent=0 // loop_header_branch
    %12 = sbr.rel (%p10) target = $region8
  $region5: #{_lambda_.7} parent=0 // loop_body
    %s14 = ssub.s32 %s9, 1
    %s15 = ssub.s32 %s9, 2
    %s22 = sadd.s32 1, %s17
    %p23 = scmp.ge.s32.totalorder %s22, 1
    %s24 = scalar_select %p23, 0, %s22
    %s25 = sadd.s32 1, %s16
    %s26 = scalar_select %p23, %s25, %s16
    %p27 = scmp.ge.s32.totalorder %s26, 2
    %s28 = scalar_select %p27, 0, %s26
    %s29 = ssub.s32 %s16, %s28
    %s30 = ssub.s32 %s17, %s24
    %s31 = sor.u32 %s29, %s30
    %p32 = scmp.eq.s32.totalorder %s31, 0
    %s34 = sadd.s32 %s33, 1
    %s35 = scalar_select %p32, %s33, %s34
    %p38 = pneg %p32
    %p39 = scmp.eq.s32.totalorder %s9, 1
    %p40 = por %p38, %p39
    %p41 = scmp.ne.s32.totalorder %s33, %s36
    %p42 = scmp.eq.s32.totalorder %s9, 0
    %p43 = por %p41, %p42
    %p44 = scmp.ne.s32.totalorder %s33, %s36
    %p45 = scmp.eq.s32.totalorder %s14, 1
    %p46 = por %p44, %p45
    %p47 = scmp.ne.s32.totalorder %s36, %s37
    %p48 = scmp.eq.s32.totalorder %s14, 0
    %p49 = por %p47, %p48
    %p50 = scmp.ne.s32.totalorder %s36, %s37
    %p51 = scmp.eq.s32.totalorder %s15, 1
    %p52 = por %p50, %p51
    %p54 = scmp.ne.s32.totalorder %s37, %s53
    %p55 = scmp.eq.s32.totalorder %s15, 0
    %p56 = por %p54, %p55
    %s58 = sadd.s32 %s57, 1
    %p61 = scmp.eq.s32.totalorder %s9, 1
    %p62 = scmp.ne.s32.totalorder %s57, %s59
    %p63 = scmp.eq.s32.totalorder %s9, 0
    %p64 = por %p62, %p63
    %p65 = scmp.ne.s32.totalorder %s57, %s59
    %p66 = scmp.eq.s32.totalorder %s14, 1
    %p67 = por %p65, %p66
    %p68 = scmp.ne.s32.totalorder %s59, %s60
    %p69 = scmp.eq.s32.totalorder %s14, 0
    %p70 = por %p68, %p69
    %p71 = scmp.ne.s32.totalorder %s59, %s60
    %p72 = scmp.eq.s32.totalorder %s15, 1
    %p73 = por %p71, %p72
    %p75 = scmp.ne.s32.totalorder %s60, %s74
    %p76 = scmp.eq.s32.totalorder %s15, 0
    %p77 = por %p75, %p76
    %s79 = sadd.s32 %s78, 1
    %p82 = scmp.eq.s32.totalorder %s9, 1
    %p83 = scmp.ne.s32.totalorder %s78, %s80
    %p84 = scmp.eq.s32.totalorder %s9, 0
    %p85 = por %p83, %p84
    %p86 = scmp.ne.s32.totalorder %s78, %s80
    %p87 = scmp.eq.s32.totalorder %s14, 1
    %p88 = por %p86, %p87
    %p89 = scmp.ne.s32.totalorder %s80, %s81
    %p90 = scmp.eq.s32.totalorder %s14, 0
    %p91 = por %p89, %p90
    %p92 = scmp.ne.s32.totalorder %s80, %s81
    %p93 = scmp.eq.s32.totalorder %s15, 1
    %p94 = por %p92, %p93
    %p96 = scmp.ne.s32.totalorder %s81, %s95
    %p97 = scmp.eq.s32.totalorder %s15, 0
    %p98 = por %p96, %p97
    %s99 = ssub.s32 %s16, %s28
    %s100 = ssub.s32 %s17, %s24
    %s101 = sor.u32 %s99, %s100
    %p102 = scmp.eq.s32.totalorder %s101, 0
    %s104 = sadd.s32 %s103, 1
    %s105 = scalar_select %p102, %s103, %s104
    %p108 = pneg %p102
    %p109 = scmp.eq.s32.totalorder %s9, 1
    %p110 = por %p108, %p109
    %p111 = scmp.ne.s32.totalorder %s103, %s106
    %p112 = scmp.eq.s32.totalorder %s9, 0
    %p113 = por %p111, %p112
    %p114 = scmp.ne.s32.totalorder %s103, %s106
    %p115 = scmp.eq.s32.totalorder %s14, 1
    %p116 = por %p114, %p115
    %p117 = scmp.ne.s32.totalorder %s106, %s107
    %p118 = scmp.eq.s32.totalorder %s14, 0
    %p119 = por %p117, %p118
    %p120 = scmp.ne.s32.totalorder %s106, %s107
    %p121 = scmp.eq.s32.totalorder %s15, 1
    %p122 = por %p120, %p121
    %p124 = scmp.ne.s32.totalorder %s107, %s123
    %p125 = scmp.eq.s32.totalorder %s15, 0
    %p126 = por %p124, %p125
    %p127 = scmp.le.s32.totalorder 1, %s9
    %p128 = scmp.lt.s32.totalorder %s9, 3
    %p129 = pnand %p127, %p128
    %p130 = pneg %p129
    // Predicated region
    $region9: #{_lambda_.7} parent=5 // pred_check
      _
    $region10: #{_lambda_.7} parent=5 // pred_check_branch
      %132 = sbr.rel (%p129) target = $region12
    $region11: #{_lambda_.7} parent=5 // pred_region
      %s133 = ssub.s32 %s9, 1
      // Predicated region
      $region13: #{_lambda_.7} parent=11 // pred_check
        %p134 = pneg %p70
      $region14: #{_lambda_.7} parent=11 // pred_check_branch
        %136 = sbr.rel (%p134) target = $region16
      $region15: #{_lambda_.7} parent=11 // pred_region
        _
      $region16: #{_lambda_.7} parent=11 // pred_fallthru
        _
      // Predicated region
      $region17: #{_lambda_.7} parent=11 // pred_check
        %p137 = pneg %p91
      $region18: #{_lambda_.7} parent=11 // pred_check_branch
        %139 = sbr.rel (%p137) target = $region20
      $region19: #{_lambda_.7} parent=11 // pred_region
        _
      $region20: #{_lambda_.7} parent=11 // pred_fallthru
        _
    $region12: #{_lambda_.7} parent=5 // pred_fallthru
      _
    %p140 = scmp.lt.s32.totalorder %s9, 2
    // Predicated region
    $region21: #{_lambda_.7} parent=5 // pred_check
      %p141 = pneg %p140
    $region22: #{_lambda_.7} parent=5 // pred_check_branch
      %143 = sbr.rel (%p141) target = $region24
    $region23: #{_lambda_.7} parent=5 // pred_region
      // Predicated region
      $region25: #{_lambda_.7} parent=23 // pred_check
        %p144 = pneg %p43
      $region26: #{_lambda_.7} parent=23 // pred_check_branch
        %146 = sbr.rel (%p144) target = $region28
      $region27: #{_lambda_.7} parent=23 // pred_region
        %s147 = smul.u32 4, %s17
        %p148 = scmp.lt.s32.totalorder %s16, 1
        %s149 = scalar_select %p148, %s16, 1
        %p150 = scmp.lt.s32.totalorder %s147, 3
        %s151 = scalar_select %p150, %s147, 3
        %s152 = smul.addr %s149, 4
        %s153 = sadd.s32 %s151, %s152
        %s154 = smul.addr %s153, 2
        %s155 = scalar_lea.vmem %s0, %s154
        %s156 = smul.u32 4, %s17
      $region28: #{_lambda_.7} parent=23 // pred_fallthru
        _
    $region24: #{_lambda_.7} parent=5 // pred_fallthru
      _
    %p157 = scmp.le.s32.totalorder 1, %s9
    %p158 = scmp.lt.s32.totalorder %s9, 3
    %p159 = pnand %p157, %p158
    %p160 = pneg %p159
    // Predicated region
    $region29: #{_lambda_.7} parent=5 // pred_check
      _
    $region30: #{_lambda_.7} parent=5 // pred_check_branch
      %162 = sbr.rel (%p159) target = $region32
    $region31: #{_lambda_.7} parent=5 // pred_region
      %s163 = ssub.s32 %s9, 1
      %s164 = smul.u32 4, %s19
      %p165 = scmp.lt.s32.totalorder %s18, 1
      %s166 = scalar_select %p165, %s18, 1
      %p167 = scmp.lt.s32.totalorder %s164, 3
      %s168 = scalar_select %p167, %s164, 3
      %s169 = smul.addr %s166, 4
      %s170 = sadd.s32 %s168, %s169
      %s171 = smul.addr %s170, 2
      %s172 = scalar_lea.vmem %s0, %s171
      %p173 = pneg %p49
      %p174 = pneg %p46
      %p175 = pneg %p70
      %p176 = pneg %p67
      %p177 = pneg %p91
      %p178 = pneg %p88
      %p179 = pneg %p119
      %p180 = pneg %p116
      %s181 = smul.u32 4, %s19
      %p182 = scmp.lt.s32.totalorder %s18, 1
      %s183 = scalar_select %p182, %s18, 1
      %p184 = scmp.lt.s32.totalorder %s181, 3
      %s185 = scalar_select %p184, %s181, 3
      %s186 = smul.addr %s183, 4
      %s187 = sadd.s32 %s185, %s186
      %s188 = smul.addr %s187, 4
      %s189 = scalar_lea.vmem %s3, %s188
      %s190 = smul.u32 4, %s19
      %p191 = scmp.lt.s32.totalorder %s18, 1
      %s192 = scalar_select %p191, %s18, 1
      %p193 = scmp.lt.s32.totalorder %s190, 3
      %s194 = scalar_select %p193, %s190, 3
      %s195 = smul.addr %s192, 4
      %s196 = sadd.s32 %s194, %s195
      %s197 = smul.addr %s196, 2
      %s198 = scalar_lea.vmem %s0, %s197
      %s199 = smul.u32 4, %s19
      %s200 = smul.u32 4, %s19
      %p201 = scmp.lt.s32.totalorder %s18, 1
      %s202 = scalar_select %p201, %s18, 1
      %p203 = scmp.lt.s32.totalorder %s200, 3
      %s204 = scalar_select %p203, %s200, 3
      %s205 = smul.addr %s202, 4
      %s206 = sadd.s32 %s204, %s205
      %s207 = smul.addr %s206, 4
      %s208 = scalar_lea.vmem %s3, %s207
      %s209 = smul.u32 4, %s19
      %v210 = vld [vmem:[%s198] sm:$0x3]
      %v211 = vld [vmem:[%s198 + $0x2] sm:$0x3]
      %v212 = vld [vmem:[%s198 + $0x4] sm:$0x3]
      %v213 = vld [vmem:[%s198 + $0x6] sm:$0x3]
      %v214 = vunpack.c.l.bf16 %v210
      %v215 = vunpack.c.l.bf16 %v211
      %v216 = vunpack.c.l.bf16 %v212
      %v217 = vunpack.c.l.bf16 %v213
      %v218 = vld [vmem:[%s1] sm:$0x1]
      %v220 = vperm.slane %v218, 0
      %v222 = vmul.f32 %v214, %v220
      %v223 = vmul.f32 %v215, %v220
      %v224 = vmul.f32 %v216, %v220
      %v225 = vmul.f32 %v217, %v220
      %v226 = vld [vmem:[%s2] sm:$0x1]
      %v228 = vperm.slane %v226, 0
      %v230 = vadd.f32 %v222, %v228
      %v231 = vadd.f32 %v223, %v228
      %v232 = vadd.f32 %v224, %v228
      %v233 = vadd.f32 %v225, %v228
      %vm234 = vcmp.ge.f32.partialorder %v230, 0.0
      %vm235 = vcmp.ge.f32.partialorder %v231, 0.0
      %vm236 = vcmp.ge.f32.partialorder %v232, 0.0
      %vm237 = vcmp.ge.f32.partialorder %v233, 0.0
      %v238 = vmul.f32 %v230, 0.01
      %v239 = vmul.f32 %v231, 0.01
      %v240 = vmul.f32 %v232, 0.01
      %v241 = vmul.f32 %v233, 0.01
      %v242 = vsel %vm234, %v230, %v238
      %v243 = vsel %vm235, %v231, %v239
      %v244 = vsel %vm236, %v232, %v240
      %v245 = vsel %vm237, %v233, %v241
      %vm246 = vcmask 125952
      %247 = vst.msk [vmem:[%s208] sm:$0xf] %vm246, %v242
      %248 = vst.msk [vmem:[%s208 + $0x4] sm:$0xf] %vm246, %v243
      %249 = vst.msk [vmem:[%s208 + $0x8] sm:$0xf] %vm246, %v244
      %250 = vst.msk [vmem:[%s208 + $0xc] sm:$0xf] %vm246, %v245
      %s251 = smul.u32 4, %s19
      %p252 = scmp.lt.s32.totalorder %s18, 1
      %s253 = scalar_select %p252, %s18, 1
      %p254 = scmp.lt.s32.totalorder %s251, 3
      %s255 = scalar_select %p254, %s251, 3
      %s256 = smul.addr %s253, 4
      %s257 = sadd.s32 %s255, %s256
      %s258 = smul.addr %s257, 4
      %s259 = scalar_lea.vmem %s3, %s258
      // Predicated region
      $region33: #{_lambda_.7} parent=31 // pred_check
        %p260 = pneg %p116
      $region34: #{_lambda_.7} parent=31 // pred_check_branch
        %262 = sbr.rel (%p260) target = $region36
      $region35: #{_lambda_.7} parent=31 // pred_region
        %s263 = smul.u32 4, %s19
      $region36: #{_lambda_.7} parent=31 // pred_fallthru
        _
    $region32: #{_lambda_.7} parent=5 // pred_fallthru
      _
    %p264 = scmp.le.s32.totalorder 2, %s9
    // Predicated region
    $region37: #{_lambda_.7} parent=5 // pred_check
      %p265 = pneg %p264
    $region38: #{_lambda_.7} parent=5 // pred_check_branch
      %267 = sbr.rel (%p265) target = $region40
    $region39: #{_lambda_.7} parent=5 // pred_region
      %s268 = ssub.s32 %s9, 2
      // Predicated region
      $region41: #{_lambda_.7} parent=39 // pred_check
        %p269 = pneg %p122
      $region42: #{_lambda_.7} parent=39 // pred_check_branch
        %271 = sbr.rel (%p269) target = $region44
      $region43: #{_lambda_.7} parent=39 // pred_region
        %s272 = smul.u32 4, %s21
        %p273 = scmp.lt.s32.totalorder %s20, 1
        %s274 = scalar_select %p273, %s20, 1
        %p275 = scmp.lt.s32.totalorder %s272, 3
        %s276 = scalar_select %p275, %s272, 3
        %s277 = smul.addr %s274, 4
        %s278 = sadd.s32 %s276, %s277
        %s279 = smul.addr %s278, 4
        %s280 = scalar_lea.vmem %s3, %s279
      $region44: #{_lambda_.7} parent=39 // pred_fallthru
        _
    $region40: #{_lambda_.7} parent=5 // pred_fallthru
      _
  $region6: #{_lambda_.7} parent=0 // loop_footer
    %s13 = sadd.s32 1, %s9
  $region7: #{_lambda_.7} parent=0 // loop_footer_branch
    %8 = sbr.rel target = $region3
  $region8: #{_lambda_.7} parent=0 // loop_exit
    _

// kernel: _lambda_.5
$region0: #{_lambda_.5}
  #allocation0 [shape = 'u32[]', space=smem, size = 0x4, offset = 0x4, fixed_abs, tag = 'smem constant byte address 0x4 - core index']
  #allocation1 [shape = 'u32[72,128]{1,0:T(1,128)}', space=vmem, size = 0x9000, scoped, tag = 'internal scratch']
  #allocation2 [shape = 'bf16[9,9,16]{2,1,0:T(8,128)(2,1)}', space=vmem, size = 0x9000, scoped, tag = 'scratch operand']
  %s0 = inlined_call_operand.vmem [shape: bf16[2,9,9,16], index: 0, kind: input, shape index: {}, may-alias: {0,1}]
  %s1 = inlined_call_operand.vmem [shape: bf16[2,9,9,16], index: 1, kind: input, shape index: {}, may-alias: {0,1}]
  %s2 = inlined_call_operand.vmem [shape: bf16[4,16,8], index: 2, kind: input, shape index: {}]
  %s3 = inlined_call_operand.vmem [shape: f32[2,8,8,8], index: 3, kind: output, shape index: {}]
  %s4 = sld [smem:[#allocation0]]
  $region45: #{_lambda_.5} parent=0
    _
  %s6 = ssub.s32 1, %s4
  %s7 = scalar_select 0, %s6, %s4
  loop: start=0, step=1, limit=4
  $region2: #{_lambda_.5} parent=0 // loop_pre_header
    _
  $region3: #{_lambda_.5} parent=0 // loop_header
    %s9 = sphi 0, %s13
    %p10 = scmp.ge.s32.totalorder %s9, 4
    %s16 = sphi 0, %s28
    %s17 = sphi 0, %s24
    %s18 = sphi 0, %s16
    %s19 = sphi 0, %s17
    %s20 = sphi 0, %s18
    %s21 = sphi 0, %s19
    %s33 = sphi 0, %s35
    %s36 = sphi 0, %s33
    %s37 = sphi 0, %s36
    %s53 = sphi 0, %s37
    %s65 = sphi 0, %s67
    %s68 = sphi 0, %s65
    %s69 = sphi 0, %s68
    %s85 = sphi 0, %s69
    %s89 = sphi 0, %s89
    %s91 = sphi 0, %s89
    %s92 = sphi 0, %s91
    %s106 = sphi 0, %s92
    %s114 = sphi 0, %s116
    %s117 = sphi 0, %s114
    %s118 = sphi 0, %s117
    %s134 = sphi 0, %s118
  $region4: #{_lambda_.5} parent=0 // loop_header_branch
    %12 = sbr.rel (%p10) target = $region8
  $region5: #{_lambda_.5} parent=0 // loop_body
    %s14 = ssub.s32 %s9, 1
    %s15 = ssub.s32 %s9, 2
    %s22 = sadd.s32 1, %s17
    %p23 = scmp.ge.s32.totalorder %s22, 1
    %s24 = scalar_select %p23, 0, %s22
    %s25 = sadd.s32 1, %s16
    %s26 = scalar_select %p23, %s25, %s16
    %p27 = scmp.ge.s32.totalorder %s26, 2
    %s28 = scalar_select %p27, 0, %s26
    %s29 = ssub.s32 %s16, %s28
    %s30 = ssub.s32 %s17, %s24
    %s31 = sor.u32 %s29, %s30
    %p32 = scmp.eq.s32.totalorder %s31, 0
    %s34 = sadd.s32 %s33, 1
    %s35 = scalar_select %p32, %s33, %s34
    %p38 = pneg %p32
    %p39 = scmp.eq.s32.totalorder %s9, 1
    %p40 = por %p38, %p39
    %p41 = scmp.ne.s32.totalorder %s33, %s36
    %p42 = scmp.eq.s32.totalorder %s9, 0
    %p43 = por %p41, %p42
    %p44 = scmp.ne.s32.totalorder %s33, %s36
    %p45 = scmp.eq.s32.totalorder %s14, 1
    %p46 = por %p44, %p45
    %p47 = scmp.ne.s32.totalorder %s36, %s37
    %p48 = scmp.eq.s32.totalorder %s14, 0
    %p49 = por %p47, %p48
    %p50 = scmp.ne.s32.totalorder %s36, %s37
    %p51 = scmp.eq.s32.totalorder %s15, 1
    %p52 = por %p50, %p51
    %p54 = scmp.ne.s32.totalorder %s37, %s53
    %p55 = scmp.eq.s32.totalorder %s15, 0
    %p56 = por %p54, %p55
    %s57 = sadd.s32 %s17, 1
    %s58 = smul.u32 %s57, 8
    %s59 = sadd.s32 %s24, 1
    %s60 = smul.u32 %s59, 8
    %s61 = ssub.s32 %s16, %s28
    %s62 = ssub.s32 %s58, %s60
    %s63 = sor.u32 %s61, %s62
    %p64 = scmp.eq.s32.totalorder %s63, 0
    %s66 = sadd.s32 %s65, 1
    %s67 = scalar_select %p64, %s65, %s66
    %p70 = pneg %p64
    %p71 = scmp.eq.s32.totalorder %s9, 1
    %p72 = por %p70, %p71
    %p73 = scmp.ne.s32.totalorder %s65, %s68
    %p74 = scmp.eq.s32.totalorder %s9, 0
    %p75 = por %p73, %p74
    %p76 = scmp.ne.s32.totalorder %s65, %s68
    %p77 = scmp.eq.s32.totalorder %s14, 1
    %p78 = por %p76, %p77
    %p79 = scmp.ne.s32.totalorder %s68, %s69
    %p80 = scmp.eq.s32.totalorder %s14, 0
    %p81 = por %p79, %p80
    %p82 = scmp.ne.s32.totalorder %s68, %s69
    %p83 = scmp.eq.s32.totalorder %s15, 1
    %p84 = por %p82, %p83
    %p86 = scmp.ne.s32.totalorder %s69, %s85
    %p87 = scmp.eq.s32.totalorder %s15, 0
    %p88 = por %p86, %p87
    %s90 = sadd.s32 %s89, 1
    %p93 = scmp.eq.s32.totalorder %s9, 1
    %p94 = scmp.ne.s32.totalorder %s89, %s91
    %p95 = scmp.eq.s32.totalorder %s9, 0
    %p96 = por %p94, %p95
    %p97 = scmp.ne.s32.totalorder %s89, %s91
    %p98 = scmp.eq.s32.totalorder %s14, 1
    %p99 = por %p97, %p98
    %p100 = scmp.ne.s32.totalorder %s91, %s92
    %p101 = scmp.eq.s32.totalorder %s14, 0
    %p102 = por %p100, %p101
    %p103 = scmp.ne.s32.totalorder %s91, %s92
    %p104 = scmp.eq.s32.totalorder %s15, 1
    %p105 = por %p103, %p104
    %p107 = scmp.ne.s32.totalorder %s92, %s106
    %p108 = scmp.eq.s32.totalorder %s15, 0
    %p109 = por %p107, %p108
    %s110 = ssub.s32 %s16, %s28
    %s111 = ssub.s32 %s17, %s24
    %s112 = sor.u32 %s110, %s111
    %p113 = scmp.eq.s32.totalorder %s112, 0
    %s115 = sadd.s32 %s114, 1
    %s116 = scalar_select %p113, %s114, %s115
    %p119 = pneg %p113
    %p120 = scmp.eq.s32.totalorder %s9, 1
    %p121 = por %p119, %p120
    %p122 = scmp.ne.s32.totalorder %s114, %s117
    %p123 = scmp.eq.s32.totalorder %s9, 0
    %p124 = por %p122, %p123
    %p125 = scmp.ne.s32.totalorder %s114, %s117
    %p126 = scmp.eq.s32.totalorder %s14, 1
    %p127 = por %p125, %p126
    %p128 = scmp.ne.s32.totalorder %s117, %s118
    %p129 = scmp.eq.s32.totalorder %s14, 0
    %p130 = por %p128, %p129
    %p131 = scmp.ne.s32.totalorder %s117, %s118
    %p132 = scmp.eq.s32.totalorder %s15, 1
    %p133 = por %p131, %p132
    %p135 = scmp.ne.s32.totalorder %s118, %s134
    %p136 = scmp.eq.s32.totalorder %s15, 0
    %p137 = por %p135, %p136
    %p138 = scmp.le.s32.totalorder 1, %s9
    %p139 = scmp.lt.s32.totalorder %s9, 3
    %p140 = pnand %p138, %p139
    %p141 = pneg %p140
    // Predicated region
    $region9: #{_lambda_.5} parent=5 // pred_check
      _
    $region10: #{_lambda_.5} parent=5 // pred_check_branch
      %143 = sbr.rel (%p140) target = $region12
    $region11: #{_lambda_.5} parent=5 // pred_region
      %s144 = ssub.s32 %s9, 1
      // Predicated region
      $region13: #{_lambda_.5} parent=11 // pred_check
        %p145 = pneg %p102
      $region14: #{_lambda_.5} parent=11 // pred_check_branch
        %147 = sbr.rel (%p145) target = $region16
      $region15: #{_lambda_.5} parent=11 // pred_region
        _
      $region16: #{_lambda_.5} parent=11 // pred_fallthru
        _
    $region12: #{_lambda_.5} parent=5 // pred_fallthru
      _
    %p148 = scmp.lt.s32.totalorder %s9, 2
    // Predicated region
    $region17: #{_lambda_.5} parent=5 // pred_check
      %p149 = pneg %p148
    $region18: #{_lambda_.5} parent=5 // pred_check_branch
      %151 = sbr.rel (%p149) target = $region20
    $region19: #{_lambda_.5} parent=5 // pred_region
      // Predicated region
      $region21: #{_lambda_.5} parent=19 // pred_check
        %p152 = pneg %p43
      $region22: #{_lambda_.5} parent=19 // pred_check_branch
        %154 = sbr.rel (%p152) target = $region24
      $region23: #{_lambda_.5} parent=19 // pred_region
        %s155 = smul.u32 8, %s17
        %s156 = ssub.s32 9, %s155
        %p157 = scmp.lt.s32.totalorder %s156, 8
        %s158 = scalar_select %p157, %s156, 8
        %s159 = smul.u32 4, %s158
        %s160 = smul.u32 %s159, 2
        %p161 = scmp.lt.s32.totalorder %s16, 1
        %s162 = scalar_select %p161, %s16, 1
        %p163 = scmp.lt.s32.totalorder %s155, 8
        %s164 = scalar_select %p163, %s155, 8
        %s165 = smul.addr %s164, 2
        %s166 = smul.addr %s162, 18
        %s167 = sadd.s32 %s165, %s166
        %s168 = smul.addr %s167, 4
        %s169 = scalar_lea.vmem %s0, %s168
        %s170 = smul.u32 8, %s17
        %s171 = ssub.s32 9, %s170
        %p172 = scmp.lt.s32.totalorder %s171, 8
        %s173 = scalar_select %p172, %s171, 8
        %s174 = smul.u32 4, %s173
        %s175 = smul.u32 %s174, 2
      $region24: #{_lambda_.5} parent=19 // pred_fallthru
        _
      // Predicated region
      $region25: #{_lambda_.5} parent=19 // pred_check
        %p176 = pneg %p75
      $region26: #{_lambda_.5} parent=19 // pred_check_branch
        %178 = sbr.rel (%p176) target = $region28
      $region27: #{_lambda_.5} parent=19 // pred_region
        %s179 = sadd.s32 %s17, 1
        %s180 = smul.u32 %s179, 8
        %p181 = scmp.lt.s32.totalorder %s16, 1
        %s182 = scalar_select %p181, %s16, 1
        %p183 = scmp.lt.s32.totalorder %s180, 8
        %s184 = scalar_select %p183, %s180, 8
        %s185 = smul.addr %s184, 2
        %s186 = smul.addr %s182, 18
        %s187 = sadd.s32 %s185, %s186
        %s188 = smul.addr %s187, 4
        %s189 = scalar_lea.vmem %s1, %s188
        %s190 = sadd.s32 %s17, 1
        %s191 = smul.u32 %s190, 8
      $region28: #{_lambda_.5} parent=19 // pred_fallthru
        _
    $region20: #{_lambda_.5} parent=5 // pred_fallthru
      _
    %p192 = scmp.le.s32.totalorder 1, %s9
    %p193 = scmp.lt.s32.totalorder %s9, 3
    %p194 = pnand %p192, %p193
    %p195 = pneg %p194
    // Predicated region
    $region29: #{_lambda_.5} parent=5 // pred_check
      _
    $region30: #{_lambda_.5} parent=5 // pred_check_branch
      %197 = sbr.rel (%p194) target = $region32
    $region31: #{_lambda_.5} parent=5 // pred_region
      %s198 = ssub.s32 %s9, 1
      %s199 = smul.u32 8, %s19
      %s200 = ssub.s32 9, %s199
      %p201 = scmp.lt.s32.totalorder %s200, 8
      %s202 = scalar_select %p201, %s200, 8
      %s203 = smul.u32 4, %s202
      %s204 = smul.u32 %s203, 2
      %p205 = scmp.lt.s32.totalorder %s18, 1
      %s206 = scalar_select %p205, %s18, 1
      %p207 = scmp.lt.s32.totalorder %s199, 8
      %s208 = scalar_select %p207, %s199, 8
      %s209 = smul.addr %s208, 2
      %s210 = smul.addr %s206, 18
      %s211 = sadd.s32 %s209, %s210
      %s212 = smul.addr %s211, 4
      %s213 = scalar_lea.vmem %s0, %s212
      %p214 = pneg %p49
      %p215 = pneg %p46
      %s216 = sadd.s32 %s19, 1
      %s217 = smul.u32 %s216, 8
      %p218 = scmp.lt.s32.totalorder %s18, 1
      %s219 = scalar_select %p218, %s18, 1
      %p220 = scmp.lt.s32.totalorder %s217, 8
      %s221 = scalar_select %p220, %s217, 8
      %s222 = smul.addr %s221, 2
      %s223 = smul.addr %s219, 18
      %s224 = sadd.s32 %s222, %s223
      %s225 = smul.addr %s224, 4
      %s226 = scalar_lea.vmem %s1, %s225
      %p227 = pneg %p81
      %p228 = pneg %p78
      %p229 = pneg %p102
      %p230 = pneg %p99
      %p231 = pneg %p130
      %p232 = pneg %p127
      %s233 = smul.u32 8, %s19
      %p234 = scmp.lt.s32.totalorder %s18, 1
      %s235 = scalar_select %p234, %s18, 1
      %p236 = scmp.lt.s32.totalorder %s233, 7
      %s237 = scalar_select %p236, %s233, 7
      %s238 = smul.addr %s235, 8
      %s239 = sadd.s32 %s237, %s238
      %s240 = smul.addr %s239, 8
      %s241 = scalar_lea.vmem %s3, %s240
      %s242 = smul.u32 8, %s19
      %s243 = ssub.s32 9, %s242
      %p244 = scmp.lt.s32.totalorder %s243, 8
      %s245 = scalar_select %p244, %s243, 8
      %s246 = smul.u32 4, %s245
      %s247 = smul.u32 %s246, 2
      %p248 = scmp.lt.s32.totalorder %s18, 1
      %s249 = scalar_select %p248, %s18, 1
      %p250 = scmp.lt.s32.totalorder %s242, 8
      %s251 = scalar_select %p250, %s242, 8
      %s252 = smul.addr %s251, 2
      %s253 = smul.addr %s249, 18
      %s254 = sadd.s32 %s252, %s253
      %s255 = smul.addr %s254, 4
      %s256 = scalar_lea.vmem %s0, %s255
      %s257 = smul.u32 8, %s19
      %s258 = ssub.s32 9, %s257
      %p259 = scmp.lt.s32.totalorder %s258, 8
      %s260 = scalar_select %p259, %s258, 8
      %s261 = smul.u32 4, %s260
      %s262 = smul.u32 %s261, 2
      %s263 = sadd.s32 %s19, 1
      %s264 = smul.u32 %s263, 8
      %p265 = scmp.lt.s32.totalorder %s18, 1
      %s266 = scalar_select %p265, %s18, 1
      %p267 = scmp.lt.s32.totalorder %s264, 8
      %s268 = scalar_select %p267, %s264, 8
      %s269 = smul.addr %s268, 2
      %s270 = smul.addr %s266, 18
      %s271 = sadd.s32 %s269, %s270
      %s272 = smul.addr %s271, 4
      %s273 = scalar_lea.vmem %s1, %s272
      %s274 = sadd.s32 %s19, 1
      %s275 = smul.u32 %s274, 8
      %s276 = smul.u32 8, %s19
      %p277 = scmp.lt.s32.totalorder %s18, 1
      %s278 = scalar_select %p277, %s18, 1
      %p279 = scmp.lt.s32.totalorder %s276, 7
      %s280 = scalar_select %p279, %s276, 7
      %s281 = smul.addr %s278, 8
      %s282 = sadd.s32 %s280, %s281
      %s283 = smul.addr %s282, 8
      %s284 = scalar_lea.vmem %s3, %s283
      %s285 = smul.u32 8, %s19
      %v287 = vld [vmem:[%s256] sm:$0xf]
      %v288 = vld [vmem:[%s256 + $0x4] sm:$0x1]
      %v289 = vld [vmem:[%s256 + $0x8] sm:$0xf]
      %v290 = vld [vmem:[%s256 + $0xc] sm:$0x1]
      %v291 = vld [vmem:[%s256 + $0x10] sm:$0xf]
      %v292 = vld [vmem:[%s256 + $0x14] sm:$0x1]
      %v293 = vld [vmem:[%s256 + $0x18] sm:$0xf]
      %v294 = vld [vmem:[%s256 + $0x1c] sm:$0x1]
      %v295 = vld [vmem:[%s256 + $0x20] sm:$0xf]
      %v296 = vld [vmem:[%s256 + $0x24] sm:$0x1]
      %v297 = vld [vmem:[%s256 + $0x28] sm:$0xf]
      %v298 = vld [vmem:[%s256 + $0x2c] sm:$0x1]
      %v299 = vld [vmem:[%s256 + $0x30] sm:$0xf]
      %v300 = vld [vmem:[%s256 + $0x34] sm:$0x1]
      %v301 = vld [vmem:[%s256 + $0x38] sm:$0xf]
      %v302 = vld [vmem:[%s256 + $0x3c] sm:$0x1]
      %vm303 = vcmask 125952
      %304 = vst.msk [vmem:[#allocation2] sm:$0xf] %vm303, %v287
      %vm305 = vcmask 122880
      %vm306 = vsmask.f32 256
      %vm307 = vmand %vm305, %vm306
      %v308 = vld [vmem:[#allocation2 + $0x4] sm:$0x1]
      %v309 = vsel %vm307, %v288, %v308
      %310 = vst [vmem:[#allocation2 + $0x4] sm:$0x1] %v309
      %311 = vst.msk [vmem:[#allocation2 + $0x8] sm:$0xf] %vm303, %v289
      %v312 = vld [vmem:[#allocation2 + $0xc] sm:$0x1]
      %v313 = vsel %vm307, %v290, %v312
      %314 = vst [vmem:[#allocation2 + $0xc] sm:$0x1] %v313
      %315 = vst.msk [vmem:[#allocation2 + $0x10] sm:$0xf] %vm303, %v291
      %v316 = vld [vmem:[#allocation2 + $0x14] sm:$0x1]
      %v317 = vsel %vm307, %v292, %v316
      %318 = vst [vmem:[#allocation2 + $0x14] sm:$0x1] %v317
      %319 = vst.msk [vmem:[#allocation2 + $0x18] sm:$0xf] %vm303, %v293
      %v320 = vld [vmem:[#allocation2 + $0x1c] sm:$0x1]
      %v321 = vsel %vm307, %v294, %v320
      %322 = vst [vmem:[#allocation2 + $0x1c] sm:$0x1] %v321
      %323 = vst.msk [vmem:[#allocation2 + $0x20] sm:$0xf] %vm303, %v295
      %v324 = vld [vmem:[#allocation2 + $0x24] sm:$0x1]
      %v325 = vsel %vm307, %v296, %v324
      %326 = vst [vmem:[#allocation2 + $0x24] sm:$0x1] %v325
      %327 = vst.msk [vmem:[#allocation2 + $0x28] sm:$0xf] %vm303, %v297
      %v328 = vld [vmem:[#allocation2 + $0x2c] sm:$0x1]
      %v329 = vsel %vm307, %v298, %v328
      %330 = vst [vmem:[#allocation2 + $0x2c] sm:$0x1] %v329
      %331 = vst.msk [vmem:[#allocation2 + $0x30] sm:$0xf] %vm303, %v299
      %v332 = vld [vmem:[#allocation2 + $0x34] sm:$0x1]
      %v333 = vsel %vm307, %v300, %v332
      %334 = vst [vmem:[#allocation2 + $0x34] sm:$0x1] %v333
      %335 = vst.msk [vmem:[#allocation2 + $0x38] sm:$0xf] %vm303, %v301
      %v336 = vld [vmem:[#allocation2 + $0x3c] sm:$0x1]
      %v337 = vsel %vm307, %v302, %v336
      %338 = vst [vmem:[#allocation2 + $0x3c] sm:$0x1] %v337
      %v339 = vld [vmem:[%s273] sm:$0xf]
      %v340 = vld [vmem:[%s273 + $0x4] sm:$0x1]
      %s341 = scalar_lea.vmem [#allocation2], 64
      %342 = vst.msk [vmem:[%s341] sm:$0xf] %vm303, %v339
      %v343 = vld [vmem:[%s341 + $0x4] sm:$0x1]
      %v344 = vsel %vm307, %v340, %v343
      %345 = vst [vmem:[%s341 + $0x4] sm:$0x1] %v344
      %v346 = vld [vmem:[#allocation2] sm:$0xf]
      %v347 = vld [vmem:[#allocation2 + $0x8] sm:$0xf]
      %v348 = vld [vmem:[#allocation2 + $0x10] sm:$0xf]
      %v349 = vld [vmem:[#allocation2 + $0x18] sm:$0xf]
      %v350 = vld [vmem:[#allocation2 + $0x20] sm:$0xf]
      %v351 = vld [vmem:[#allocation2 + $0x28] sm:$0xf]
      %v352 = vld [vmem:[#allocation2 + $0x30] sm:$0xf]
      %v353 = vld [vmem:[#allocation2 + $0x38] sm:$0xf]
      %v354 = vld [vmem:[%s2] sm:$0xf]
      %v355 = vld [vmem:[%s2 + $0x4] sm:$0xf]
      %v356 = vld [vmem:[#allocation2 + $0x4] sm:$0x1]
      %v357 = vld [vmem:[#allocation2 + $0xc] sm:$0x1]
      %v358 = vld [vmem:[#allocation2 + $0x14] sm:$0x1]
      %v359 = vld [vmem:[#allocation2 + $0x1c] sm:$0x1]
      %v360 = vld [vmem:[#allocation2 + $0x24] sm:$0x1]
      %v361 = vld [vmem:[#allocation2 + $0x2c] sm:$0x1]
      %v362 = vld [vmem:[#allocation2 + $0x34] sm:$0x1]
      %v363 = vld [vmem:[#allocation2 + $0x3c] sm:$0x1]
      %vm364 = vsmask.f32 3328
      %vm365 = vsmask.f32 7440
      %vm366 = vmor %vm364, %vm365
      %v368 = vshrl.u32 %v346, 16
      %v370 = vrot.slane %v368, 4
      %v371 = vshll.u32 %v346, 16
      %v373 = vrot.slane %v371, 5
      %v374 = vor.u32 %v370, %v373
      %v375 = vrot.slane %v374, 4
      %v377 = vshll.u32 %v356, 16
      %v379 = vrot.slane %v377, 5
      %v380 = vsel %vm366, %v375, %v379
      %v382 = vshrl.u32 %v347, 16
      %v384 = vrot.slane %v382, 4
      %v385 = vshll.u32 %v347, 16
      %v387 = vrot.slane %v385, 5
      %v388 = vor.u32 %v384, %v387
      %v389 = vrot.slane %v388, 4
      %v391 = vshll.u32 %v357, 16
      %v393 = vrot.slane %v391, 5
      %v394 = vsel %vm366, %v389, %v393
      %v396 = vshrl.u32 %v348, 16
      %v398 = vrot.slane %v396, 4
      %v399 = vshll.u32 %v348, 16
      %v401 = vrot.slane %v399, 5
      %v402 = vor.u32 %v398, %v401
      %v403 = vrot.slane %v402, 4
      %v405 = vshll.u32 %v358, 16
      %v407 = vrot.slane %v405, 5
      %v408 = vsel %vm366, %v403, %v407
      %v410 = vshrl.u32 %v349, 16
      %v412 = vrot.slane %v410, 4
      %v413 = vshll.u32 %v349, 16
      %v415 = vrot.slane %v413, 5
      %v416 = vor.u32 %v412, %v415
      %v417 = vrot.slane %v416, 4
      %v419 = vshll.u32 %v359, 16
      %v421 = vrot.slane %v419, 5
      %v422 = vsel %vm366, %v417, %v421
      %v424 = vshrl.u32 %v350, 16
      %v426 = vrot.slane %v424, 4
      %v427 = vshll.u32 %v350, 16
      %v429 = vrot.slane %v427, 5
      %v430 = vor.u32 %v426, %v429
      %v431 = vrot.slane %v430, 4
      %v433 = vshll.u32 %v360, 16
      %v435 = vrot.slane %v433, 5
      %v436 = vsel %vm366, %v431, %v435
      %v438 = vshrl.u32 %v351, 16
      %v440 = vrot.slane %v438, 4
      %v441 = vshll.u32 %v351, 16
      %v443 = vrot.slane %v441, 5
      %v444 = vor.u32 %v440, %v443
      %v445 = vrot.slane %v444, 4
      %v447 = vshll.u32 %v361, 16
      %v449 = vrot.slane %v447, 5
      %v450 = vsel %vm366, %v445, %v449
      %v452 = vshrl.u32 %v352, 16
      %v454 = vrot.slane %v452, 4
      %v455 = vshll.u32 %v352, 16
      %v457 = vrot.slane %v455, 5
      %v458 = vor.u32 %v454, %v457
      %v459 = vrot.slane %v458, 4
      %v461 = vshll.u32 %v362, 16
      %v463 = vrot.slane %v461, 5
      %v464 = vsel %vm366, %v459, %v463
      %v466 = vshrl.u32 %v353, 16
      %v468 = vrot.slane %v466, 4
      %v469 = vshll.u32 %v353, 16
      %v471 = vrot.slane %v469, 5
      %v472 = vor.u32 %v468, %v471
      %v473 = vrot.slane %v472, 4
      %v475 = vshll.u32 %v363, 16
      %v477 = vrot.slane %v475, 5
      %v478 = vsel %vm366, %v473, %v477
      %s479 = scalar_lea.vmem %s2, 8
      %v480 = vld [vmem:[%s479] sm:$0xf]
      %v481 = vld [vmem:[%s479 + $0x4] sm:$0xf]
      %v482 = vunpack.c.l.b16 %v380
      %v483 = vunpack.c.l.b16 %v394
      %v484 = vunpack.c.l.b16 %v408
      %v485 = vunpack.c.l.b16 %v422
      %v486 = vunpack.c.l.b16 %v436
      %v487 = vunpack.c.l.b16 %v450
      %v488 = vunpack.c.l.b16 %v464
      %v489 = vunpack.c.l.b16 %v478
      %v490 = vpack.c.b16 %v483, %v482
      %v491 = vpack.c.b16 %v485, %v484
      %v492 = vpack.c.b16 %v487, %v486
      %v493 = vpack.c.b16 %v489, %v488
      %v496 = vunpack.c.l.b16 %v480
      %v497 = vunpack.c.l.b16 %v481
      %v498 = vpack.c.b16 %v497, %v496
      %vm500 = vcmask 130048
      %v502 = vsel %vm500, %v490, 0
      %v505 = vsel %vm500, %v491, 0
      %v508 = vsel %vm500, %v492, 0
      %v511 = vsel %vm500, %v493, 0
      %513 = vmatpush.bf16.msra.mxu0 0
      %514 = vmatpush.bf16.msra.mxu0 0
      %515 = vmatpush.bf16.msra.mxu0 0
      %516 = vmatpush.bf16.msra.mxu0 0
      %517 = vmatpush.bf16.msra.mxu0 0
      %518 = vmatpush.bf16.msra.mxu0 0
      %519 = vmatpush.bf16.msra.mxu0 0
      %520 = vmatpush.bf16.msra.mxu0 %v498
      %521 = vmatmul.bf16.gmra.mxu0 %v502
      %v522 = vpop.f32.mrf.mxu0
      %v523 = vadd.f32 0.0, %v522
      %v524 = vpop.f32.mrf.mxu0
      %v525 = vadd.f32 0.0, %v524
      %526 = vmatmul.bf16.gmra.mxu0 %v505
      %v527 = vpop.f32.mrf.mxu0
      %v528 = vadd.f32 0.0, %v527
      %v529 = vpop.f32.mrf.mxu0
      %v530 = vadd.f32 0.0, %v529
      %531 = vmatmul.bf16.gmra.mxu0 %v508
      %v532 = vpop.f32.mrf.mxu0
      %v533 = vadd.f32 0.0, %v532
      %v534 = vpop.f32.mrf.mxu0
      %v535 = vadd.f32 0.0, %v534
      %536 = vmatmul.bf16.gmra.mxu0 %v511
      %v537 = vpop.f32.mrf.mxu0
      %v538 = vadd.f32 0.0, %v537
      %v539 = vpop.f32.mrf.mxu0
      %v540 = vadd.f32 0.0, %v539
      %541 = vdwg.mxu0
      %v550 = vunpack.c.l.b16 %v346
      %v551 = vunpack.c.l.b16 %v347
      %v552 = vunpack.c.l.b16 %v348
      %v553 = vunpack.c.l.b16 %v349
      %v554 = vunpack.c.l.b16 %v350
      %v555 = vunpack.c.l.b16 %v351
      %v556 = vunpack.c.l.b16 %v352
      %v557 = vunpack.c.l.b16 %v353
      %v558 = vpack.c.b16 %v551, %v550
      %v559 = vpack.c.b16 %v553, %v552
      %v560 = vpack.c.b16 %v555, %v554
      %v561 = vpack.c.b16 %v557, %v556
      %v564 = vunpack.c.l.b16 %v354
      %v565 = vunpack.c.l.b16 %v355
      %v566 = vpack.c.b16 %v565, %v564
      %v569 = vsel %vm500, %v558, 0
      %v572 = vsel %vm500, %v559, 0
      %v575 = vsel %vm500, %v560, 0
      %v578 = vsel %vm500, %v561, 0
      %580 = vmatpush.bf16.msra.mxu0 0
      %581 = vmatpush.bf16.msra.mxu0 0
      %582 = vmatpush.bf16.msra.mxu0 0
      %583 = vmatpush.bf16.msra.mxu0 0
      %584 = vmatpush.bf16.msra.mxu0 0
      %585 = vmatpush.bf16.msra.mxu0 0
      %586 = vmatpush.bf16.msra.mxu0 0
      %587 = vmatpush.bf16.msra.mxu0 %v566
      %588 = vmatmul.bf16.gmra.mxu0 %v569
      %v589 = vpop.f32.mrf.mxu0
      %v590 = vadd.f32 %v523, %v589
      %v591 = vpop.f32.mrf.mxu0
      %v592 = vadd.f32 %v525, %v591
      %593 = vmatmul.bf16.gmra.mxu0 %v572
      %v594 = vpop.f32.mrf.mxu0
      %v595 = vadd.f32 %v528, %v594
      %v596 = vpop.f32.mrf.mxu0
      %v597 = vadd.f32 %v530, %v596
      %598 = vmatmul.bf16.gmra.mxu0 %v575
      %v599 = vpop.f32.mrf.mxu0
      %v600 = vadd.f32 %v533, %v599
      %v601 = vpop.f32.mrf.mxu0
      %v602 = vadd.f32 %v535, %v601
      %603 = vmatmul.bf16.gmra.mxu0 %v578
      %v604 = vpop.f32.mrf.mxu0
      %v605 = vadd.f32 %v538, %v604
      %v606 = vpop.f32.mrf.mxu0
      %v607 = vadd.f32 %v540, %v606
      %608 = vdwg.mxu0
      %s609 = scalar_lea.vmem [#allocation2], 8
      %v610 = vld [vmem:[%s609] sm:$0xf]
      %v611 = vld [vmem:[%s609 + $0x8] sm:$0xf]
      %v612 = vld [vmem:[%s609 + $0x10] sm:$0xf]
      %v613 = vld [vmem:[%s609 + $0x18] sm:$0xf]
      %v614 = vld [vmem:[%s609 + $0x20] sm:$0xf]
      %v615 = vld [vmem:[%s609 + $0x28] sm:$0xf]
      %v616 = vld [vmem:[%s609 + $0x30] sm:$0xf]
      %v617 = vld [vmem:[%s609 + $0x38] sm:$0xf]
      %s618 = scalar_lea.vmem %s2, 16
      %v619 = vld [vmem:[%s618] sm:$0xf]
      %v620 = vld [vmem:[%s618 + $0x4] sm:$0xf]
      %v629 = vunpack.c.l.b16 %v610
      %v630 = vunpack.c.l.b16 %v611
      %v631 = vunpack.c.l.b16 %v612
      %v632 = vunpack.c.l.b16 %v613
      %v633 = vunpack.c.l.b16 %v614
      %v634 = vunpack.c.l.b16 %v615
      %v635 = vunpack.c.l.b16 %v616
      %v636 = vunpack.c.l.b16 %v617
      %v637 = vpack.c.b16 %v630, %v629
      %v638 = vpack.c.b16 %v632, %v631
      %v639 = vpack.c.b16 %v634, %v633
      %v640 = vpack.c.b16 %v636, %v635
      %v643 = vunpack.c.l.b16 %v619
      %v644 = vunpack.c.l.b16 %v620
      %v645 = vpack.c.b16 %v644, %v643
      %v648 = vsel %vm500, %v637, 0
      %v651 = vsel %vm500, %v638, 0
      %v654 = vsel %vm500, %v639, 0
      %v657 = vsel %vm500, %v640, 0
      %659 = vmatpush.bf16.msra.mxu0 0
      %660 = vmatpush.bf16.msra.mxu0 0
      %661 = vmatpush.bf16.msra.mxu0 0
      %662 = vmatpush.bf16.msra.mxu0 0
      %663 = vmatpush.bf16.msra.mxu0 0
      %664 = vmatpush.bf16.msra.mxu0 0
      %665 = vmatpush.bf16.msra.mxu0 0
      %666 = vmatpush.bf16.msra.mxu0 %v645
      %667 = vmatmul.bf16.gmra.mxu0 %v648
      %v668 = vpop.f32.mrf.mxu0
      %v669 = vadd.f32 0.0, %v668
      %v670 = vpop.f32.mrf.mxu0
      %v671 = vadd.f32 0.0, %v670
      %672 = vmatmul.bf16.gmra.mxu0 %v651
      %v673 = vpop.f32.mrf.mxu0
      %v674 = vadd.f32 0.0, %v673
      %v675 = vpop.f32.mrf.mxu0
      %v676 = vadd.f32 0.0, %v675
      %677 = vmatmul.bf16.gmra.mxu0 %v654
      %v678 = vpop.f32.mrf.mxu0
      %v679 = vadd.f32 0.0, %v678
      %v680 = vpop.f32.mrf.mxu0
      %v681 = vadd.f32 0.0, %v680
      %682 = vmatmul.bf16.gmra.mxu0 %v657
      %v683 = vpop.f32.mrf.mxu0
      %v684 = vadd.f32 0.0, %v683
      %v685 = vpop.f32.mrf.mxu0
      %v686 = vadd.f32 0.0, %v685
      %687 = vdwg.mxu0
      %v688 = vadd.f32 %v590, %v669
      %v689 = vadd.f32 %v592, %v671
      %v690 = vadd.f32 %v595, %v674
      %v691 = vadd.f32 %v597, %v676
      %v692 = vadd.f32 %v600, %v679
      %v693 = vadd.f32 %v602, %v681
      %v694 = vadd.f32 %v605, %v684
      %v695 = vadd.f32 %v607, %v686
      %v696 = vld [vmem:[%s609] sm:$0xf]
      %v697 = vld [vmem:[%s609 + $0x4] sm:$0x1]
      %v698 = vld [vmem:[%s609 + $0x8] sm:$0xf]
      %v699 = vld [vmem:[%s609 + $0xc] sm:$0x1]
      %v700 = vld [vmem:[%s609 + $0x10] sm:$0xf]
      %v701 = vld [vmem:[%s609 + $0x14] sm:$0x1]
      %v702 = vld [vmem:[%s609 + $0x18] sm:$0xf]
      %v703 = vld [vmem:[%s609 + $0x1c] sm:$0x1]
      %v704 = vld [vmem:[%s609 + $0x20] sm:$0xf]
      %v705 = vld [vmem:[%s609 + $0x24] sm:$0x1]
      %v706 = vld [vmem:[%s609 + $0x28] sm:$0xf]
      %v707 = vld [vmem:[%s609 + $0x2c] sm:$0x1]
      %v708 = vld [vmem:[%s609 + $0x30] sm:$0xf]
      %v709 = vld [vmem:[%s609 + $0x34] sm:$0x1]
      %v710 = vld [vmem:[%s609 + $0x38] sm:$0xf]
      %v711 = vld [vmem:[%s609 + $0x3c] sm:$0x1]
      %v713 = vshrl.u32 %v696, 16
      %v715 = vrot.slane %v713, 4
      %v716 = vshll.u32 %v696, 16
      %v718 = vrot.slane %v716, 5
      %v719 = vor.u32 %v715, %v718
      %v720 = vrot.slane %v719, 4
      %v722 = vshll.u32 %v697, 16
      %v724 = vrot.slane %v722, 5
      %v725 = vsel %vm366, %v720, %v724
      %v727 = vshrl.u32 %v698, 16
      %v729 = vrot.slane %v727, 4
      %v730 = vshll.u32 %v698, 16
      %v732 = vrot.slane %v730, 5
      %v733 = vor.u32 %v729, %v732
      %v734 = vrot.slane %v733, 4
      %v736 = vshll.u32 %v699, 16
      %v738 = vrot.slane %v736, 5
      %v739 = vsel %vm366, %v734, %v738
      %v741 = vshrl.u32 %v700, 16
      %v743 = vrot.slane %v741, 4
      %v744 = vshll.u32 %v700, 16
      %v746 = vrot.slane %v744, 5
      %v747 = vor.u32 %v743, %v746
      %v748 = vrot.slane %v747, 4
      %v750 = vshll.u32 %v701, 16
      %v752 = vrot.slane %v750, 5
      %v753 = vsel %vm366, %v748, %v752
      %v755 = vshrl.u32 %v702, 16
      %v757 = vrot.slane %v755, 4
      %v758 = vshll.u32 %v702, 16
      %v760 = vrot.slane %v758, 5
      %v761 = vor.u32 %v757, %v760
      %v762 = vrot.slane %v761, 4
      %v764 = vshll.u32 %v703, 16
      %v766 = vrot.slane %v764, 5
      %v767 = vsel %vm366, %v762, %v766
      %v769 = vshrl.u32 %v704, 16
      %v771 = vrot.slane %v769, 4
      %v772 = vshll.u32 %v704, 16
      %v774 = vrot.slane %v772, 5
      %v775 = vor.u32 %v771, %v774
      %v776 = vrot.slane %v775, 4
      %v778 = vshll.u32 %v705, 16
      %v780 = vrot.slane %v778, 5
      %v781 = vsel %vm366, %v776, %v780
      %v783 = vshrl.u32 %v706, 16
      %v785 = vrot.slane %v783, 4
      %v786 = vshll.u32 %v706, 16
      %v788 = vrot.slane %v786, 5
      %v789 = vor.u32 %v785, %v788
      %v790 = vrot.slane %v789, 4
      %v792 = vshll.u32 %v707, 16
      %v794 = vrot.slane %v792, 5
      %v795 = vsel %vm366, %v790, %v794
      %v797 = vshrl.u32 %v708, 16
      %v799 = vrot.slane %v797, 4
      %v800 = vshll.u32 %v708, 16
      %v802 = vrot.slane %v800, 5
      %v803 = vor.u32 %v799, %v802
      %v804 = vrot.slane %v803, 4
      %v806 = vshll.u32 %v709, 16
      %v808 = vrot.slane %v806, 5
      %v809 = vsel %vm366, %v804, %v808
      %v811 = vshrl.u32 %v710, 16
      %v813 = vrot.slane %v811, 4
      %v814 = vshll.u32 %v710, 16
      %v816 = vrot.slane %v814, 5
      %v817 = vor.u32 %v813, %v816
      %v818 = vrot.slane %v817, 4
      %v820 = vshll.u32 %v711, 16
      %v822 = vrot.slane %v820, 5
      %v823 = vsel %vm366, %v818, %v822
      %s824 = scalar_lea.vmem %s2, 24
      %v825 = vld [vmem:[%s824] sm:$0xf]
      %v826 = vld [vmem:[%s824 + $0x4] sm:$0xf]
      %v827 = vunpack.c.l.b16 %v725
      %v828 = vunpack.c.l.b16 %v739
      %v829 = vunpack.c.l.b16 %v753
      %v830 = vunpack.c.l.b16 %v767
      %v831 = vunpack.c.l.b16 %v781
      %v832 = vunpack.c.l.b16 %v795
      %v833 = vunpack.c.l.b16 %v809
      %v834 = vunpack.c.l.b16 %v823
      %v835 = vpack.c.b16 %v828, %v827
      %v836 = vpack.c.b16 %v830, %v829
      %v837 = vpack.c.b16 %v832, %v831
      %v838 = vpack.c.b16 %v834, %v833
      %v841 = vunpack.c.l.b16 %v825
      %v842 = vunpack.c.l.b16 %v826
      %v843 = vpack.c.b16 %v842, %v841
      %v846 = vsel %vm500, %v835, 0
      %v849 = vsel %vm500, %v836, 0
      %v852 = vsel %vm500, %v837, 0
      %v855 = vsel %vm500, %v838, 0
      %857 = vmatpush.bf16.msra.mxu0 0
      %858 = vmatpush.bf16.msra.mxu0 0
      %859 = vmatpush.bf16.msra.mxu0 0
      %860 = vmatpush.bf16.msra.mxu0 0
      %861 = vmatpush.bf16.msra.mxu0 0
      %862 = vmatpush.bf16.msra.mxu0 0
      %863 = vmatpush.bf16.msra.mxu0 0
      %864 = vmatpush.bf16.msra.mxu0 %v843
      %865 = vmatmul.bf16.gmra.mxu0 %v846
      %v866 = vpop.f32.mrf.mxu0
      %v867 = vadd.f32 0.0, %v866
      %v868 = vpop.f32.mrf.mxu0
      %v869 = vadd.f32 0.0, %v868
      %870 = vmatmul.bf16.gmra.mxu0 %v849
      %v871 = vpop.f32.mrf.mxu0
      %v872 = vadd.f32 0.0, %v871
      %v873 = vpop.f32.mrf.mxu0
      %v874 = vadd.f32 0.0, %v873
      %875 = vmatmul.bf16.gmra.mxu0 %v852
      %v876 = vpop.f32.mrf.mxu0
      %v877 = vadd.f32 0.0, %v876
      %v878 = vpop.f32.mrf.mxu0
      %v879 = vadd.f32 0.0, %v878
      %880 = vmatmul.bf16.gmra.mxu0 %v855
      %v881 = vpop.f32.mrf.mxu0
      %v882 = vadd.f32 0.0, %v881
      %v883 = vpop.f32.mrf.mxu0
      %v884 = vadd.f32 0.0, %v883
      %885 = vdwg.mxu0
      %v886 = vadd.f32 %v688, %v867
      %v887 = vadd.f32 %v689, %v869
      %v888 = vadd.f32 %v690, %v872
      %v889 = vadd.f32 %v691, %v874
      %v890 = vadd.f32 %v692, %v877
      %v891 = vadd.f32 %v693, %v879
      %v892 = vadd.f32 %v694, %v882
      %v893 = vadd.f32 %v695, %v884
      %vm894 = vcmp.ge.f32.partialorder %v886, 0.0
      %vm895 = vcmp.ge.f32.partialorder %v887, 0.0
      %vm896 = vcmp.ge.f32.partialorder %v888, 0.0
      %vm897 = vcmp.ge.f32.partialorder %v889, 0.0
      %vm898 = vcmp.ge.f32.partialorder %v890, 0.0
      %vm899 = vcmp.ge.f32.partialorder %v891, 0.0
      %vm900 = vcmp.ge.f32.partialorder %v892, 0.0
      %vm901 = vcmp.ge.f32.partialorder %v893, 0.0
      %v902 = vmul.f32 %v886, 0.01
      %v903 = vmul.f32 %v887, 0.01
      %v904 = vmul.f32 %v888, 0.01
      %v905 = vmul.f32 %v889, 0.01
      %v906 = vmul.f32 %v890, 0.01
      %v907 = vmul.f32 %v891, 0.01
      %v908 = vmul.f32 %v892, 0.01
      %v909 = vmul.f32 %v893, 0.01
      %v910 = vsel %vm894, %v886, %v902
      %v911 = vsel %vm895, %v887, %v903
      %v912 = vsel %vm896, %v888, %v904
      %v913 = vsel %vm897, %v889, %v905
      %v914 = vsel %vm898, %v890, %v906
      %v915 = vsel %vm899, %v891, %v907
      %v916 = vsel %vm900, %v892, %v908
      %v917 = vsel %vm901, %v893, %v909
      %vm918 = vcmask 64512
      %919 = vst.msk [vmem:[%s284] sm:$0xff] %vm918, %v910
      %920 = vst.msk [vmem:[%s284 + $0x8] sm:$0xff] %vm918, %v911
      %921 = vst.msk [vmem:[%s284 + $0x10] sm:$0xff] %vm918, %v912
      %922 = vst.msk [vmem:[%s284 + $0x18] sm:$0xff] %vm918, %v913
      %923 = vst.msk [vmem:[%s284 + $0x20] sm:$0xff] %vm918, %v914
      %924 = vst.msk [vmem:[%s284 + $0x28] sm:$0xff] %vm918, %v915
      %925 = vst.msk [vmem:[%s284 + $0x30] sm:$0xff] %vm918, %v916
      %926 = vst.msk [vmem:[%s284 + $0x38] sm:$0xff] %vm918, %v917
      %s927 = smul.u32 8, %s19
      %p928 = scmp.lt.s32.totalorder %s18, 1
      %s929 = scalar_select %p928, %s18, 1
      %p930 = scmp.lt.s32.totalorder %s927, 7
      %s931 = scalar_select %p930, %s927, 7
      %s932 = smul.addr %s929, 8
      %s933 = sadd.s32 %s931, %s932
      %s934 = smul.addr %s933, 8
      %s935 = scalar_lea.vmem %s3, %s934
      // Predicated region
      $region33: #{_lambda_.5} parent=31 // pred_check
        %p936 = pneg %p127
      $region34: #{_lambda_.5} parent=31 // pred_check_branch
        %938 = sbr.rel (%p936) target = $region36
      $region35: #{_lambda_.5} parent=31 // pred_region
        %s939 = smul.u32 8, %s19
      $region36: #{_lambda_.5} parent=31 // pred_fallthru
        _
    $region32: #{_lambda_.5} parent=5 // pred_fallthru
      _
    %p940 = scmp.le.s32.totalorder 2, %s9
    // Predicated region
    $region37: #{_lambda_.5} parent=5 // pred_check
      %p941 = pneg %p940
    $region38: #{_lambda_.5} parent=5 // pred_check_branch
      %943 = sbr.rel (%p941) target = $region40
    $region39: #{_lambda_.5} parent=5 // pred_region
      %s944 = ssub.s32 %s9, 2
      // Predicated region
      $region41: #{_lambda_.5} parent=39 // pred_check
        %p945 = pneg %p133
      $region42: #{_lambda_.5} parent=39 // pred_check_branch
        %947 = sbr.rel (%p945) target = $region44
      $region43: #{_lambda_.5} parent=39 // pred_region
        %s948 = smul.u32 8, %s21
        %p949 = scmp.lt.s32.totalorder %s20, 1
        %s950 = scalar_select %p949, %s20, 1
        %p951 = scmp.lt.s32.totalorder %s948, 7
        %s952 = scalar_select %p951, %s948, 7
        %s953 = smul.addr %s950, 8
        %s954 = sadd.s32 %s952, %s953
        %s955 = smul.addr %s954, 8
        %s956 = scalar_lea.vmem %s3, %s955
      $region44: #{_lambda_.5} parent=39 // pred_fallthru
        _
    $region40: #{_lambda_.5} parent=5 // pred_fallthru
      _
  $region6: #{_lambda_.5} parent=0 // loop_footer
    %s13 = sadd.s32 1, %s9
  $region7: #{_lambda_.5} parent=0 // loop_footer_branch
    %8 = sbr.rel target = $region3
  $region8: #{_lambda_.5} parent=0 // loop_exit
    _

// kernel: _lambda_.6
$region0: #{_lambda_.6}
  #allocation0 [shape = 'u32[]', space=smem, size = 0x4, offset = 0x4, fixed_abs, tag = 'smem constant byte address 0x4 - core index']
  #allocation1 [shape = 'u32[72,128]{1,0:T(1,128)}', space=vmem, size = 0x9000, scoped, tag = 'internal scratch']
  #allocation2 [shape = 'bf16[5,5,32]{2,1,0:T(8,128)(2,1)}', space=vmem, size = 0x2800, scoped, tag = 'scratch operand']
  %s0 = inlined_call_operand.vmem [shape: bf16[2,5,5,32], index: 0, kind: input, shape index: {}, may-alias: {0,1}]
  %s1 = inlined_call_operand.vmem [shape: bf16[2,5,5,32], index: 1, kind: input, shape index: {}, may-alias: {0,1}]
  %s2 = inlined_call_operand.vmem [shape: bf16[4,32,16], index: 2, kind: input, shape index: {}]
  %s3 = inlined_call_operand.vmem [shape: bf16[2,4,4,16], index: 3, kind: output, shape index: {0}]
  %s4 = inlined_call_operand.vmem [shape: f32[2,1,8,16], index: 4, kind: output, shape index: {1}]
  %s5 = inlined_call_operand.vmem [shape: f32[2,1,8,16], index: 5, kind: output, shape index: {2}]
  %6 = xla_tuple %s3, %s4, %s5
  %s7 = sld [smem:[#allocation0]]
  $region61: #{_lambda_.6} parent=0
    _
  %s9 = ssub.s32 1, %s7
  %s10 = scalar_select 0, %s9, %s7
  loop: start=0, step=1, limit=4
  $region2: #{_lambda_.6} parent=0 // loop_pre_header
    _
  $region3: #{_lambda_.6} parent=0 // loop_header
    %s12 = sphi 0, %s16
    %p13 = scmp.ge.s32.totalorder %s12, 4
    %s19 = sphi 0, %s31
    %s20 = sphi 0, %s27
    %s21 = sphi 0, %s19
    %s22 = sphi 0, %s20
    %s23 = sphi 0, %s21
    %s24 = sphi 0, %s22
    %s36 = sphi 0, %s38
    %s39 = sphi 0, %s36
    %s40 = sphi 0, %s39
    %s56 = sphi 0, %s40
    %s68 = sphi 0, %s70
    %s71 = sphi 0, %s68
    %s72 = sphi 0, %s71
    %s88 = sphi 0, %s72
    %s92 = sphi 0, %s92
    %s94 = sphi 0, %s92
    %s95 = sphi 0, %s94
    %s109 = sphi 0, %s95
    %s117 = sphi 0, %s119
    %s120 = sphi 0, %s117
    %s121 = sphi 0, %s120
    %s137 = sphi 0, %s121
    %s145 = sphi 0, %s147
    %s148 = sphi 0, %s145
    %s149 = sphi 0, %s148
    %s165 = sphi 0, %s149
    %s173 = sphi 0, %s175
    %s176 = sphi 0, %s173
    %s177 = sphi 0, %s176
    %s193 = sphi 0, %s177
  $region4: #{_lambda_.6} parent=0 // loop_header_branch
    %15 = sbr.rel (%p13) target = $region8
  $region5: #{_lambda_.6} parent=0 // loop_body
    %s17 = ssub.s32 %s12, 1
    %s18 = ssub.s32 %s12, 2
    %s25 = sadd.s32 1, %s20
    %p26 = scmp.ge.s32.totalorder %s25, 1
    %s27 = scalar_select %p26, 0, %s25
    %s28 = sadd.s32 1, %s19
    %s29 = scalar_select %p26, %s28, %s19
    %p30 = scmp.ge.s32.totalorder %s29, 2
    %s31 = scalar_select %p30, 0, %s29
    %s32 = ssub.s32 %s19, %s31
    %s33 = ssub.s32 %s20, %s27
    %s34 = sor.u32 %s32, %s33
    %p35 = scmp.eq.s32.totalorder %s34, 0
    %s37 = sadd.s32 %s36, 1
    %s38 = scalar_select %p35, %s36, %s37
    %p41 = pneg %p35
    %p42 = scmp.eq.s32.totalorder %s12, 1
    %p43 = por %p41, %p42
    %p44 = scmp.ne.s32.totalorder %s36, %s39
    %p45 = scmp.eq.s32.totalorder %s12, 0
    %p46 = por %p44, %p45
    %p47 = scmp.ne.s32.totalorder %s36, %s39
    %p48 = scmp.eq.s32.totalorder %s17, 1
    %p49 = por %p47, %p48
    %p50 = scmp.ne.s32.totalorder %s39, %s40
    %p51 = scmp.eq.s32.totalorder %s17, 0
    %p52 = por %p50, %p51
    %p53 = scmp.ne.s32.totalorder %s39, %s40
    %p54 = scmp.eq.s32.totalorder %s18, 1
    %p55 = por %p53, %p54
    %p57 = scmp.ne.s32.totalorder %s40, %s56
    %p58 = scmp.eq.s32.totalorder %s18, 0
    %p59 = por %p57, %p58
    %s60 = sadd.s32 %s20, 1
    %s61 = smul.u32 %s60, 4
    %s62 = sadd.s32 %s27, 1
    %s63 = smul.u32 %s62, 4
    %s64 = ssub.s32 %s19, %s31
    %s65 = ssub.s32 %s61, %s63
    %s66 = sor.u32 %s64, %s65
    %p67 = scmp.eq.s32.totalorder %s66, 0
    %s69 = sadd.s32 %s68, 1
    %s70 = scalar_select %p67, %s68, %s69
    %p73 = pneg %p67
    %p74 = scmp.eq.s32.totalorder %s12, 1
    %p75 = por %p73, %p74
    %p76 = scmp.ne.s32.totalorder %s68, %s71
    %p77 = scmp.eq.s32.totalorder %s12, 0
    %p78 = por %p76, %p77
    %p79 = scmp.ne.s32.totalorder %s68, %s71
    %p80 = scmp.eq.s32.totalorder %s17, 1
    %p81 = por %p79, %p80
    %p82 = scmp.ne.s32.totalorder %s71, %s72
    %p83 = scmp.eq.s32.totalorder %s17, 0
    %p84 = por %p82, %p83
    %p85 = scmp.ne.s32.totalorder %s71, %s72
    %p86 = scmp.eq.s32.totalorder %s18, 1
    %p87 = por %p85, %p86
    %p89 = scmp.ne.s32.totalorder %s72, %s88
    %p90 = scmp.eq.s32.totalorder %s18, 0
    %p91 = por %p89, %p90
    %s93 = sadd.s32 %s92, 1
    %p96 = scmp.eq.s32.totalorder %s12, 1
    %p97 = scmp.ne.s32.totalorder %s92, %s94
    %p98 = scmp.eq.s32.totalorder %s12, 0
    %p99 = por %p97, %p98
    %p100 = scmp.ne.s32.totalorder %s92, %s94
    %p101 = scmp.eq.s32.totalorder %s17, 1
    %p102 = por %p100, %p101
    %p103 = scmp.ne.s32.totalorder %s94, %s95
    %p104 = scmp.eq.s32.totalorder %s17, 0
    %p105 = por %p103, %p104
    %p106 = scmp.ne.s32.totalorder %s94, %s95
    %p107 = scmp.eq.s32.totalorder %s18, 1
    %p108 = por %p106, %p107
    %p110 = scmp.ne.s32.totalorder %s95, %s109
    %p111 = scmp.eq.s32.totalorder %s18, 0
    %p112 = por %p110, %p111
    %s113 = ssub.s32 %s19, %s31
    %s114 = ssub.s32 %s20, %s27
    %s115 = sor.u32 %s113, %s114
    %p116 = scmp.eq.s32.totalorder %s115, 0
    %s118 = sadd.s32 %s117, 1
    %s119 = scalar_select %p116, %s117, %s118
    %p122 = pneg %p116
    %p123 = scmp.eq.s32.totalorder %s12, 1
    %p124 = por %p122, %p123
    %p125 = scmp.ne.s32.totalorder %s117, %s120
    %p126 = scmp.eq.s32.totalorder %s12, 0
    %p127 = por %p125, %p126
    %p128 = scmp.ne.s32.totalorder %s117, %s120
    %p129 = scmp.eq.s32.totalorder %s17, 1
    %p130 = por %p128, %p129
    %p131 = scmp.ne.s32.totalorder %s120, %s121
    %p132 = scmp.eq.s32.totalorder %s17, 0
    %p133 = por %p131, %p132
    %p134 = scmp.ne.s32.totalorder %s120, %s121
    %p135 = scmp.eq.s32.totalorder %s18, 1
    %p136 = por %p134, %p135
    %p138 = scmp.ne.s32.totalorder %s121, %s137
    %p139 = scmp.eq.s32.totalorder %s18, 0
    %p140 = por %p138, %p139
    %s141 = ssub.s32 %s19, %s31
    %s142 = ssub.s32 %s20, %s27
    %s143 = sor.u32 %s141, %s142
    %p144 = scmp.eq.s32.totalorder %s143, 0
    %s146 = sadd.s32 %s145, 1
    %s147 = scalar_select %p144, %s145, %s146
    %p150 = pneg %p144
    %p151 = scmp.eq.s32.totalorder %s12, 1
    %p152 = por %p150, %p151
    %p153 = scmp.ne.s32.totalorder %s145, %s148
    %p154 = scmp.eq.s32.totalorder %s12, 0
    %p155 = por %p153, %p154
    %p156 = scmp.ne.s32.totalorder %s145, %s148
    %p157 = scmp.eq.s32.totalorder %s17, 1
    %p158 = por %p156, %p157
    %p159 = scmp.ne.s32.totalorder %s148, %s149
    %p160 = scmp.eq.s32.totalorder %s17, 0
    %p161 = por %p159, %p160
    %p162 = scmp.ne.s32.totalorder %s148, %s149
    %p163 = scmp.eq.s32.totalorder %s18, 1
    %p164 = por %p162, %p163
    %p166 = scmp.ne.s32.totalorder %s149, %s165
    %p167 = scmp.eq.s32.totalorder %s18, 0
    %p168 = por %p166, %p167
    %s169 = ssub.s32 %s19, %s31
    %s170 = ssub.s32 %s20, %s27
    %s171 = sor.u32 %s169, %s170
    %p172 = scmp.eq.s32.totalorder %s171, 0
    %s174 = sadd.s32 %s173, 1
    %s175 = scalar_select %p172, %s173, %s174
    %p178 = pneg %p172
    %p179 = scmp.eq.s32.totalorder %s12, 1
    %p180 = por %p178, %p179
    %p181 = scmp.ne.s32.totalorder %s173, %s176
    %p182 = scmp.eq.s32.totalorder %s12, 0
    %p183 = por %p181, %p182
    %p184 = scmp.ne.s32.totalorder %s173, %s176
    %p185 = scmp.eq.s32.totalorder %s17, 1
    %p186 = por %p184, %p185
    %p187 = scmp.ne.s32.totalorder %s176, %s177
    %p188 = scmp.eq.s32.totalorder %s17, 0
    %p189 = por %p187, %p188
    %p190 = scmp.ne.s32.totalorder %s176, %s177
    %p191 = scmp.eq.s32.totalorder %s18, 1
    %p192 = por %p190, %p191
    %p194 = scmp.ne.s32.totalorder %s177, %s193
    %p195 = scmp.eq.s32.totalorder %s18, 0
    %p196 = por %p194, %p195
    %p197 = scmp.le.s32.totalorder 1, %s12
    %p198 = scmp.lt.s32.totalorder %s12, 3
    %p199 = pnand %p197, %p198
    %p200 = pneg %p199
    // Predicated region
    $region9: #{_lambda_.6} parent=5 // pred_check
      _
    $region10: #{_lambda_.6} parent=5 // pred_check_branch
      %202 = sbr.rel (%p199) target = $region12
    $region11: #{_lambda_.6} parent=5 // pred_region
      %s203 = ssub.s32 %s12, 1
      // Predicated region
      $region13: #{_lambda_.6} parent=11 // pred_check
        %p204 = pneg %p105
      $region14: #{_lambda_.6} parent=11 // pred_check_branch
        %206 = sbr.rel (%p204) target = $region16
      $region15: #{_lambda_.6} parent=11 // pred_region
        _
      $region16: #{_lambda_.6} parent=11 // pred_fallthru
        _
    $region12: #{_lambda_.6} parent=5 // pred_fallthru
      _
    %p207 = scmp.lt.s32.totalorder %s12, 2
    // Predicated region
    $region17: #{_lambda_.6} parent=5 // pred_check
      %p208 = pneg %p207
    $region18: #{_lambda_.6} parent=5 // pred_check_branch
      %210 = sbr.rel (%p208) target = $region20
    $region19: #{_lambda_.6} parent=5 // pred_region
      // Predicated region
      $region21: #{_lambda_.6} parent=19 // pred_check
        %p211 = pneg %p46
      $region22: #{_lambda_.6} parent=19 // pred_check_branch
        %213 = sbr.rel (%p211) target = $region24
      $region23: #{_lambda_.6} parent=19 // pred_region
        %s214 = smul.u32 4, %s20
        %s215 = ssub.s32 5, %s214
        %p216 = scmp.lt.s32.totalorder %s215, 4
        %s217 = scalar_select %p216, %s215, 4
        %s218 = smul.u32 4, %s217
        %p219 = scmp.lt.s32.totalorder %s19, 1
        %s220 = scalar_select %p219, %s19, 1
        %p221 = scmp.lt.s32.totalorder %s214, 4
        %s222 = scalar_select %p221, %s214, 4
        %s223 = smul.addr %s220, 5
        %s224 = sadd.s32 %s222, %s223
        %s225 = smul.addr %s224, 4
        %s226 = scalar_lea.vmem %s0, %s225
        %s227 = smul.u32 4, %s20
        %s228 = ssub.s32 5, %s227
        %p229 = scmp.lt.s32.totalorder %s228, 4
        %s230 = scalar_select %p229, %s228, 4
        %s231 = smul.u32 4, %s230
      $region24: #{_lambda_.6} parent=19 // pred_fallthru
        _
      // Predicated region
      $region25: #{_lambda_.6} parent=19 // pred_check
        %p232 = pneg %p78
      $region26: #{_lambda_.6} parent=19 // pred_check_branch
        %234 = sbr.rel (%p232) target = $region28
      $region27: #{_lambda_.6} parent=19 // pred_region
        %s235 = sadd.s32 %s20, 1
        %s236 = smul.u32 %s235, 4
        %p237 = scmp.lt.s32.totalorder %s19, 1
        %s238 = scalar_select %p237, %s19, 1
        %p239 = scmp.lt.s32.totalorder %s236, 4
        %s240 = scalar_select %p239, %s236, 4
        %s241 = smul.addr %s238, 5
        %s242 = sadd.s32 %s240, %s241
        %s243 = smul.addr %s242, 4
        %s244 = scalar_lea.vmem %s1, %s243
        %s245 = sadd.s32 %s20, 1
        %s246 = smul.u32 %s245, 4
      $region28: #{_lambda_.6} parent=19 // pred_fallthru
        _
    $region20: #{_lambda_.6} parent=5 // pred_fallthru
      _
    %p247 = scmp.le.s32.totalorder 1, %s12
    %p248 = scmp.lt.s32.totalorder %s12, 3
    %p249 = pnand %p247, %p248
    %p250 = pneg %p249
    // Predicated region
    $region29: #{_lambda_.6} parent=5 // pred_check
      _
    $region30: #{_lambda_.6} parent=5 // pred_check_branch
      %252 = sbr.rel (%p249) target = $region32
    $region31: #{_lambda_.6} parent=5 // pred_region
      %s253 = ssub.s32 %s12, 1
      %s254 = smul.u32 4, %s22
      %s255 = ssub.s32 5, %s254
      %p256 = scmp.lt.s32.totalorder %s255, 4
      %s257 = scalar_select %p256, %s255, 4
      %s258 = smul.u32 4, %s257
      %p259 = scmp.lt.s32.totalorder %s21, 1
      %s260 = scalar_select %p259, %s21, 1
      %p261 = scmp.lt.s32.totalorder %s254, 4
      %s262 = scalar_select %p261, %s254, 4
      %s263 = smul.addr %s260, 5
      %s264 = sadd.s32 %s262, %s263
      %s265 = smul.addr %s264, 4
      %s266 = scalar_lea.vmem %s0, %s265
      %p267 = pneg %p52
      %p268 = pneg %p49
      %s269 = sadd.s32 %s22, 1
      %s270 = smul.u32 %s269, 4
      %p271 = scmp.lt.s32.totalorder %s21, 1
      %s272 = scalar_select %p271, %s21, 1
      %p273 = scmp.lt.s32.totalorder %s270, 4
      %s274 = scalar_select %p273, %s270, 4
      %s275 = smul.addr %s272, 5
      %s276 = sadd.s32 %s274, %s275
      %s277 = smul.addr %s276, 4
      %s278 = scalar_lea.vmem %s1, %s277
      %p279 = pneg %p84
      %p280 = pneg %p81
      %p281 = pneg %p105
      %p282 = pneg %p102
      %p283 = pneg %p133
      %p284 = pneg %p130
      %s285 = smul.u32 4, %s22
      %p286 = scmp.lt.s32.totalorder %s21, 1
      %s287 = scalar_select %p286, %s21, 1
      %p288 = scmp.lt.s32.totalorder %s285, 3
      %s289 = scalar_select %p288, %s285, 3
      %s290 = smul.addr %s287, 4
      %s291 = sadd.s32 %s289, %s290
      %s292 = smul.addr %s291, 2
      %s293 = scalar_lea.vmem %s3, %s292
      %p294 = pneg %p161
      %p295 = pneg %p158
      %p296 = scmp.lt.s32.totalorder %s21, 1
      %s297 = scalar_select %p296, %s21, 1
      %p298 = scmp.lt.s32.totalorder %s22, 0
      %s299 = scalar_select %p298, %s22, 0
      %s300 = sadd.s32 %s299, %s297
      %s301 = smul.addr %s300, 8
      %s302 = scalar_lea.vmem %s4, %s301
      %p303 = pneg %p189
      %p304 = pneg %p186
      %p305 = scmp.lt.s32.totalorder %s21, 1
      %s306 = scalar_select %p305, %s21, 1
      %p307 = scmp.lt.s32.totalorder %s22, 0
      %s308 = scalar_select %p307, %s22, 0
      %s309 = sadd.s32 %s308, %s306
      %s310 = smul.addr %s309, 8
      %s311 = scalar_lea.vmem %s5, %s310
      %s312 = smul.u32 4, %s22
      %s313 = ssub.s32 5, %s312
      %p314 = scmp.lt.s32.totalorder %s313, 4
      %s315 = scalar_select %p314, %s313, 4
      %s316 = smul.u32 4, %s315
      %p317 = scmp.lt.s32.totalorder %s21, 1
      %s318 = scalar_select %p317, %s21, 1
      %p319 = scmp.lt.s32.totalorder %s312, 4
      %s320 = scalar_select %p319, %s312, 4
      %s321 = smul.addr %s318, 5
      %s322 = sadd.s32 %s320, %s321
      %s323 = smul.addr %s322, 4
      %s324 = scalar_lea.vmem %s0, %s323
      %s325 = smul.u32 4, %s22
      %s326 = ssub.s32 5, %s325
      %p327 = scmp.lt.s32.totalorder %s326, 4
      %s328 = scalar_select %p327, %s326, 4
      %s329 = smul.u32 4, %s328
      %s330 = sadd.s32 %s22, 1
      %s331 = smul.u32 %s330, 4
      %p332 = scmp.lt.s32.totalorder %s21, 1
      %s333 = scalar_select %p332, %s21, 1
      %p334 = scmp.lt.s32.totalorder %s331, 4
      %s335 = scalar_select %p334, %s331, 4
      %s336 = smul.addr %s333, 5
      %s337 = sadd.s32 %s335, %s336
      %s338 = smul.addr %s337, 4
      %s339 = scalar_lea.vmem %s1, %s338
      %s340 = sadd.s32 %s22, 1
      %s341 = smul.u32 %s340, 4
      %s342 = smul.u32 4, %s22
      %p343 = scmp.lt.s32.totalorder %s21, 1
      %s344 = scalar_select %p343, %s21, 1
      %p345 = scmp.lt.s32.totalorder %s342, 3
      %s346 = scalar_select %p345, %s342, 3
      %s347 = smul.addr %s344, 4
      %s348 = sadd.s32 %s346, %s347
      %s349 = smul.addr %s348, 2
      %s350 = scalar_lea.vmem %s3, %s349
      %s351 = smul.u32 4, %s22
      %p352 = scmp.lt.s32.totalorder %s21, 1
      %s353 = scalar_select %p352, %s21, 1
      %p354 = scmp.lt.s32.totalorder %s22, 0
      %s355 = scalar_select %p354, %s22, 0
      %s356 = sadd.s32 %s355, %s353
      %s357 = smul.addr %s356, 8
      %s358 = scalar_lea.vmem %s4, %s357
      %p359 = scmp.lt.s32.totalorder %s21, 1
      %s360 = scalar_select %p359, %s21, 1
      %p361 = scmp.lt.s32.totalorder %s22, 0
      %s362 = scalar_select %p361, %s22, 0
      %s363 = sadd.s32 %s362, %s360
      %s364 = smul.addr %s363, 8
      %s365 = scalar_lea.vmem %s5, %s364
      %v367 = vld [vmem:[%s324] sm:$0x7]
      %v368 = vld [vmem:[%s324 + $0x4] sm:$0x7]
      %v369 = vld [vmem:[%s324 + $0x8] sm:$0x7]
      %v370 = vld [vmem:[%s324 + $0xc] sm:$0x7]
      %vm371 = vcmask 256000
      %vm372 = vsmask.f32 2304
      %vm373 = vmand %vm371, %vm372
      %v374 = vld [vmem:[#allocation2] sm:$0x7]
      %v375 = vsel %vm373, %v367, %v374
      %376 = vst [vmem:[#allocation2] sm:$0x7] %v375
      %v377 = vld [vmem:[#allocation2 + $0x4] sm:$0x7]
      %v378 = vsel %vm373, %v368, %v377
      %379 = vst [vmem:[#allocation2 + $0x4] sm:$0x7] %v378
      %v380 = vld [vmem:[#allocation2 + $0x8] sm:$0x7]
      %v381 = vsel %vm373, %v369, %v380
      %382 = vst [vmem:[#allocation2 + $0x8] sm:$0x7] %v381
      %v383 = vld [vmem:[#allocation2 + $0xc] sm:$0x7]
      %v384 = vsel %vm373, %v370, %v383
      %385 = vst [vmem:[#allocation2 + $0xc] sm:$0x7] %v384
      %v386 = vld [vmem:[%s339] sm:$0x7]
      %s387 = scalar_lea.vmem [#allocation2], 16
      %v388 = vld [vmem:[%s387] sm:$0x7]
      %v389 = vsel %vm373, %v386, %v388
      %390 = vst [vmem:[%s387] sm:$0x7] %v389
      %v391 = vld [vmem:[#allocation2] sm:$0x3]
      %v392 = vld [vmem:[#allocation2 + $0x4] sm:$0x3]
      %v393 = vld [vmem:[#allocation2 + $0x8] sm:$0x3]
      %v394 = vld [vmem:[#allocation2 + $0xc] sm:$0x3]
      %v395 = vld [vmem:[%s2] sm:$0xf]
      %v396 = vld [vmem:[%s2 + $0x4] sm:$0xf]
      %v397 = vld [vmem:[%s2 + $0x8] sm:$0xf]
      %v398 = vld [vmem:[%s2 + $0xc] sm:$0xf]
      %v399 = vld [vmem:[#allocation2] sm:$0x7]
      %v400 = vld [vmem:[#allocation2 + $0x4] sm:$0x7]
      %v401 = vld [vmem:[#allocation2 + $0x8] sm:$0x7]
      %v402 = vld [vmem:[#allocation2 + $0xc] sm:$0x7]
      %v407 = vrot.slane %v399, 2
      %v408 = vrot.slane %v400, 2
      %v409 = vrot.slane %v401, 2
      %v410 = vrot.slane %v402, 2
      %vm411 = vcmask 1041408
      %v414 = vsel %vm411, %v399, %v407
      %vm415 = vcmask 1043458
      %v416 = vsel %vm415, %v399, %v407
      %v418 = vrot.slane %v416, 2
      %v421 = vsel %vm411, %v400, %v408
      %v422 = vsel %vm415, %v400, %v408
      %v424 = vrot.slane %v422, 2
      %v427 = vsel %vm411, %v401, %v409
      %v428 = vsel %vm415, %v401, %v409
      %v430 = vrot.slane %v428, 2
      %v433 = vsel %vm411, %v402, %v410
      %v434 = vsel %vm415, %v402, %v410
      %v436 = vrot.slane %v434, 2
      %vm437 = vsmask.f32 1280
      %vm438 = vsmask.f32 3336
      %vm439 = vmor %vm437, %vm438
      %vm440 = vsmask.f32 5392
      %vm441 = vmor %vm439, %vm440
      %vm442 = vsmask.f32 7448
      %vm443 = vmor %vm441, %vm442
      %v444 = vshrl.u32 %v414, 16
      %v446 = vrot.slane %v444, 6
      %v447 = vshll.u32 %v414, 16
      %v449 = vrot.slane %v447, 7
      %v450 = vor.u32 %v446, %v449
      %v451 = vrot.slane %v450, 2
      %v453 = vshll.u32 %v418, 16
      %v455 = vrot.slane %v453, 7
      %v456 = vsel %vm443, %v451, %v455
      %v457 = vshrl.u32 %v421, 16
      %v459 = vrot.slane %v457, 6
      %v460 = vshll.u32 %v421, 16
      %v462 = vrot.slane %v460, 7
      %v463 = vor.u32 %v459, %v462
      %v464 = vrot.slane %v463, 2
      %v466 = vshll.u32 %v424, 16
      %v468 = vrot.slane %v466, 7
      %v469 = vsel %vm443, %v464, %v468
      %v470 = vshrl.u32 %v427, 16
      %v472 = vrot.slane %v470, 6
      %v473 = vshll.u32 %v427, 16
      %v475 = vrot.slane %v473, 7
      %v476 = vor.u32 %v472, %v475
      %v477 = vrot.slane %v476, 2
      %v479 = vshll.u32 %v430, 16
      %v481 = vrot.slane %v479, 7
      %v482 = vsel %vm443, %v477, %v481
      %v483 = vshrl.u32 %v433, 16
      %v485 = vrot.slane %v483, 6
      %v486 = vshll.u32 %v433, 16
      %v488 = vrot.slane %v486, 7
      %v489 = vor.u32 %v485, %v488
      %v490 = vrot.slane %v489, 2
      %v492 = vshll.u32 %v436, 16
      %v494 = vrot.slane %v492, 7
      %v495 = vsel %vm443, %v490, %v494
      %s496 = scalar_lea.vmem %s2, 16
      %v497 = vld [vmem:[%s496] sm:$0xf]
      %v498 = vld [vmem:[%s496 + $0x4] sm:$0xf]
      %v499 = vld [vmem:[%s496 + $0x8] sm:$0xf]
      %v500 = vld [vmem:[%s496 + $0xc] sm:$0xf]
      %502 = vst [vmem:[#allocation1] ss:$4 sm:$0xff] %v456
      %s504 = scalar_lea.vmem [#allocation1], 1
      %505 = vst [vmem:[%s504] ss:$4 sm:$0xff] %v469
      %s507 = scalar_lea.vmem [#allocation1], 2
      %508 = vst [vmem:[%s507] ss:$4 sm:$0xff] %v482
      %s510 = scalar_lea.vmem [#allocation1], 3
      %511 = vst [vmem:[%s510] ss:$4 sm:$0xff] %v495
      %v512 = vld.sshfl [vmem:[#allocation1] sm:$0xff pattern:$0x73625140]
      %v517 = vunpack.c.l.b16 %v497
      %v518 = vunpack.c.l.b16 %v498
      %v519 = vunpack.c.l.b16 %v499
      %v520 = vunpack.c.l.b16 %v500
      %v521 = vpack.c.b16 %v518, %v517
      %v522 = vpack.c.b16 %v520, %v519
      %vm525 = vcmask 261120
      %v526 = vsel %vm525, %v512, 0
      %528 = vmatpush.bf16.msra.mxu0 0
      %529 = vmatpush.bf16.msra.mxu0 0
      %530 = vmatpush.bf16.msra.mxu0 0
      %531 = vmatpush.bf16.msra.mxu0 0
      %532 = vmatpush.bf16.msra.mxu0 0
      %533 = vmatpush.bf16.msra.mxu0 0
      %534 = vmatpush.bf16.msra.mxu0 %v522
      %535 = vmatpush.bf16.msra.mxu0 %v521
      %536 = vmatmul.bf16.gmra.mxu0 %v526
      %v537 = vpop.f32.mrf.mxu0
      %v538 = vadd.f32 0.0, %v537
      %v539 = vpop.f32.mrf.mxu0
      %v540 = vadd.f32 0.0, %v539
      %541 = vdwg.mxu0
      %543 = vst [vmem:[#allocation1] ss:$4 sm:$0xff] %v391
      %s545 = scalar_lea.vmem [#allocation1], 1
      %546 = vst [vmem:[%s545] ss:$4 sm:$0xff] %v392
      %s548 = scalar_lea.vmem [#allocation1], 2
      %549 = vst [vmem:[%s548] ss:$4 sm:$0xff] %v393
      %s551 = scalar_lea.vmem [#allocation1], 3
      %552 = vst [vmem:[%s551] ss:$4 sm:$0xff] %v394
      %v553 = vld.sshfl [vmem:[#allocation1] sm:$0xff pattern:$0x73625140]
      %v558 = vunpack.c.l.b16 %v395
      %v559 = vunpack.c.l.b16 %v396
      %v560 = vunpack.c.l.b16 %v397
      %v561 = vunpack.c.l.b16 %v398
      %v562 = vpack.c.b16 %v559, %v558
      %v563 = vpack.c.b16 %v561, %v560
      %v566 = vsel %vm525, %v553, 0
      %568 = vmatpush.bf16.msra.mxu0 0
      %569 = vmatpush.bf16.msra.mxu0 0
      %570 = vmatpush.bf16.msra.mxu0 0
      %571 = vmatpush.bf16.msra.mxu0 0
      %572 = vmatpush.bf16.msra.mxu0 0
      %573 = vmatpush.bf16.msra.mxu0 0
      %574 = vmatpush.bf16.msra.mxu0 %v563
      %575 = vmatpush.bf16.msra.mxu0 %v562
      %576 = vmatmul.bf16.gmra.mxu0 %v566
      %v577 = vpop.f32.mrf.mxu0
      %v578 = vadd.f32 %v538, %v577
      %v579 = vpop.f32.mrf.mxu0
      %v580 = vadd.f32 %v540, %v579
      %581 = vdwg.mxu0
      %s582 = scalar_lea.vmem [#allocation2], 4
      %v583 = vld [vmem:[%s582] sm:$0x3]
      %v584 = vld [vmem:[%s582 + $0x4] sm:$0x3]
      %v585 = vld [vmem:[%s582 + $0x8] sm:$0x3]
      %v586 = vld [vmem:[%s582 + $0xc] sm:$0x3]
      %s587 = scalar_lea.vmem %s2, 32
      %v588 = vld [vmem:[%s587] sm:$0xf]
      %v589 = vld [vmem:[%s587 + $0x4] sm:$0xf]
      %v590 = vld [vmem:[%s587 + $0x8] sm:$0xf]
      %v591 = vld [vmem:[%s587 + $0xc] sm:$0xf]
      %593 = vst [vmem:[#allocation1] ss:$4 sm:$0xff] %v583
      %s595 = scalar_lea.vmem [#allocation1], 1
      %596 = vst [vmem:[%s595] ss:$4 sm:$0xff] %v584
      %s598 = scalar_lea.vmem [#allocation1], 2
      %599 = vst [vmem:[%s598] ss:$4 sm:$0xff] %v585
      %s601 = scalar_lea.vmem [#allocation1], 3
      %602 = vst [vmem:[%s601] ss:$4 sm:$0xff] %v586
      %v603 = vld.sshfl [vmem:[#allocation1] sm:$0xff pattern:$0x73625140]
      %v608 = vunpack.c.l.b16 %v588
      %v609 = vunpack.c.l.b16 %v589
      %v610 = vunpack.c.l.b16 %v590
      %v611 = vunpack.c.l.b16 %v591
      %v612 = vpack.c.b16 %v609, %v608
      %v613 = vpack.c.b16 %v611, %v610
      %v616 = vsel %vm525, %v603, 0
      %618 = vmatpush.bf16.msra.mxu0 0
      %619 = vmatpush.bf16.msra.mxu0 0
      %620 = vmatpush.bf16.msra.mxu0 0
      %621 = vmatpush.bf16.msra.mxu0 0
      %622 = vmatpush.bf16.msra.mxu0 0
      %623 = vmatpush.bf16.msra.mxu0 0
      %624 = vmatpush.bf16.msra.mxu0 %v613
      %625 = vmatpush.bf16.msra.mxu0 %v612
      %626 = vmatmul.bf16.gmra.mxu0 %v616
      %v627 = vpop.f32.mrf.mxu0
      %v628 = vadd.f32 0.0, %v627
      %v629 = vpop.f32.mrf.mxu0
      %v630 = vadd.f32 0.0, %v629
      %631 = vdwg.mxu0
      %v632 = vadd.f32 %v578, %v628
      %v633 = vadd.f32 %v580, %v630
      %v634 = vld [vmem:[%s582] sm:$0x7]
      %v635 = vld [vmem:[%s582 + $0x4] sm:$0x7]
      %v636 = vld [vmem:[%s582 + $0x8] sm:$0x7]
      %v637 = vld [vmem:[%s582 + $0xc] sm:$0x7]
      %v642 = vrot.slane %v634, 2
      %v643 = vrot.slane %v635, 2
      %v644 = vrot.slane %v636, 2
      %v645 = vrot.slane %v637, 2
      %v648 = vsel %vm411, %v634, %v642
      %v649 = vsel %vm415, %v634, %v642
      %v651 = vrot.slane %v649, 2
      %v654 = vsel %vm411, %v635, %v643
      %v655 = vsel %vm415, %v635, %v643
      %v657 = vrot.slane %v655, 2
      %v660 = vsel %vm411, %v636, %v644
      %v661 = vsel %vm415, %v636, %v644
      %v663 = vrot.slane %v661, 2
      %v666 = vsel %vm411, %v637, %v645
      %v667 = vsel %vm415, %v637, %v645
      %v669 = vrot.slane %v667, 2
      %v670 = vshrl.u32 %v648, 16
      %v672 = vrot.slane %v670, 6
      %v673 = vshll.u32 %v648, 16
      %v675 = vrot.slane %v673, 7
      %v676 = vor.u32 %v672, %v675
      %v677 = vrot.slane %v676, 2
      %v679 = vshll.u32 %v651, 16
      %v681 = vrot.slane %v679, 7
      %v682 = vsel %vm443, %v677, %v681
      %v683 = vshrl.u32 %v654, 16
      %v685 = vrot.slane %v683, 6
      %v686 = vshll.u32 %v654, 16
      %v688 = vrot.slane %v686, 7
      %v689 = vor.u32 %v685, %v688
      %v690 = vrot.slane %v689, 2
      %v692 = vshll.u32 %v657, 16
      %v694 = vrot.slane %v692, 7
      %v695 = vsel %vm443, %v690, %v694
      %v696 = vshrl.u32 %v660, 16
      %v698 = vrot.slane %v696, 6
      %v699 = vshll.u32 %v660, 16
      %v701 = vrot.slane %v699, 7
      %v702 = vor.u32 %v698, %v701
      %v703 = vrot.slane %v702, 2
      %v705 = vshll.u32 %v663, 16
      %v707 = vrot.slane %v705, 7
      %v708 = vsel %vm443, %v703, %v707
      %v709 = vshrl.u32 %v666, 16
      %v711 = vrot.slane %v709, 6
      %v712 = vshll.u32 %v666, 16
      %v714 = vrot.slane %v712, 7
      %v715 = vor.u32 %v711, %v714
      %v716 = vrot.slane %v715, 2
      %v718 = vshll.u32 %v669, 16
      %v720 = vrot.slane %v718, 7
      %v721 = vsel %vm443, %v716, %v720
      %s722 = scalar_lea.vmem %s2, 48
      %v723 = vld [vmem:[%s722] sm:$0xf]
      %v724 = vld [vmem:[%s722 + $0x4] sm:$0xf]
      %v725 = vld [vmem:[%s722 + $0x8] sm:$0xf]
      %v726 = vld [vmem:[%s722 + $0xc] sm:$0xf]
      %728 = vst [vmem:[#allocation1] ss:$4 sm:$0xff] %v682
      %s730 = scalar_lea.vmem [#allocation1], 1
      %731 = vst [vmem:[%s730] ss:$4 sm:$0xff] %v695
      %s733 = scalar_lea.vmem [#allocation1], 2
      %734 = vst [vmem:[%s733] ss:$4 sm:$0xff] %v708
      %s736 = scalar_lea.vmem [#allocation1], 3
      %737 = vst [vmem:[%s736] ss:$4 sm:$0xff] %v721
      %v738 = vld.sshfl [vmem:[#allocation1] sm:$0xff pattern:$0x73625140]
      %v743 = vunpack.c.l.b16 %v723
      %v744 = vunpack.c.l.b16 %v724
      %v745 = vunpack.c.l.b16 %v725
      %v746 = vunpack.c.l.b16 %v726
      %v747 = vpack.c.b16 %v744, %v743
      %v748 = vpack.c.b16 %v746, %v745
      %v751 = vsel %vm525, %v738, 0
      %753 = vmatpush.bf16.msra.mxu0 0
      %754 = vmatpush.bf16.msra.mxu0 0
      %755 = vmatpush.bf16.msra.mxu0 0
      %756 = vmatpush.bf16.msra.mxu0 0
      %757 = vmatpush.bf16.msra.mxu0 0
      %758 = vmatpush.bf16.msra.mxu0 0
      %759 = vmatpush.bf16.msra.mxu0 %v748
      %760 = vmatpush.bf16.msra.mxu0 %v747
      %761 = vmatmul.bf16.gmra.mxu0 %v751
      %v762 = vpop.f32.mrf.mxu0
      %v763 = vadd.f32 0.0, %v762
      %v764 = vpop.f32.mrf.mxu0
      %v765 = vadd.f32 0.0, %v764
      %766 = vdwg.mxu0
      %v767 = vadd.f32 %v632, %v763
      %v768 = vadd.f32 %v633, %v765
      %v771 = vrot.slane %v767, 4
      %v772 = vrot.slane %v768, 4
      %v775 = vpack.c.bf16 %v767, %v767
      %v776 = vpack.c.bf16 %v771, %v771
      %v777 = vpack.c.bf16 %v768, %v768
      %v778 = vpack.c.bf16 %v772, %v772
      %vm779 = vcmask 123904
      %780 = vst.msk [vmem:[%s350] sm:$0x3] %vm779, %v775
      %781 = vst.msk [vmem:[%s350 + $0x2] sm:$0x3] %vm779, %v776
      %782 = vst.msk [vmem:[%s350 + $0x4] sm:$0x3] %vm779, %v777
      %783 = vst.msk [vmem:[%s350 + $0x6] sm:$0x3] %vm779, %v778
      %vm784 = vcmask 130048
      %v785 = vsel %vm784, %v767, 0.0
      %v786 = vsel %vm784, %v768, 0.0
      %v787 = vadd.f32 %v785, %v786
      %v788 = vrot.slane %v787, 4
      %v789 = vadd.f32 %v787, %v788
      %v790 = vrot.slane %v789, 2
      %v791 = vadd.f32 %v789, %v790
      %v792 = vrot.slane %v791, 1
      %v793 = vadd.f32 %v791, %v792
      %v794 = vmul.f32 %v767, %v767
      %v795 = vmul.f32 %v768, %v768
      %v796 = vsel %vm784, %v794, 0.0
      %v797 = vsel %vm784, %v795, 0.0
      %v798 = vadd.f32 %v796, %v797
      %v799 = vrot.slane %v798, 4
      %v800 = vadd.f32 %v798, %v799
      %v801 = vrot.slane %v800, 2
      %v802 = vadd.f32 %v800, %v801
      %v803 = vrot.slane %v802, 1
      %v804 = vadd.f32 %v802, %v803
      %805 = vst.msk [vmem:[%s358] sm:$0xff] %vm784, %v793
      %806 = vst.msk [vmem:[%s365] sm:$0xff] %vm784, %v804
      %s807 = smul.u32 4, %s22
      %p808 = scmp.lt.s32.totalorder %s21, 1
      %s809 = scalar_select %p808, %s21, 1
      %p810 = scmp.lt.s32.totalorder %s807, 3
      %s811 = scalar_select %p810, %s807, 3
      %s812 = smul.addr %s809, 4
      %s813 = sadd.s32 %s811, %s812
      %s814 = smul.addr %s813, 2
      %s815 = scalar_lea.vmem %s3, %s814
      %p816 = scmp.lt.s32.totalorder %s21, 1
      %s817 = scalar_select %p816, %s21, 1
      %p818 = scmp.lt.s32.totalorder %s22, 0
      %s819 = scalar_select %p818, %s22, 0
      %s820 = sadd.s32 %s819, %s817
      %s821 = smul.addr %s820, 8
      %s822 = scalar_lea.vmem %s4, %s821
      %p823 = scmp.lt.s32.totalorder %s21, 1
      %s824 = scalar_select %p823, %s21, 1
      %p825 = scmp.lt.s32.totalorder %s22, 0
      %s826 = scalar_select %p825, %s22, 0
      %s827 = sadd.s32 %s826, %s824
      %s828 = smul.addr %s827, 8
      %s829 = scalar_lea.vmem %s5, %s828
      // Predicated region
      $region33: #{_lambda_.6} parent=31 // pred_check
        %p830 = pneg %p130
      $region34: #{_lambda_.6} parent=31 // pred_check_branch
        %832 = sbr.rel (%p830) target = $region36
      $region35: #{_lambda_.6} parent=31 // pred_region
        %s833 = smul.u32 4, %s22
      $region36: #{_lambda_.6} parent=31 // pred_fallthru
        _
      // Predicated region
      $region37: #{_lambda_.6} parent=31 // pred_check
        %p834 = pneg %p158
      $region38: #{_lambda_.6} parent=31 // pred_check_branch
        %836 = sbr.rel (%p834) target = $region40
      $region39: #{_lambda_.6} parent=31 // pred_region
        _
      $region40: #{_lambda_.6} parent=31 // pred_fallthru
        _
      // Predicated region
      $region41: #{_lambda_.6} parent=31 // pred_check
        %p837 = pneg %p186
      $region42: #{_lambda_.6} parent=31 // pred_check_branch
        %839 = sbr.rel (%p837) target = $region44
      $region43: #{_lambda_.6} parent=31 // pred_region
        _
      $region44: #{_lambda_.6} parent=31 // pred_fallthru
        _
    $region32: #{_lambda_.6} parent=5 // pred_fallthru
      _
    %p840 = scmp.le.s32.totalorder 2, %s12
    // Predicated region
    $region45: #{_lambda_.6} parent=5 // pred_check
      %p841 = pneg %p840
    $region46: #{_lambda_.6} parent=5 // pred_check_branch
      %843 = sbr.rel (%p841) target = $region48
    $region47: #{_lambda_.6} parent=5 // pred_region
      %s844 = ssub.s32 %s12, 2
      // Predicated region
      $region49: #{_lambda_.6} parent=47 // pred_check
        %p845 = pneg %p136
      $region50: #{_lambda_.6} parent=47 // pred_check_branch
        %847 = sbr.rel (%p845) target = $region52
      $region51: #{_lambda_.6} parent=47 // pred_region
        %s848 = smul.u32 4, %s24
        %p849 = scmp.lt.s32.totalorder %s23, 1
        %s850 = scalar_select %p849, %s23, 1
        %p851 = scmp.lt.s32.totalorder %s848, 3
        %s852 = scalar_select %p851, %s848, 3
        %s853 = smul.addr %s850, 4
        %s854 = sadd.s32 %s852, %s853
        %s855 = smul.addr %s854, 2
        %s856 = scalar_lea.vmem %s3, %s855
      $region52: #{_lambda_.6} parent=47 // pred_fallthru
        _
      // Predicated region
      $region53: #{_lambda_.6} parent=47 // pred_check
        %p857 = pneg %p164
      $region54: #{_lambda_.6} parent=47 // pred_check_branch
        %859 = sbr.rel (%p857) target = $region56
      $region55: #{_lambda_.6} parent=47 // pred_region
        %p860 = scmp.lt.s32.totalorder %s23, 1
        %s861 = scalar_select %p860, %s23, 1
        %p862 = scmp.lt.s32.totalorder %s24, 0
        %s863 = scalar_select %p862, %s24, 0
        %s864 = sadd.s32 %s863, %s861
        %s865 = smul.addr %s864, 8
        %s866 = scalar_lea.vmem %s4, %s865
      $region56: #{_lambda_.6} parent=47 // pred_fallthru
        _
      // Predicated region
      $region57: #{_lambda_.6} parent=47 // pred_check
        %p867 = pneg %p192
      $region58: #{_lambda_.6} parent=47 // pred_check_branch
        %869 = sbr.rel (%p867) target = $region60
      $region59: #{_lambda_.6} parent=47 // pred_region
        %p870 = scmp.lt.s32.totalorder %s23, 1
        %s871 = scalar_select %p870, %s23, 1
        %p872 = scmp.lt.s32.totalorder %s24, 0
        %s873 = scalar_select %p872, %s24, 0
        %s874 = sadd.s32 %s873, %s871
        %s875 = smul.addr %s874, 8
        %s876 = scalar_lea.vmem %s5, %s875
      $region60: #{_lambda_.6} parent=47 // pred_fallthru
        _
    $region48: #{_lambda_.6} parent=5 // pred_fallthru
      _
  $region6: #{_lambda_.6} parent=0 // loop_footer
    %s16 = sadd.s32 1, %s12
  $region7: #{_lambda_.6} parent=0 // loop_footer_branch
    %11 = sbr.rel target = $region3
  $region8: #{_lambda_.6} parent=0 // loop_exit
    _

// kernel: _lambda_.8
$region0: #{_lambda_.8}
  #allocation0 [shape = 'u32[]', space=smem, size = 0x4, offset = 0x4, fixed_abs, tag = 'smem constant byte address 0x4 - core index']
  #allocation1 [shape = 'u32[72,128]{1,0:T(1,128)}', space=vmem, size = 0x9000, scoped, tag = 'internal scratch']
  #allocation2 [shape = 'bf16[3,3,64]{2,1,0:T(4,128)(2,1)}', space=vmem, size = 0xc00, scoped, tag = 'scratch operand']
  %s0 = inlined_call_operand.vmem [shape: bf16[2,3,3,64], index: 0, kind: input, shape index: {}, may-alias: {0,1}]
  %s1 = inlined_call_operand.vmem [shape: bf16[2,3,3,64], index: 1, kind: input, shape index: {}, may-alias: {0,1}]
  %s2 = inlined_call_operand.vmem [shape: bf16[4,64,32], index: 2, kind: input, shape index: {}]
  %s3 = inlined_call_operand.vmem [shape: bf16[2,2,2,32], index: 3, kind: output, shape index: {0}]
  %s4 = inlined_call_operand.vmem [shape: f32[2,1,8,32], index: 4, kind: output, shape index: {1}]
  %s5 = inlined_call_operand.vmem [shape: f32[2,1,8,32], index: 5, kind: output, shape index: {2}]
  %6 = xla_tuple %s3, %s4, %s5
  %s7 = sld [smem:[#allocation0]]
  $region61: #{_lambda_.8} parent=0
    _
  %s9 = ssub.s32 1, %s7
  %s10 = scalar_select 0, %s9, %s7
  loop: start=0, step=1, limit=4
  $region2: #{_lambda_.8} parent=0 // loop_pre_header
    _
  $region3: #{_lambda_.8} parent=0 // loop_header
    %s12 = sphi 0, %s16
    %p13 = scmp.ge.s32.totalorder %s12, 4
    %s19 = sphi 0, %s31
    %s20 = sphi 0, %s27
    %s21 = sphi 0, %s19
    %s22 = sphi 0, %s20
    %s23 = sphi 0, %s21
    %s24 = sphi 0, %s22
    %s36 = sphi 0, %s38
    %s39 = sphi 0, %s36
    %s40 = sphi 0, %s39
    %s56 = sphi 0, %s40
    %s68 = sphi 0, %s70
    %s71 = sphi 0, %s68
    %s72 = sphi 0, %s71
    %s88 = sphi 0, %s72
    %s92 = sphi 0, %s92
    %s94 = sphi 0, %s92
    %s95 = sphi 0, %s94
    %s109 = sphi 0, %s95
    %s117 = sphi 0, %s119
    %s120 = sphi 0, %s117
    %s121 = sphi 0, %s120
    %s137 = sphi 0, %s121
    %s145 = sphi 0, %s147
    %s148 = sphi 0, %s145
    %s149 = sphi 0, %s148
    %s165 = sphi 0, %s149
    %s173 = sphi 0, %s175
    %s176 = sphi 0, %s173
    %s177 = sphi 0, %s176
    %s193 = sphi 0, %s177
  $region4: #{_lambda_.8} parent=0 // loop_header_branch
    %15 = sbr.rel (%p13) target = $region8
  $region5: #{_lambda_.8} parent=0 // loop_body
    %s17 = ssub.s32 %s12, 1
    %s18 = ssub.s32 %s12, 2
    %s25 = sadd.s32 1, %s20
    %p26 = scmp.ge.s32.totalorder %s25, 1
    %s27 = scalar_select %p26, 0, %s25
    %s28 = sadd.s32 1, %s19
    %s29 = scalar_select %p26, %s28, %s19
    %p30 = scmp.ge.s32.totalorder %s29, 2
    %s31 = scalar_select %p30, 0, %s29
    %s32 = ssub.s32 %s19, %s31
    %s33 = ssub.s32 %s20, %s27
    %s34 = sor.u32 %s32, %s33
    %p35 = scmp.eq.s32.totalorder %s34, 0
    %s37 = sadd.s32 %s36, 1
    %s38 = scalar_select %p35, %s36, %s37
    %p41 = pneg %p35
    %p42 = scmp.eq.s32.totalorder %s12, 1
    %p43 = por %p41, %p42
    %p44 = scmp.ne.s32.totalorder %s36, %s39
    %p45 = scmp.eq.s32.totalorder %s12, 0
    %p46 = por %p44, %p45
    %p47 = scmp.ne.s32.totalorder %s36, %s39
    %p48 = scmp.eq.s32.totalorder %s17, 1
    %p49 = por %p47, %p48
    %p50 = scmp.ne.s32.totalorder %s39, %s40
    %p51 = scmp.eq.s32.totalorder %s17, 0
    %p52 = por %p50, %p51
    %p53 = scmp.ne.s32.totalorder %s39, %s40
    %p54 = scmp.eq.s32.totalorder %s18, 1
    %p55 = por %p53, %p54
    %p57 = scmp.ne.s32.totalorder %s40, %s56
    %p58 = scmp.eq.s32.totalorder %s18, 0
    %p59 = por %p57, %p58
    %s60 = sadd.s32 %s20, 1
    %s61 = smul.u32 %s60, 2
    %s62 = sadd.s32 %s27, 1
    %s63 = smul.u32 %s62, 2
    %s64 = ssub.s32 %s19, %s31
    %s65 = ssub.s32 %s61, %s63
    %s66 = sor.u32 %s64, %s65
    %p67 = scmp.eq.s32.totalorder %s66, 0
    %s69 = sadd.s32 %s68, 1
    %s70 = scalar_select %p67, %s68, %s69
    %p73 = pneg %p67
    %p74 = scmp.eq.s32.totalorder %s12, 1
    %p75 = por %p73, %p74
    %p76 = scmp.ne.s32.totalorder %s68, %s71
    %p77 = scmp.eq.s32.totalorder %s12, 0
    %p78 = por %p76, %p77
    %p79 = scmp.ne.s32.totalorder %s68, %s71
    %p80 = scmp.eq.s32.totalorder %s17, 1
    %p81 = por %p79, %p80
    %p82 = scmp.ne.s32.totalorder %s71, %s72
    %p83 = scmp.eq.s32.totalorder %s17, 0
    %p84 = por %p82, %p83
    %p85 = scmp.ne.s32.totalorder %s71, %s72
    %p86 = scmp.eq.s32.totalorder %s18, 1
    %p87 = por %p85, %p86
    %p89 = scmp.ne.s32.totalorder %s72, %s88
    %p90 = scmp.eq.s32.totalorder %s18, 0
    %p91 = por %p89, %p90
    %s93 = sadd.s32 %s92, 1
    %p96 = scmp.eq.s32.totalorder %s12, 1
    %p97 = scmp.ne.s32.totalorder %s92, %s94
    %p98 = scmp.eq.s32.totalorder %s12, 0
    %p99 = por %p97, %p98
    %p100 = scmp.ne.s32.totalorder %s92, %s94
    %p101 = scmp.eq.s32.totalorder %s17, 1
    %p102 = por %p100, %p101
    %p103 = scmp.ne.s32.totalorder %s94, %s95
    %p104 = scmp.eq.s32.totalorder %s17, 0
    %p105 = por %p103, %p104
    %p106 = scmp.ne.s32.totalorder %s94, %s95
    %p107 = scmp.eq.s32.totalorder %s18, 1
    %p108 = por %p106, %p107
    %p110 = scmp.ne.s32.totalorder %s95, %s109
    %p111 = scmp.eq.s32.totalorder %s18, 0
    %p112 = por %p110, %p111
    %s113 = ssub.s32 %s19, %s31
    %s114 = ssub.s32 %s20, %s27
    %s115 = sor.u32 %s113, %s114
    %p116 = scmp.eq.s32.totalorder %s115, 0
    %s118 = sadd.s32 %s117, 1
    %s119 = scalar_select %p116, %s117, %s118
    %p122 = pneg %p116
    %p123 = scmp.eq.s32.totalorder %s12, 1
    %p124 = por %p122, %p123
    %p125 = scmp.ne.s32.totalorder %s117, %s120
    %p126 = scmp.eq.s32.totalorder %s12, 0
    %p127 = por %p125, %p126
    %p128 = scmp.ne.s32.totalorder %s117, %s120
    %p129 = scmp.eq.s32.totalorder %s17, 1
    %p130 = por %p128, %p129
    %p131 = scmp.ne.s32.totalorder %s120, %s121
    %p132 = scmp.eq.s32.totalorder %s17, 0
    %p133 = por %p131, %p132
    %p134 = scmp.ne.s32.totalorder %s120, %s121
    %p135 = scmp.eq.s32.totalorder %s18, 1
    %p136 = por %p134, %p135
    %p138 = scmp.ne.s32.totalorder %s121, %s137
    %p139 = scmp.eq.s32.totalorder %s18, 0
    %p140 = por %p138, %p139
    %s141 = ssub.s32 %s19, %s31
    %s142 = ssub.s32 %s20, %s27
    %s143 = sor.u32 %s141, %s142
    %p144 = scmp.eq.s32.totalorder %s143, 0
    %s146 = sadd.s32 %s145, 1
    %s147 = scalar_select %p144, %s145, %s146
    %p150 = pneg %p144
    %p151 = scmp.eq.s32.totalorder %s12, 1
    %p152 = por %p150, %p151
    %p153 = scmp.ne.s32.totalorder %s145, %s148
    %p154 = scmp.eq.s32.totalorder %s12, 0
    %p155 = por %p153, %p154
    %p156 = scmp.ne.s32.totalorder %s145, %s148
    %p157 = scmp.eq.s32.totalorder %s17, 1
    %p158 = por %p156, %p157
    %p159 = scmp.ne.s32.totalorder %s148, %s149
    %p160 = scmp.eq.s32.totalorder %s17, 0
    %p161 = por %p159, %p160
    %p162 = scmp.ne.s32.totalorder %s148, %s149
    %p163 = scmp.eq.s32.totalorder %s18, 1
    %p164 = por %p162, %p163
    %p166 = scmp.ne.s32.totalorder %s149, %s165
    %p167 = scmp.eq.s32.totalorder %s18, 0
    %p168 = por %p166, %p167
    %s169 = ssub.s32 %s19, %s31
    %s170 = ssub.s32 %s20, %s27
    %s171 = sor.u32 %s169, %s170
    %p172 = scmp.eq.s32.totalorder %s171, 0
    %s174 = sadd.s32 %s173, 1
    %s175 = scalar_select %p172, %s173, %s174
    %p178 = pneg %p172
    %p179 = scmp.eq.s32.totalorder %s12, 1
    %p180 = por %p178, %p179
    %p181 = scmp.ne.s32.totalorder %s173, %s176
    %p182 = scmp.eq.s32.totalorder %s12, 0
    %p183 = por %p181, %p182
    %p184 = scmp.ne.s32.totalorder %s173, %s176
    %p185 = scmp.eq.s32.totalorder %s17, 1
    %p186 = por %p184, %p185
    %p187 = scmp.ne.s32.totalorder %s176, %s177
    %p188 = scmp.eq.s32.totalorder %s17, 0
    %p189 = por %p187, %p188
    %p190 = scmp.ne.s32.totalorder %s176, %s177
    %p191 = scmp.eq.s32.totalorder %s18, 1
    %p192 = por %p190, %p191
    %p194 = scmp.ne.s32.totalorder %s177, %s193
    %p195 = scmp.eq.s32.totalorder %s18, 0
    %p196 = por %p194, %p195
    %p197 = scmp.le.s32.totalorder 1, %s12
    %p198 = scmp.lt.s32.totalorder %s12, 3
    %p199 = pnand %p197, %p198
    %p200 = pneg %p199
    // Predicated region
    $region9: #{_lambda_.8} parent=5 // pred_check
      _
    $region10: #{_lambda_.8} parent=5 // pred_check_branch
      %202 = sbr.rel (%p199) target = $region12
    $region11: #{_lambda_.8} parent=5 // pred_region
      %s203 = ssub.s32 %s12, 1
      // Predicated region
      $region13: #{_lambda_.8} parent=11 // pred_check
        %p204 = pneg %p105
      $region14: #{_lambda_.8} parent=11 // pred_check_branch
        %206 = sbr.rel (%p204) target = $region16
      $region15: #{_lambda_.8} parent=11 // pred_region
        _
      $region16: #{_lambda_.8} parent=11 // pred_fallthru
        _
    $region12: #{_lambda_.8} parent=5 // pred_fallthru
      _
    %p207 = scmp.lt.s32.totalorder %s12, 2
    // Predicated region
    $region17: #{_lambda_.8} parent=5 // pred_check
      %p208 = pneg %p207
    $region18: #{_lambda_.8} parent=5 // pred_check_branch
      %210 = sbr.rel (%p208) target = $region20
    $region19: #{_lambda_.8} parent=5 // pred_region
      // Predicated region
      $region21: #{_lambda_.8} parent=19 // pred_check
        %p211 = pneg %p46
      $region22: #{_lambda_.8} parent=19 // pred_check_branch
        %213 = sbr.rel (%p211) target = $region24
      $region23: #{_lambda_.8} parent=19 // pred_region
        %s214 = smul.u32 2, %s20
        %s215 = ssub.s32 3, %s214
        %p216 = scmp.lt.s32.totalorder %s215, 2
        %s217 = scalar_select %p216, %s215, 2
        %s218 = smul.u32 2, %s217
        %p219 = scmp.lt.s32.totalorder %s19, 1
        %s220 = scalar_select %p219, %s19, 1
        %p221 = scmp.lt.s32.totalorder %s214, 2
        %s222 = scalar_select %p221, %s214, 2
        %s223 = smul.addr %s220, 3
        %s224 = sadd.s32 %s222, %s223
        %s225 = smul.addr %s224, 2
        %s226 = scalar_lea.vmem %s0, %s225
        %s227 = smul.u32 2, %s20
        %s228 = ssub.s32 3, %s227
        %p229 = scmp.lt.s32.totalorder %s228, 2
        %s230 = scalar_select %p229, %s228, 2
        %s231 = smul.u32 2, %s230
      $region24: #{_lambda_.8} parent=19 // pred_fallthru
        _
      // Predicated region
      $region25: #{_lambda_.8} parent=19 // pred_check
        %p232 = pneg %p78
      $region26: #{_lambda_.8} parent=19 // pred_check_branch
        %234 = sbr.rel (%p232) target = $region28
      $region27: #{_lambda_.8} parent=19 // pred_region
        %s235 = sadd.s32 %s20, 1
        %s236 = smul.u32 %s235, 2
        %p237 = scmp.lt.s32.totalorder %s19, 1
        %s238 = scalar_select %p237, %s19, 1
        %p239 = scmp.lt.s32.totalorder %s236, 2
        %s240 = scalar_select %p239, %s236, 2
        %s241 = smul.addr %s238, 3
        %s242 = sadd.s32 %s240, %s241
        %s243 = smul.addr %s242, 2
        %s244 = scalar_lea.vmem %s1, %s243
        %s245 = sadd.s32 %s20, 1
        %s246 = smul.u32 %s245, 2
      $region28: #{_lambda_.8} parent=19 // pred_fallthru
        _
    $region20: #{_lambda_.8} parent=5 // pred_fallthru
      _
    %p247 = scmp.le.s32.totalorder 1, %s12
    %p248 = scmp.lt.s32.totalorder %s12, 3
    %p249 = pnand %p247, %p248
    %p250 = pneg %p249
    // Predicated region
    $region29: #{_lambda_.8} parent=5 // pred_check
      _
    $region30: #{_lambda_.8} parent=5 // pred_check_branch
      %252 = sbr.rel (%p249) target = $region32
    $region31: #{_lambda_.8} parent=5 // pred_region
      %s253 = ssub.s32 %s12, 1
      %s254 = smul.u32 2, %s22
      %s255 = ssub.s32 3, %s254
      %p256 = scmp.lt.s32.totalorder %s255, 2
      %s257 = scalar_select %p256, %s255, 2
      %s258 = smul.u32 2, %s257
      %p259 = scmp.lt.s32.totalorder %s21, 1
      %s260 = scalar_select %p259, %s21, 1
      %p261 = scmp.lt.s32.totalorder %s254, 2
      %s262 = scalar_select %p261, %s254, 2
      %s263 = smul.addr %s260, 3
      %s264 = sadd.s32 %s262, %s263
      %s265 = smul.addr %s264, 2
      %s266 = scalar_lea.vmem %s0, %s265
      %p267 = pneg %p52
      %p268 = pneg %p49
      %s269 = sadd.s32 %s22, 1
      %s270 = smul.u32 %s269, 2
      %p271 = scmp.lt.s32.totalorder %s21, 1
      %s272 = scalar_select %p271, %s21, 1
      %p273 = scmp.lt.s32.totalorder %s270, 2
      %s274 = scalar_select %p273, %s270, 2
      %s275 = smul.addr %s272, 3
      %s276 = sadd.s32 %s274, %s275
      %s277 = smul.addr %s276, 2
      %s278 = scalar_lea.vmem %s1, %s277
      %p279 = pneg %p84
      %p280 = pneg %p81
      %p281 = pneg %p105
      %p282 = pneg %p102
      %p283 = pneg %p133
      %p284 = pneg %p130
      %s285 = smul.u32 2, %s22
      %p286 = scmp.lt.s32.totalorder %s21, 1
      %s287 = scalar_select %p286, %s21, 1
      %p288 = scmp.lt.s32.totalorder %s285, 1
      %s289 = scalar_select %p288, %s285, 1
      %s290 = smul.addr %s287, 2
      %s291 = sadd.s32 %s289, %s290
      %s292 = scalar_lea.vmem %s3, %s291
      %p293 = pneg %p161
      %p294 = pneg %p158
      %p295 = scmp.lt.s32.totalorder %s21, 1
      %s296 = scalar_select %p295, %s21, 1
      %p297 = scmp.lt.s32.totalorder %s22, 0
      %s298 = scalar_select %p297, %s22, 0
      %s299 = sadd.s32 %s298, %s296
      %s300 = smul.addr %s299, 8
      %s301 = scalar_lea.vmem %s4, %s300
      %p302 = pneg %p189
      %p303 = pneg %p186
      %p304 = scmp.lt.s32.totalorder %s21, 1
      %s305 = scalar_select %p304, %s21, 1
      %p306 = scmp.lt.s32.totalorder %s22, 0
      %s307 = scalar_select %p306, %s22, 0
      %s308 = sadd.s32 %s307, %s305
      %s309 = smul.addr %s308, 8
      %s310 = scalar_lea.vmem %s5, %s309
      %s311 = smul.u32 2, %s22
      %s312 = ssub.s32 3, %s311
      %p313 = scmp.lt.s32.totalorder %s312, 2
      %s314 = scalar_select %p313, %s312, 2
      %s315 = smul.u32 2, %s314
      %p316 = scmp.lt.s32.totalorder %s21, 1
      %s317 = scalar_select %p316, %s21, 1
      %p318 = scmp.lt.s32.totalorder %s311, 2
      %s319 = scalar_select %p318, %s311, 2
      %s320 = smul.addr %s317, 3
      %s321 = sadd.s32 %s319, %s320
      %s322 = smul.addr %s321, 2
      %s323 = scalar_lea.vmem %s0, %s322
      %s324 = smul.u32 2, %s22
      %s325 = ssub.s32 3, %s324
      %p326 = scmp.lt.s32.totalorder %s325, 2
      %s327 = scalar_select %p326, %s325, 2
      %s328 = smul.u32 2, %s327
      %s329 = sadd.s32 %s22, 1
      %s330 = smul.u32 %s329, 2
      %p331 = scmp.lt.s32.totalorder %s21, 1
      %s332 = scalar_select %p331, %s21, 1
      %p333 = scmp.lt.s32.totalorder %s330, 2
      %s334 = scalar_select %p333, %s330, 2
      %s335 = smul.addr %s332, 3
      %s336 = sadd.s32 %s334, %s335
      %s337 = smul.addr %s336, 2
      %s338 = scalar_lea.vmem %s1, %s337
      %s339 = sadd.s32 %s22, 1
      %s340 = smul.u32 %s339, 2
      %s341 = smul.u32 2, %s22
      %p342 = scmp.lt.s32.totalorder %s21, 1
      %s343 = scalar_select %p342, %s21, 1
      %p344 = scmp.lt.s32.totalorder %s341, 1
      %s345 = scalar_select %p344, %s341, 1
      %s346 = smul.addr %s343, 2
      %s347 = sadd.s32 %s345, %s346
      %s348 = scalar_lea.vmem %s3, %s347
      %s349 = smul.u32 2, %s22
      %p350 = scmp.lt.s32.totalorder %s21, 1
      %s351 = scalar_select %p350, %s21, 1
      %p352 = scmp.lt.s32.totalorder %s22, 0
      %s353 = scalar_select %p352, %s22, 0
      %s354 = sadd.s32 %s353, %s351
      %s355 = smul.addr %s354, 8
      %s356 = scalar_lea.vmem %s4, %s355
      %p357 = scmp.lt.s32.totalorder %s21, 1
      %s358 = scalar_select %p357, %s21, 1
      %p359 = scmp.lt.s32.totalorder %s22, 0
      %s360 = scalar_select %p359, %s22, 0
      %s361 = sadd.s32 %s360, %s358
      %s362 = smul.addr %s361, 8
      %s363 = scalar_lea.vmem %s5, %s362
      %v365 = vld [vmem:[%s323] sm:$0x3]
      %v366 = vld [vmem:[%s323 + $0x2] sm:$0x3]
      %vm367 = vcmask 517120
      %vm368 = vsmask.f32 1280
      %vm369 = vmand %vm367, %vm368
      %v370 = vld [vmem:[#allocation2] sm:$0x3]
      %v371 = vsel %vm369, %v365, %v370
      %372 = vst [vmem:[#allocation2] sm:$0x3] %v371
      %v373 = vld [vmem:[#allocation2 + $0x2] sm:$0x3]
      %v374 = vsel %vm369, %v366, %v373
      %375 = vst [vmem:[#allocation2 + $0x2] sm:$0x3] %v374
      %v376 = vld [vmem:[%s338] sm:$0x3]
      %s377 = scalar_lea.vmem [#allocation2], 4
      %v378 = vld [vmem:[%s377] sm:$0x3]
      %v379 = vsel %vm369, %v376, %v378
      %380 = vst [vmem:[%s377] sm:$0x3] %v379
      %v381 = vld [vmem:[#allocation2] sm:$0x1]
      %v382 = vld [vmem:[#allocation2 + $0x2] sm:$0x1]
      %v383 = vld [vmem:[%s2] sm:$0xf]
      %v384 = vld [vmem:[%s2 + $0x4] sm:$0xf]
      %v385 = vld [vmem:[%s2 + $0x8] sm:$0xf]
      %v386 = vld [vmem:[%s2 + $0xc] sm:$0xf]
      %v387 = vld [vmem:[%s2 + $0x10] sm:$0xf]
      %v388 = vld [vmem:[%s2 + $0x14] sm:$0xf]
      %v389 = vld [vmem:[%s2 + $0x18] sm:$0xf]
      %v390 = vld [vmem:[%s2 + $0x1c] sm:$0xf]
      %v391 = vld [vmem:[#allocation2] sm:$0x3]
      %v392 = vld [vmem:[#allocation2 + $0x2] sm:$0x3]
      %v395 = vrot.slane %v391, 1
      %v396 = vrot.slane %v391, 2
      %v397 = vrot.slane %v391, 3
      %v398 = vrot.slane %v392, 1
      %v399 = vrot.slane %v392, 2
      %v400 = vrot.slane %v392, 3
      %vm401 = vcmask 1040384
      %v404 = vsel %vm401, %v391, %v395
      %vm405 = vcmask 1042434
      %v408 = vsel %vm405, %v396, %v397
      %vm409 = vcmask 1041408
      %v410 = vsel %vm409, %v404, %v408
      %vm411 = vcmask 1041409
      %v412 = vsel %vm411, %v391, %v395
      %vm413 = vcmask 1043459
      %v414 = vsel %vm413, %v396, %v397
      %vm415 = vcmask 1042433
      %v416 = vsel %vm415, %v412, %v414
      %v418 = vrot.slane %v416, 1
      %v421 = vsel %vm401, %v392, %v398
      %v424 = vsel %vm405, %v399, %v400
      %v425 = vsel %vm409, %v421, %v424
      %v426 = vsel %vm411, %v392, %v398
      %v427 = vsel %vm413, %v399, %v400
      %v428 = vsel %vm415, %v426, %v427
      %v430 = vrot.slane %v428, 1
      %vm431 = vsmask.f32 256
      %vm432 = vsmask.f32 1284
      %vm433 = vmor %vm431, %vm432
      %vm434 = vsmask.f32 2312
      %vm435 = vmor %vm433, %vm434
      %vm436 = vsmask.f32 3340
      %vm437 = vmor %vm435, %vm436
      %vm438 = vsmask.f32 4368
      %vm439 = vmor %vm437, %vm438
      %vm440 = vsmask.f32 5396
      %vm441 = vmor %vm439, %vm440
      %vm442 = vsmask.f32 6424
      %vm443 = vmor %vm441, %vm442
      %vm444 = vsmask.f32 7452
      %vm445 = vmor %vm443, %vm444
      %v446 = vshrl.u32 %v410, 16
      %v448 = vrot.slane %v446, 7
      %v449 = vrot.slane %v448, 1
      %v451 = vshll.u32 %v418, 16
      %v453 = vsel %vm445, %v449, %v451
      %v454 = vshrl.u32 %v425, 16
      %v456 = vrot.slane %v454, 7
      %v457 = vrot.slane %v456, 1
      %v459 = vshll.u32 %v430, 16
      %v461 = vsel %vm445, %v457, %v459
      %s462 = scalar_lea.vmem %s2, 32
      %v463 = vld [vmem:[%s462] sm:$0xf]
      %v464 = vld [vmem:[%s462 + $0x4] sm:$0xf]
      %v465 = vld [vmem:[%s462 + $0x8] sm:$0xf]
      %v466 = vld [vmem:[%s462 + $0xc] sm:$0xf]
      %v467 = vld [vmem:[%s462 + $0x10] sm:$0xf]
      %v468 = vld [vmem:[%s462 + $0x14] sm:$0xf]
      %v469 = vld [vmem:[%s462 + $0x18] sm:$0xf]
      %v470 = vld [vmem:[%s462 + $0x1c] sm:$0xf]
      %472 = vst [vmem:[#allocation1] ss:$9 sm:$0xff] %v453
      %s474 = scalar_lea.vmem [#allocation1], 1
      %475 = vst [vmem:[%s474] ss:$9 sm:$0xff] %v461
      %v476 = vld [vmem:[#allocation1] sm:$0xff]
      %v485 = vunpack.c.l.b16 %v463
      %v486 = vunpack.c.l.b16 %v464
      %v487 = vunpack.c.l.b16 %v465
      %v488 = vunpack.c.l.b16 %v466
      %v489 = vunpack.c.l.b16 %v467
      %v490 = vunpack.c.l.b16 %v468
      %v491 = vunpack.c.l.b16 %v469
      %v492 = vunpack.c.l.b16 %v470
      %v493 = vpack.c.b16 %v486, %v485
      %v494 = vpack.c.b16 %v488, %v487
      %v495 = vpack.c.b16 %v490, %v489
      %v496 = vpack.c.b16 %v492, %v491
      %vm501 = vcmask 523264
      %v502 = vsel %vm501, %v476, 0
      %504 = vmatpush.bf16.msra.mxu0 0
      %505 = vmatpush.bf16.msra.mxu0 0
      %506 = vmatpush.bf16.msra.mxu0 0
      %507 = vmatpush.bf16.msra.mxu0 0
      %508 = vmatpush.bf16.msra.mxu0 %v496
      %509 = vmatpush.bf16.msra.mxu0 %v495
      %510 = vmatpush.bf16.msra.mxu0 %v494
      %511 = vmatpush.bf16.msra.mxu0 %v493
      %512 = vmatmul.bf16.gmra.mxu0 %v502
      %v513 = vpop.f32.mrf.mxu0
      %v514 = vadd.f32 0.0, %v513
      %v515 = vpop.f32.mrf.mxu0
      %516 = vdwg.mxu0
      %518 = vst [vmem:[#allocation1] ss:$9 sm:$0xff] %v381
      %s520 = scalar_lea.vmem [#allocation1], 1
      %521 = vst [vmem:[%s520] ss:$9 sm:$0xff] %v382
      %v522 = vld [vmem:[#allocation1] sm:$0xff]
      %v531 = vunpack.c.l.b16 %v383
      %v532 = vunpack.c.l.b16 %v384
      %v533 = vunpack.c.l.b16 %v385
      %v534 = vunpack.c.l.b16 %v386
      %v535 = vunpack.c.l.b16 %v387
      %v536 = vunpack.c.l.b16 %v388
      %v537 = vunpack.c.l.b16 %v389
      %v538 = vunpack.c.l.b16 %v390
      %v539 = vpack.c.b16 %v532, %v531
      %v540 = vpack.c.b16 %v534, %v533
      %v541 = vpack.c.b16 %v536, %v535
      %v542 = vpack.c.b16 %v538, %v537
      %v547 = vsel %vm501, %v522, 0
      %549 = vmatpush.bf16.msra.mxu0 0
      %550 = vmatpush.bf16.msra.mxu0 0
      %551 = vmatpush.bf16.msra.mxu0 0
      %552 = vmatpush.bf16.msra.mxu0 0
      %553 = vmatpush.bf16.msra.mxu0 %v542
      %554 = vmatpush.bf16.msra.mxu0 %v541
      %555 = vmatpush.bf16.msra.mxu0 %v540
      %556 = vmatpush.bf16.msra.mxu0 %v539
      %557 = vmatmul.bf16.gmra.mxu0 %v547
      %v558 = vpop.f32.mrf.mxu0
      %v559 = vadd.f32 %v514, %v558
      %v560 = vpop.f32.mrf.mxu0
      %561 = vdwg.mxu0
      %s562 = scalar_lea.vmem [#allocation2], 2
      %v563 = vld [vmem:[%s562] sm:$0x1]
      %v564 = vld [vmem:[%s562 + $0x2] sm:$0x1]
      %s565 = scalar_lea.vmem %s2, 64
      %v566 = vld [vmem:[%s565] sm:$0xf]
      %v567 = vld [vmem:[%s565 + $0x4] sm:$0xf]
      %v568 = vld [vmem:[%s565 + $0x8] sm:$0xf]
      %v569 = vld [vmem:[%s565 + $0xc] sm:$0xf]
      %v570 = vld [vmem:[%s565 + $0x10] sm:$0xf]
      %v571 = vld [vmem:[%s565 + $0x14] sm:$0xf]
      %v572 = vld [vmem:[%s565 + $0x18] sm:$0xf]
      %v573 = vld [vmem:[%s565 + $0x1c] sm:$0xf]
      %575 = vst [vmem:[#allocation1] ss:$9 sm:$0xff] %v563
      %s577 = scalar_lea.vmem [#allocation1], 1
      %578 = vst [vmem:[%s577] ss:$9 sm:$0xff] %v564
      %v579 = vld [vmem:[#allocation1] sm:$0xff]
      %v588 = vunpack.c.l.b16 %v566
      %v589 = vunpack.c.l.b16 %v567
      %v590 = vunpack.c.l.b16 %v568
      %v591 = vunpack.c.l.b16 %v569
      %v592 = vunpack.c.l.b16 %v570
      %v593 = vunpack.c.l.b16 %v571
      %v594 = vunpack.c.l.b16 %v572
      %v595 = vunpack.c.l.b16 %v573
      %v596 = vpack.c.b16 %v589, %v588
      %v597 = vpack.c.b16 %v591, %v590
      %v598 = vpack.c.b16 %v593, %v592
      %v599 = vpack.c.b16 %v595, %v594
      %v604 = vsel %vm501, %v579, 0
      %606 = vmatpush.bf16.msra.mxu0 0
      %607 = vmatpush.bf16.msra.mxu0 0
      %608 = vmatpush.bf16.msra.mxu0 0
      %609 = vmatpush.bf16.msra.mxu0 0
      %610 = vmatpush.bf16.msra.mxu0 %v599
      %611 = vmatpush.bf16.msra.mxu0 %v598
      %612 = vmatpush.bf16.msra.mxu0 %v597
      %613 = vmatpush.bf16.msra.mxu0 %v596
      %614 = vmatmul.bf16.gmra.mxu0 %v604
      %v615 = vpop.f32.mrf.mxu0
      %v616 = vadd.f32 0.0, %v615
      %v617 = vpop.f32.mrf.mxu0
      %618 = vdwg.mxu0
      %v619 = vadd.f32 %v559, %v616
      %v620 = vld [vmem:[%s562] sm:$0x3]
      %v621 = vld [vmem:[%s562 + $0x2] sm:$0x3]
      %v624 = vrot.slane %v620, 1
      %v625 = vrot.slane %v620, 2
      %v626 = vrot.slane %v620, 3
      %v627 = vrot.slane %v621, 1
      %v628 = vrot.slane %v621, 2
      %v629 = vrot.slane %v621, 3
      %v632 = vsel %vm401, %v620, %v624
      %v635 = vsel %vm405, %v625, %v626
      %v636 = vsel %vm409, %v632, %v635
      %v637 = vsel %vm411, %v620, %v624
      %v638 = vsel %vm413, %v625, %v626
      %v639 = vsel %vm415, %v637, %v638
      %v641 = vrot.slane %v639, 1
      %v644 = vsel %vm401, %v621, %v627
      %v647 = vsel %vm405, %v628, %v629
      %v648 = vsel %vm409, %v644, %v647
      %v649 = vsel %vm411, %v621, %v627
      %v650 = vsel %vm413, %v628, %v629
      %v651 = vsel %vm415, %v649, %v650
      %v653 = vrot.slane %v651, 1
      %v654 = vshrl.u32 %v636, 16
      %v656 = vrot.slane %v654, 7
      %v657 = vrot.slane %v656, 1
      %v659 = vshll.u32 %v641, 16
      %v661 = vsel %vm445, %v657, %v659
      %v662 = vshrl.u32 %v648, 16
      %v664 = vrot.slane %v662, 7
      %v665 = vrot.slane %v664, 1
      %v667 = vshll.u32 %v653, 16
      %v669 = vsel %vm445, %v665, %v667
      %s670 = scalar_lea.vmem %s2, 96
      %v671 = vld [vmem:[%s670] sm:$0xf]
      %v672 = vld [vmem:[%s670 + $0x4] sm:$0xf]
      %v673 = vld [vmem:[%s670 + $0x8] sm:$0xf]
      %v674 = vld [vmem:[%s670 + $0xc] sm:$0xf]
      %v675 = vld [vmem:[%s670 + $0x10] sm:$0xf]
      %v676 = vld [vmem:[%s670 + $0x14] sm:$0xf]
      %v677 = vld [vmem:[%s670 + $0x18] sm:$0xf]
      %v678 = vld [vmem:[%s670 + $0x1c] sm:$0xf]
      %680 = vst [vmem:[#allocation1] ss:$9 sm:$0xff] %v661
      %s682 = scalar_lea.vmem [#allocation1], 1
      %683 = vst [vmem:[%s682] ss:$9 sm:$0xff] %v669
      %v684 = vld [vmem:[#allocation1] sm:$0xff]
      %v693 = vunpack.c.l.b16 %v671
      %v694 = vunpack.c.l.b16 %v672
      %v695 = vunpack.c.l.b16 %v673
      %v696 = vunpack.c.l.b16 %v674
      %v697 = vunpack.c.l.b16 %v675
      %v698 = vunpack.c.l.b16 %v676
      %v699 = vunpack.c.l.b16 %v677
      %v700 = vunpack.c.l.b16 %v678
      %v701 = vpack.c.b16 %v694, %v693
      %v702 = vpack.c.b16 %v696, %v695
      %v703 = vpack.c.b16 %v698, %v697
      %v704 = vpack.c.b16 %v700, %v699
      %v709 = vsel %vm501, %v684, 0
      %711 = vmatpush.bf16.msra.mxu0 0
      %712 = vmatpush.bf16.msra.mxu0 0
      %713 = vmatpush.bf16.msra.mxu0 0
      %714 = vmatpush.bf16.msra.mxu0 0
      %715 = vmatpush.bf16.msra.mxu0 %v704
      %716 = vmatpush.bf16.msra.mxu0 %v703
      %717 = vmatpush.bf16.msra.mxu0 %v702
      %718 = vmatpush.bf16.msra.mxu0 %v701
      %719 = vmatmul.bf16.gmra.mxu0 %v709
      %v720 = vpop.f32.mrf.mxu0
      %v721 = vadd.f32 0.0, %v720
      %v722 = vpop.f32.mrf.mxu0
      %723 = vdwg.mxu0
      %v724 = vadd.f32 %v619, %v721
      %v726 = vrot.slane %v724, 2
      %v728 = vpack.c.bf16 %v724, %v724
      %v729 = vpack.c.bf16 %v726, %v726
      %vm730 = vcmask 253952
      %731 = vst.msk [vmem:[%s348] sm:$0x1] %vm730, %v728
      %732 = vst.msk [vmem:[%s348 + $0x1] sm:$0x1] %vm730, %v729
      %vm733 = vcmask 257024
      %v734 = vsel %vm733, %v724, 0.0
      %v735 = vrot.slane %v734, 4
      %v736 = vadd.f32 %v734, %v735
      %v737 = vrot.slane %v736, 2
      %v738 = vadd.f32 %v736, %v737
      %v739 = vrot.slane %v738, 1
      %v740 = vadd.f32 %v738, %v739
      %v741 = vmul.f32 %v724, %v724
      %v742 = vsel %vm733, %v741, 0.0
      %v743 = vrot.slane %v742, 4
      %v744 = vadd.f32 %v742, %v743
      %v745 = vrot.slane %v744, 2
      %v746 = vadd.f32 %v744, %v745
      %v747 = vrot.slane %v746, 1
      %v748 = vadd.f32 %v746, %v747
      %vm749 = vcmask 261120
      %750 = vst.msk [vmem:[%s356] sm:$0xff] %vm749, %v740
      %751 = vst.msk [vmem:[%s363] sm:$0xff] %vm749, %v748
      %s752 = smul.u32 2, %s22
      %p753 = scmp.lt.s32.totalorder %s21, 1
      %s754 = scalar_select %p753, %s21, 1
      %p755 = scmp.lt.s32.totalorder %s752, 1
      %s756 = scalar_select %p755, %s752, 1
      %s757 = smul.addr %s754, 2
      %s758 = sadd.s32 %s756, %s757
      %s759 = scalar_lea.vmem %s3, %s758
      %p760 = scmp.lt.s32.totalorder %s21, 1
      %s761 = scalar_select %p760, %s21, 1
      %p762 = scmp.lt.s32.totalorder %s22, 0
      %s763 = scalar_select %p762, %s22, 0
      %s764 = sadd.s32 %s763, %s761
      %s765 = smul.addr %s764, 8
      %s766 = scalar_lea.vmem %s4, %s765
      %p767 = scmp.lt.s32.totalorder %s21, 1
      %s768 = scalar_select %p767, %s21, 1
      %p769 = scmp.lt.s32.totalorder %s22, 0
      %s770 = scalar_select %p769, %s22, 0
      %s771 = sadd.s32 %s770, %s768
      %s772 = smul.addr %s771, 8
      %s773 = scalar_lea.vmem %s5, %s772
      // Predicated region
      $region33: #{_lambda_.8} parent=31 // pred_check
        %p774 = pneg %p130
      $region34: #{_lambda_.8} parent=31 // pred_check_branch
        %776 = sbr.rel (%p774) target = $region36
      $region35: #{_lambda_.8} parent=31 // pred_region
        %s777 = smul.u32 2, %s22
      $region36: #{_lambda_.8} parent=31 // pred_fallthru
        _
      // Predicated region
      $region37: #{_lambda_.8} parent=31 // pred_check
        %p778 = pneg %p158
      $region38: #{_lambda_.8} parent=31 // pred_check_branch
        %780 = sbr.rel (%p778) target = $region40
      $region39: #{_lambda_.8} parent=31 // pred_region
        _
      $region40: #{_lambda_.8} parent=31 // pred_fallthru
        _
      // Predicated region
      $region41: #{_lambda_.8} parent=31 // pred_check
        %p781 = pneg %p186
      $region42: #{_lambda_.8} parent=31 // pred_check_branch
        %783 = sbr.rel (%p781) target = $region44
      $region43: #{_lambda_.8} parent=31 // pred_region
        _
      $region44: #{_lambda_.8} parent=31 // pred_fallthru
        _
    $region32: #{_lambda_.8} parent=5 // pred_fallthru
      _
    %p784 = scmp.le.s32.totalorder 2, %s12
    // Predicated region
    $region45: #{_lambda_.8} parent=5 // pred_check
      %p785 = pneg %p784
    $region46: #{_lambda_.8} parent=5 // pred_check_branch
      %787 = sbr.rel (%p785) target = $region48
    $region47: #{_lambda_.8} parent=5 // pred_region
      %s788 = ssub.s32 %s12, 2
      // Predicated region
      $region49: #{_lambda_.8} parent=47 // pred_check
        %p789 = pneg %p136
      $region50: #{_lambda_.8} parent=47 // pred_check_branch
        %791 = sbr.rel (%p789) target = $region52
      $region51: #{_lambda_.8} parent=47 // pred_region
        %s792 = smul.u32 2, %s24
        %p793 = scmp.lt.s32.totalorder %s23, 1
        %s794 = scalar_select %p793, %s23, 1
        %p795 = scmp.lt.s32.totalorder %s792, 1
        %s796 = scalar_select %p795, %s792, 1
        %s797 = smul.addr %s794, 2
        %s798 = sadd.s32 %s796, %s797
        %s799 = scalar_lea.vmem %s3, %s798
      $region52: #{_lambda_.8} parent=47 // pred_fallthru
        _
      // Predicated region
      $region53: #{_lambda_.8} parent=47 // pred_check
        %p800 = pneg %p164
      $region54: #{_lambda_.8} parent=47 // pred_check_branch
        %802 = sbr.rel (%p800) target = $region56
      $region55: #{_lambda_.8} parent=47 // pred_region
        %p803 = scmp.lt.s32.totalorder %s23, 1
        %s804 = scalar_select %p803, %s23, 1
        %p805 = scmp.lt.s32.totalorder %s24, 0
        %s806 = scalar_select %p805, %s24, 0
        %s807 = sadd.s32 %s806, %s804
        %s808 = smul.addr %s807, 8
        %s809 = scalar_lea.vmem %s4, %s808
      $region56: #{_lambda_.8} parent=47 // pred_fallthru
        _
      // Predicated region
      $region57: #{_lambda_.8} parent=47 // pred_check
        %p810 = pneg %p192
      $region58: #{_lambda_.8} parent=47 // pred_check_branch
        %812 = sbr.rel (%p810) target = $region60
      $region59: #{_lambda_.8} parent=47 // pred_region
        %p813 = scmp.lt.s32.totalorder %s23, 1
        %s814 = scalar_select %p813, %s23, 1
        %p815 = scmp.lt.s32.totalorder %s24, 0
        %s816 = scalar_select %p815, %s24, 0
        %s817 = sadd.s32 %s816, %s814
        %s818 = smul.addr %s817, 8
        %s819 = scalar_lea.vmem %s5, %s818
      $region60: #{_lambda_.8} parent=47 // pred_fallthru
        _
    $region48: #{_lambda_.8} parent=5 // pred_fallthru
      _
  $region6: #{_lambda_.8} parent=0 // loop_footer
    %s16 = sadd.s32 1, %s12
  $region7: #{_lambda_.8} parent=0 // loop_footer_branch
    %11 = sbr.rel target = $region3
  $region8: #{_lambda_.8} parent=0 // loop_exit
    _

// kernel: _lambda_.9
$region0: #{_lambda_.9}
  #allocation0 [shape = 'u32[]', space=smem, size = 0x4, offset = 0x4, fixed_abs, tag = 'smem constant byte address 0x4 - core index']
  #allocation1 [shape = 'u32[72,128]{1,0:T(1,128)}', space=vmem, size = 0x9000, scoped, tag = 'internal scratch']
  %s0 = inlined_call_operand.vmem [shape: bf16[2,2,2,32], index: 0, kind: input, shape index: {}]
  %s1 = inlined_call_operand.vmem [shape: f32[1,1,32], index: 1, kind: input, shape index: {}]
  %s2 = inlined_call_operand.vmem [shape: f32[1,1,32], index: 2, kind: input, shape index: {}]
  %s3 = inlined_call_operand.vmem [shape: f32[2,2,2,32], index: 3, kind: output, shape index: {}]
  %s4 = sld [smem:[#allocation0]]
  $region45: #{_lambda_.9} parent=0
    _
  %s6 = ssub.s32 1, %s4
  %s7 = scalar_select 0, %s6, %s4
  loop: start=0, step=1, limit=4
  $region2: #{_lambda_.9} parent=0 // loop_pre_header
    _
  $region3: #{_lambda_.9} parent=0 // loop_header
    %s9 = sphi 0, %s13
    %p10 = scmp.ge.s32.totalorder %s9, 4
    %s16 = sphi 0, %s28
    %s17 = sphi 0, %s24
    %s18 = sphi 0, %s16
    %s19 = sphi 0, %s17
    %s20 = sphi 0, %s18
    %s21 = sphi 0, %s19
    %s33 = sphi 0, %s35
    %s36 = sphi 0, %s33
    %s37 = sphi 0, %s36
    %s53 = sphi 0, %s37
    %s57 = sphi 0, %s57
    %s59 = sphi 0, %s57
    %s60 = sphi 0, %s59
    %s74 = sphi 0, %s60
    %s78 = sphi 0, %s78
    %s80 = sphi 0, %s78
    %s81 = sphi 0, %s80
    %s95 = sphi 0, %s81
    %s103 = sphi 0, %s105
    %s106 = sphi 0, %s103
    %s107 = sphi 0, %s106
    %s123 = sphi 0, %s107
  $region4: #{_lambda_.9} parent=0 // loop_header_branch
    %12 = sbr.rel (%p10) target = $region8
  $region5: #{_lambda_.9} parent=0 // loop_body
    %s14 = ssub.s32 %s9, 1
    %s15 = ssub.s32 %s9, 2
    %s22 = sadd.s32 1, %s17
    %p23 = scmp.ge.s32.totalorder %s22, 1
    %s24 = scalar_select %p23, 0, %s22
    %s25 = sadd.s32 1, %s16
    %s26 = scalar_select %p23, %s25, %s16
    %p27 = scmp.ge.s32.totalorder %s26, 2
    %s28 = scalar_select %p27, 0, %s26
    %s29 = ssub.s32 %s16, %s28
    %s30 = ssub.s32 %s17, %s24
    %s31 = sor.u32 %s29, %s30
    %p32 = scmp.eq.s32.totalorder %s31, 0
    %s34 = sadd.s32 %s33, 1
    %s35 = scalar_select %p32, %s33, %s34
    %p38 = pneg %p32
    %p39 = scmp.eq.s32.totalorder %s9, 1
    %p40 = por %p38, %p39
    %p41 = scmp.ne.s32.totalorder %s33, %s36
    %p42 = scmp.eq.s32.totalorder %s9, 0
    %p43 = por %p41, %p42
    %p44 = scmp.ne.s32.totalorder %s33, %s36
    %p45 = scmp.eq.s32.totalorder %s14, 1
    %p46 = por %p44, %p45
    %p47 = scmp.ne.s32.totalorder %s36, %s37
    %p48 = scmp.eq.s32.totalorder %s14, 0
    %p49 = por %p47, %p48
    %p50 = scmp.ne.s32.totalorder %s36, %s37
    %p51 = scmp.eq.s32.totalorder %s15, 1
    %p52 = por %p50, %p51
    %p54 = scmp.ne.s32.totalorder %s37, %s53
    %p55 = scmp.eq.s32.totalorder %s15, 0
    %p56 = por %p54, %p55
    %s58 = sadd.s32 %s57, 1
    %p61 = scmp.eq.s32.totalorder %s9, 1
    %p62 = scmp.ne.s32.totalorder %s57, %s59
    %p63 = scmp.eq.s32.totalorder %s9, 0
    %p64 = por %p62, %p63
    %p65 = scmp.ne.s32.totalorder %s57, %s59
    %p66 = scmp.eq.s32.totalorder %s14, 1
    %p67 = por %p65, %p66
    %p68 = scmp.ne.s32.totalorder %s59, %s60
    %p69 = scmp.eq.s32.totalorder %s14, 0
    %p70 = por %p68, %p69
    %p71 = scmp.ne.s32.totalorder %s59, %s60
    %p72 = scmp.eq.s32.totalorder %s15, 1
    %p73 = por %p71, %p72
    %p75 = scmp.ne.s32.totalorder %s60, %s74
    %p76 = scmp.eq.s32.totalorder %s15, 0
    %p77 = por %p75, %p76
    %s79 = sadd.s32 %s78, 1
    %p82 = scmp.eq.s32.totalorder %s9, 1
    %p83 = scmp.ne.s32.totalorder %s78, %s80
    %p84 = scmp.eq.s32.totalorder %s9, 0
    %p85 = por %p83, %p84
    %p86 = scmp.ne.s32.totalorder %s78, %s80
    %p87 = scmp.eq.s32.totalorder %s14, 1
    %p88 = por %p86, %p87
    %p89 = scmp.ne.s32.totalorder %s80, %s81
    %p90 = scmp.eq.s32.totalorder %s14, 0
    %p91 = por %p89, %p90
    %p92 = scmp.ne.s32.totalorder %s80, %s81
    %p93 = scmp.eq.s32.totalorder %s15, 1
    %p94 = por %p92, %p93
    %p96 = scmp.ne.s32.totalorder %s81, %s95
    %p97 = scmp.eq.s32.totalorder %s15, 0
    %p98 = por %p96, %p97
    %s99 = ssub.s32 %s16, %s28
    %s100 = ssub.s32 %s17, %s24
    %s101 = sor.u32 %s99, %s100
    %p102 = scmp.eq.s32.totalorder %s101, 0
    %s104 = sadd.s32 %s103, 1
    %s105 = scalar_select %p102, %s103, %s104
    %p108 = pneg %p102
    %p109 = scmp.eq.s32.totalorder %s9, 1
    %p110 = por %p108, %p109
    %p111 = scmp.ne.s32.totalorder %s103, %s106
    %p112 = scmp.eq.s32.totalorder %s9, 0
    %p113 = por %p111, %p112
    %p114 = scmp.ne.s32.totalorder %s103, %s106
    %p115 = scmp.eq.s32.totalorder %s14, 1
    %p116 = por %p114, %p115
    %p117 = scmp.ne.s32.totalorder %s106, %s107
    %p118 = scmp.eq.s32.totalorder %s14, 0
    %p119 = por %p117, %p118
    %p120 = scmp.ne.s32.totalorder %s106, %s107
    %p121 = scmp.eq.s32.totalorder %s15, 1
    %p122 = por %p120, %p121
    %p124 = scmp.ne.s32.totalorder %s107, %s123
    %p125 = scmp.eq.s32.totalorder %s15, 0
    %p126 = por %p124, %p125
    %p127 = scmp.le.s32.totalorder 1, %s9
    %p128 = scmp.lt.s32.totalorder %s9, 3
    %p129 = pnand %p127, %p128
    %p130 = pneg %p129
    // Predicated region
    $region9: #{_lambda_.9} parent=5 // pred_check
      _
    $region10: #{_lambda_.9} parent=5 // pred_check_branch
      %132 = sbr.rel (%p129) target = $region12
    $region11: #{_lambda_.9} parent=5 // pred_region
      %s133 = ssub.s32 %s9, 1
      // Predicated region
      $region13: #{_lambda_.9} parent=11 // pred_check
        %p134 = pneg %p70
      $region14: #{_lambda_.9} parent=11 // pred_check_branch
        %136 = sbr.rel (%p134) target = $region16
      $region15: #{_lambda_.9} parent=11 // pred_region
        _
      $region16: #{_lambda_.9} parent=11 // pred_fallthru
        _
      // Predicated region
      $region17: #{_lambda_.9} parent=11 // pred_check
        %p137 = pneg %p91
      $region18: #{_lambda_.9} parent=11 // pred_check_branch
        %139 = sbr.rel (%p137) target = $region20
      $region19: #{_lambda_.9} parent=11 // pred_region
        _
      $region20: #{_lambda_.9} parent=11 // pred_fallthru
        _
    $region12: #{_lambda_.9} parent=5 // pred_fallthru
      _
    %p140 = scmp.lt.s32.totalorder %s9, 2
    // Predicated region
    $region21: #{_lambda_.9} parent=5 // pred_check
      %p141 = pneg %p140
    $region22: #{_lambda_.9} parent=5 // pred_check_branch
      %143 = sbr.rel (%p141) target = $region24
    $region23: #{_lambda_.9} parent=5 // pred_region
      // Predicated region
      $region25: #{_lambda_.9} parent=23 // pred_check
        %p144 = pneg %p43
      $region26: #{_lambda_.9} parent=23 // pred_check_branch
        %146 = sbr.rel (%p144) target = $region28
      $region27: #{_lambda_.9} parent=23 // pred_region
        %s147 = smul.u32 2, %s17
        %p148 = scmp.lt.s32.totalorder %s16, 1
        %s149 = scalar_select %p148, %s16, 1
        %p150 = scmp.lt.s32.totalorder %s147, 1
        %s151 = scalar_select %p150, %s147, 1
        %s152 = smul.addr %s149, 2
        %s153 = sadd.s32 %s151, %s152
        %s154 = scalar_lea.vmem %s0, %s153
        %s155 = smul.u32 2, %s17
      $region28: #{_lambda_.9} parent=23 // pred_fallthru
        _
    $region24: #{_lambda_.9} parent=5 // pred_fallthru
      _
    %p156 = scmp.le.s32.totalorder 1, %s9
    %p157 = scmp.lt.s32.totalorder %s9, 3
    %p158 = pnand %p156, %p157
    %p159 = pneg %p158
    // Predicated region
    $region29: #{_lambda_.9} parent=5 // pred_check
      _
    $region30: #{_lambda_.9} parent=5 // pred_check_branch
      %161 = sbr.rel (%p158) target = $region32
    $region31: #{_lambda_.9} parent=5 // pred_region
      %s162 = ssub.s32 %s9, 1
      %s163 = smul.u32 2, %s19
      %p164 = scmp.lt.s32.totalorder %s18, 1
      %s165 = scalar_select %p164, %s18, 1
      %p166 = scmp.lt.s32.totalorder %s163, 1
      %s167 = scalar_select %p166, %s163, 1
      %s168 = smul.addr %s165, 2
      %s169 = sadd.s32 %s167, %s168
      %s170 = scalar_lea.vmem %s0, %s169
      %p171 = pneg %p49
      %p172 = pneg %p46
      %p173 = pneg %p70
      %p174 = pneg %p67
      %p175 = pneg %p91
      %p176 = pneg %p88
      %p177 = pneg %p119
      %p178 = pneg %p116
      %s179 = smul.u32 2, %s19
      %p180 = scmp.lt.s32.totalorder %s18, 1
      %s181 = scalar_select %p180, %s18, 1
      %p182 = scmp.lt.s32.totalorder %s179, 1
      %s183 = scalar_select %p182, %s179, 1
      %s184 = smul.addr %s181, 2
      %s185 = sadd.s32 %s183, %s184
      %s186 = smul.addr %s185, 2
      %s187 = scalar_lea.vmem %s3, %s186
      %s188 = smul.u32 2, %s19
      %p189 = scmp.lt.s32.totalorder %s18, 1
      %s190 = scalar_select %p189, %s18, 1
      %p191 = scmp.lt.s32.totalorder %s188, 1
      %s192 = scalar_select %p191, %s188, 1
      %s193 = smul.addr %s190, 2
      %s194 = sadd.s32 %s192, %s193
      %s195 = scalar_lea.vmem %s0, %s194
      %s196 = smul.u32 2, %s19
      %s197 = smul.u32 2, %s19
      %p198 = scmp.lt.s32.totalorder %s18, 1
      %s199 = scalar_select %p198, %s18, 1
      %p200 = scmp.lt.s32.totalorder %s197, 1
      %s201 = scalar_select %p200, %s197, 1
      %s202 = smul.addr %s199, 2
      %s203 = sadd.s32 %s201, %s202
      %s204 = smul.addr %s203, 2
      %s205 = scalar_lea.vmem %s3, %s204
      %s206 = smul.u32 2, %s19
      %v207 = vld [vmem:[%s195] sm:$0x1]
      %v208 = vld [vmem:[%s195 + $0x1] sm:$0x1]
      %v209 = vunpack.c.l.bf16 %v207
      %v210 = vunpack.c.l.bf16 %v208
      %v211 = vld [vmem:[%s1] sm:$0x1]
      %v213 = vperm.slane %v211, 0
      %v215 = vmul.f32 %v209, %v213
      %v216 = vmul.f32 %v210, %v213
      %v217 = vld [vmem:[%s2] sm:$0x1]
      %v219 = vperm.slane %v217, 0
      %v221 = vadd.f32 %v215, %v219
      %v222 = vadd.f32 %v216, %v219
      %vm223 = vcmp.ge.f32.partialorder %v221, 0.0
      %vm224 = vcmp.ge.f32.partialorder %v222, 0.0
      %v225 = vmul.f32 %v221, 0.01
      %v226 = vmul.f32 %v222, 0.01
      %v227 = vsel %vm223, %v221, %v225
      %v228 = vsel %vm224, %v222, %v226
      %vm229 = vcmask 254976
      %230 = vst.msk [vmem:[%s205] sm:$0x3] %vm229, %v227
      %231 = vst.msk [vmem:[%s205 + $0x2] sm:$0x3] %vm229, %v228
      %s232 = smul.u32 2, %s19
      %p233 = scmp.lt.s32.totalorder %s18, 1
      %s234 = scalar_select %p233, %s18, 1
      %p235 = scmp.lt.s32.totalorder %s232, 1
      %s236 = scalar_select %p235, %s232, 1
      %s237 = smul.addr %s234, 2
      %s238 = sadd.s32 %s236, %s237
      %s239 = smul.addr %s238, 2
      %s240 = scalar_lea.vmem %s3, %s239
      // Predicated region
      $region33: #{_lambda_.9} parent=31 // pred_check
        %p241 = pneg %p116
      $region34: #{_lambda_.9} parent=31 // pred_check_branch
        %243 = sbr.rel (%p241) target = $region36
      $region35: #{_lambda_.9} parent=31 // pred_region
        %s244 = smul.u32 2, %s19
      $region36: #{_lambda_.9} parent=31 // pred_fallthru
        _
    $region32: #{_lambda_.9} parent=5 // pred_fallthru
      _
    %p245 = scmp.le.s32.totalorder 2, %s9
    // Predicated region
    $region37: #{_lambda_.9} parent=5 // pred_check
      %p246 = pneg %p245
    $region38: #{_lambda_.9} parent=5 // pred_check_branch
      %248 = sbr.rel (%p246) target = $region40
    $region39: #{_lambda_.9} parent=5 // pred_region
      %s249 = ssub.s32 %s9, 2
      // Predicated region
      $region41: #{_lambda_.9} parent=39 // pred_check
        %p250 = pneg %p122
      $region42: #{_lambda_.9} parent=39 // pred_check_branch
        %252 = sbr.rel (%p250) target = $region44
      $region43: #{_lambda_.9} parent=39 // pred_region
        %s253 = smul.u32 2, %s21
        %p254 = scmp.lt.s32.totalorder %s20, 1
        %s255 = scalar_select %p254, %s20, 1
        %p256 = scmp.lt.s32.totalorder %s253, 1
        %s257 = scalar_select %p256, %s253, 1
        %s258 = smul.addr %s255, 2
        %s259 = sadd.s32 %s257, %s258
        %s260 = smul.addr %s259, 2
        %s261 = scalar_lea.vmem %s3, %s260
      $region44: #{_lambda_.9} parent=39 // pred_fallthru
        _
    $region40: #{_lambda_.9} parent=5 // pred_fallthru
      _
  $region6: #{_lambda_.9} parent=0 // loop_footer
    %s13 = sadd.s32 1, %s9
  $region7: #{_lambda_.9} parent=0 // loop_footer_branch
    %8 = sbr.rel target = $region3
  $region8: #{_lambda_.9} parent=0 // loop_exit
    _

</llo_original>
